<compile_context>
chip_gen: v7x
topology: tpu7x:2x2x1
jax: 0.10.0
libtpu: 0.0.40
codegen_flags: <defaults>
</compile_context>

<pallas_src>
import jax
import jax.numpy as jnp
from jax.experimental import pallas as pl
from jax.experimental.pallas import tpu as pltpu

# ---------------- model hyper-params (small, consistent with the module) ----------------
BATCH = 2
C_IN = 4
H = W = 16
HW = H * W
KH = KW = 3
C_CC = C_IN + 2                  # CoordConv adds 2 coordinate channels
C_FEAT = 512                     # feature_extractor output channels (fc expects 512)
OUT_DIM = 32                     # Encoder(out_dim=32)
OUT_PAD = 128                    # lane-dense kernel output; sliced to OUT_DIM in wrapper
K_DIM = KH * KW * C_CC           # 54: im2col contraction dim
K_PAD = 64                       # zero-padded, tile-friendly contraction dim


# ------------- Pallas kernel: im2col -> conv(matmul)+relu -> sum-pool -> fc --------------
def encoder_kernel(img_ref, wc_ref, bc_ref, wf_ref, bf_ref, out_ref, patch_ref):
    # img_ref:   (B, H+2, W+2, C_CC) f32  -- spatially padded CoordConv image
    # wc_ref:    (K_PAD, C_FEAT)     bf16 -- conv weight (matmul form, K zero-padded)
    # bc_ref:    (1, C_FEAT)         f32  -- conv bias
    # wf_ref:    (C_FEAT, OUT_PAD)   bf16 -- fc weight, pre-scaled by 1/HW (pool folded in)
    # bf_ref:    (1, OUT_PAD)        f32  -- fc bias (zero-padded to OUT_PAD)
    # out_ref:   (B, OUT_PAD)        f32
    # patch_ref: VMEM scratch (B, H, W, K_PAD) bf16 -- in-kernel im2col slab

    # Zero once so the K-pad columns (54..63) contribute nothing to the matmul.
    patch_ref[...] = jnp.zeros_like(patch_ref)

    # Build the im2col patches with 9 static shifted slices per batch element
    # (K layout = (dy, dx, cin), matching the conv weight layout).
    for b in range(BATCH):
        for dy in range(KH):
            for dx in range(KW):
                tap = img_ref[b, dy:dy + H, dx:dx + W, :]            # (H, W, C_CC) f32
                k0 = (dy * KW + dx) * C_CC
                patch_ref[b, :, :, k0:k0 + C_CC] = tap.astype(jnp.bfloat16)

    patches = patch_ref[...].reshape(BATCH * HW, K_PAD)             # (B*HW, K_PAD) bf16

    # Conv as one MXU matmul: bf16 operands, f32 accumulation, + bias, ReLU.
    feat = jnp.dot(patches, wc_ref[...],
                   preferred_element_type=jnp.float32)              # (B*HW, C_FEAT) f32
    feat = jnp.maximum(feat + bc_ref[...], 0.0)

    # AdaptiveAvgPool2d((1,1)) == mean over spatial positions: do a cross-sublane SUM
    # (XLU); the 1/HW scale is already folded into wf.
    pooled = jnp.concatenate(
        [jnp.sum(feat[b * HW:(b + 1) * HW, :], axis=0, keepdims=True)
         for b in range(BATCH)],
        axis=0)                                                      # (B, C_FEAT) f32

    # fc: Linear(512, out_dim) -- bf16 operands, f32 accumulation, lane-dense output.
    out = jnp.dot(pooled.astype(jnp.bfloat16), wf_ref[...],
                  preferred_element_type=jnp.float32) + bf_ref[...]  # (B, OUT_PAD) f32
    out_ref[...] = out


def encoder_pallas(img_pad, wc_bf16, bc, wf_bf16, bf_pad):
    B = img_pad.shape[0]
    flops = int(2 * B * HW * K_PAD * C_FEAT        # conv matmul
                + B * HW * C_FEAT                   # pool sum
                + 2 * B * C_FEAT * OUT_PAD)         # fc matmul
    bytes_accessed = int(img_pad.size * 4 + wc_bf16.size * 2 + bc.size * 4
                         + wf_bf16.size * 2 + bf_pad.size * 4 + B * OUT_PAD * 4)
    return pl.pallas_call(
        encoder_kernel,
        out_shape=jax.ShapeDtypeStruct((B, OUT_PAD), jnp.float32),
        grid_spec=pltpu.PrefetchScalarGridSpec(
            num_scalar_prefetch=0,
            grid=(1,),                               # single step: batch folded into M
            in_specs=[
                pl.BlockSpec((B, H + 2, W + 2, C_CC), lambda i: (0, 0, 0, 0)),
                pl.BlockSpec((K_PAD, C_FEAT), lambda i: (0, 0)),
                pl.BlockSpec((1, C_FEAT), lambda i: (0, 0)),
                pl.BlockSpec((C_FEAT, OUT_PAD), lambda i: (0, 0)),
                pl.BlockSpec((1, OUT_PAD), lambda i: (0, 0)),
            ],
            out_specs=pl.BlockSpec((B, OUT_PAD), lambda i: (0, 0)),
            scratch_shapes=[pltpu.VMEM((B, H, W, K_PAD), jnp.bfloat16)],
        ),
        compiler_params=pltpu.CompilerParams(
            dimension_semantics=("arbitrary",),
        ),
        cost_estimate=pl.CostEstimate(flops=flops, transcendentals=0,
                                      bytes_accessed=bytes_accessed),
    )(img_pad, wc_bf16, bc, wf_bf16, bf_pad)


# -------- glue: CoordConv channels + spatial pad (tiny, fused by XLA into one op) --------
def coord_conv_nhwc(x_nhwc):
    """Append CoordConv channels (h-coord then w-coord, in [-1,1]) as the last two."""
    B, h, w, _ = x_nhwc.shape
    lin_h = jnp.linspace(-1.0, 1.0, h, dtype=x_nhwc.dtype)[:, None]   # (h,1)
    lin_w = jnp.linspace(-1.0, 1.0, w, dtype=x_nhwc.dtype)[None, :]   # (1,w)
    map_h = jnp.broadcast_to(lin_h, (h, w))                           # varies along h
    map_w = jnp.broadcast_to(lin_w, (h, w))                           # varies along w
    maps = jnp.stack((map_h, map_w), axis=-1)                         # (h,w,2)
    maps_b = jnp.broadcast_to(maps[None], (B, h, w, 2))
    return jnp.concatenate((x_nhwc, maps_b), axis=-1)                 # (B,h,w,C+2)


def prepare_params(wc, wf, bf):
    """One-time weight prep (outside the jitted forward): pad K, fold 1/HW, cast to bf16."""
    wc_bf16 = jnp.pad(wc, ((0, K_PAD - K_DIM), (0, 0))).astype(jnp.bfloat16)     # (64,512)
    wf_bf16 = jnp.pad(wf / HW, ((0, 0), (0, OUT_PAD - OUT_DIM))).astype(jnp.bfloat16)
    bf_pad = jnp.pad(bf, ((0, 0), (0, OUT_PAD - OUT_DIM)))                       # (1,128) f32
    return wc_bf16, wf_bf16, bf_pad


@jax.jit
def encoder_forward(x_nchw, wc_bf16, bc, wf_bf16, bf_pad):
    x_nhwc = jnp.transpose(x_nchw, (0, 2, 3, 1))                      # NCHW -> NHWC
    x_cc = coord_conv_nhwc(x_nhwc)                                    # (B,H,W,C+2)
    img_pad = jnp.pad(x_cc, ((0, 0), (1, 1), (1, 1), (0, 0)))         # (B,H+2,W+2,C+2)
    out = encoder_pallas(img_pad, wc_bf16, bc, wf_bf16, bf_pad)       # (B, OUT_PAD)
    return out[:, :OUT_DIM]                                           # (B, OUT_DIM)


# ---------------- reference (pure JAX f32, same math) for a sanity check ------------------
def encoder_reference(x_nchw, wc, bc, wf, bf):
    x_nhwc = jnp.transpose(x_nchw, (0, 2, 3, 1))
    x_cc = coord_conv_nhwc(x_nhwc)
    xp = jnp.pad(x_cc, ((0, 0), (1, 1), (1, 1), (0, 0)))
    cols = []
    for dy in range(KH):
        for dx in range(KW):
            cols.append(xp[:, dy:dy + H, dx:dx + W, :])
    patches = jnp.concatenate(cols, axis=-1).reshape(-1, HW, K_DIM)   # (B,HW,54)
    feat = jnp.maximum(jnp.einsum("bpk,kc->bpc", patches, wc) + bc, 0.0)
    pooled = jnp.mean(feat, axis=1)                                   # (B, C_FEAT)
    return pooled @ wf + bf


if __name__ == "__main__":
    key = jax.random.PRNGKey(0)
    k_x, k_wc, k_bc, k_wf, k_bf = jax.random.split(key, 5)

    x = jax.random.normal(k_x, (BATCH, C_IN, H, W), dtype=jnp.float32)

    # Deterministic synthetic parameters.
    # Conv weight in matmul layout (K_DIM, C_FEAT); K ordering = (dy, dx, cin),
    # equivalent to torch weight (Cout, Cin, kh, kw) transposed to (kh, kw, Cin, Cout).
    wc = jax.random.normal(k_wc, (K_DIM, C_FEAT), dtype=jnp.float32) * 0.05
    bc = jax.random.normal(k_bc, (1, C_FEAT), dtype=jnp.float32) * 0.05
    # fc weight in (in, out) layout == torch fc.weight.T
    wf = jax.random.normal(k_wf, (C_FEAT, OUT_DIM), dtype=jnp.float32) * 0.05
    bf = jax.random.normal(k_bf, (1, OUT_DIM), dtype=jnp.float32) * 0.05

    wc_bf16, wf_bf16, bf_pad = prepare_params(wc, wf, bf)

    out = jax.block_until_ready(encoder_forward(x, wc_bf16, bc, wf_bf16, bf_pad))
    ref = jax.block_until_ready(encoder_reference(x, wc, bc, wf, bf))

    assert out.shape == (BATCH, OUT_DIM), out.shape
    # bf16 operands on conv + fc matmuls (f32 accumulation) -> relaxed tolerance vs f32 ref
    max_err = float(jnp.max(jnp.abs(out - ref)))
    assert jnp.allclose(out, ref, atol=3e-2, rtol=3e-2), max_err

    print("KERNEL_OK")
</pallas_src>

<mosaic_0001>
module attributes {stable_mosaic.version = 11 : i64} {
  func.func @encoder_kernel(%arg0: i32, %arg1: memref<2x18x18x6xf32, #tpu.memory_space<vmem>>, %arg2: memref<64x512xbf16, #tpu.memory_space<vmem>>, %arg3: memref<1x512xf32, #tpu.memory_space<vmem>>, %arg4: memref<512x128xbf16, #tpu.memory_space<vmem>>, %arg5: memref<1x128xf32, #tpu.memory_space<vmem>>, %arg6: memref<2x128xf32, #tpu.memory_space<vmem>>, %arg7: memref<2x16x16x64xbf16, #tpu.memory_space<vmem>>) attributes {dimension_semantics = [#tpu.dimension_semantics<arbitrary>], iteration_bounds = array<i64: 1>, scalar_prefetch = 0 : i64, scratch_operands = 1 : i64, tpu.core_type = #tpu.core_type<tc>, window_params = [{pipeline_mode = #tpu.pipeline_mode<synchronous>, transform_indices = @transform_0, window_bounds = array<i64: 2, 18, 18, 6>}, {pipeline_mode = #tpu.pipeline_mode<synchronous>, transform_indices = @transform_1, window_bounds = array<i64: 64, 512>}, {pipeline_mode = #tpu.pipeline_mode<synchronous>, transform_indices = @transform_2, window_bounds = array<i64: 1, 512>}, {pipeline_mode = #tpu.pipeline_mode<synchronous>, transform_indices = @transform_3, window_bounds = array<i64: 512, 128>}, {pipeline_mode = #tpu.pipeline_mode<synchronous>, transform_indices = @transform_4, window_bounds = array<i64: 1, 128>}, {pipeline_mode = #tpu.pipeline_mode<synchronous>, transform_indices = @transform_5, window_bounds = array<i64: 2, 128>}]} {
    %cst = arith.constant 0.000000e+00 : bf16
    %0 = vector.broadcast %cst : bf16 to vector<2x16x16x64xbf16>
    %c0 = arith.constant 0 : index
    %c0_0 = arith.constant 0 : index
    %c0_1 = arith.constant 0 : index
    %c0_2 = arith.constant 0 : index
    %1 = vector.load %arg7[%c0, %c0_0, %c0_1, %c0_2] : memref<2x16x16x64xbf16, #tpu.memory_space<vmem>>, vector<2x16x16x64xbf16>
    tpu.vector_store %arg7[%c0, %c0_0, %c0_1, %c0_2], %0 {strides = array<i32>} : memref<2x16x16x64xbf16, #tpu.memory_space<vmem>>, vector<2x16x16x64xbf16>,
    %c0_3 = arith.constant 0 : index
    %c0_4 = arith.constant 0 : index
    %c0_5 = arith.constant 0 : index
    %c0_6 = arith.constant 0 : index
    %2 = vector.load %arg1[%c0_3, %c0_4, %c0_5, %c0_6] : memref<2x18x18x6xf32, #tpu.memory_space<vmem>>, vector<1x16x16x6xf32>
    %3 = vector.shape_cast %2 : vector<1x16x16x6xf32> to vector<16x16x6xf32>
    %4 = arith.truncf %3 : vector<16x16x6xf32> to vector<16x16x6xbf16>
    %c0_7 = arith.constant 0 : index
    %c0_8 = arith.constant 0 : index
    %c0_9 = arith.constant 0 : index
    %c0_10 = arith.constant 0 : index
    %5 = vector.load %arg7[%c0_7, %c0_8, %c0_9, %c0_10] : memref<2x16x16x64xbf16, #tpu.memory_space<vmem>>, vector<1x16x16x6xbf16>
    %6 = vector.shape_cast %5 : vector<1x16x16x6xbf16> to vector<16x16x6xbf16>
    %7 = vector.shape_cast %4 : vector<16x16x6xbf16> to vector<1x16x16x6xbf16>
    tpu.vector_store %arg7[%c0_7, %c0_8, %c0_9, %c0_10], %7 {strides = array<i32>} : memref<2x16x16x64xbf16, #tpu.memory_space<vmem>>, vector<1x16x16x6xbf16>,
    %c0_11 = arith.constant 0 : index
    %c0_12 = arith.constant 0 : index
    %c1 = arith.constant 1 : index
    %c0_13 = arith.constant 0 : index
    %8 = vector.load %arg1[%c0_11, %c0_12, %c1, %c0_13] : memref<2x18x18x6xf32, #tpu.memory_space<vmem>>, vector<1x16x16x6xf32>
    %9 = vector.shape_cast %8 : vector<1x16x16x6xf32> to vector<16x16x6xf32>
    %10 = arith.truncf %9 : vector<16x16x6xf32> to vector<16x16x6xbf16>
    %c0_14 = arith.constant 0 : index
    %c0_15 = arith.constant 0 : index
    %c0_16 = arith.constant 0 : index
    %c6 = arith.constant 6 : index
    %11 = vector.load %arg7[%c0_14, %c0_15, %c0_16, %c6] : memref<2x16x16x64xbf16, #tpu.memory_space<vmem>>, vector<1x16x16x6xbf16>
    %12 = vector.shape_cast %11 : vector<1x16x16x6xbf16> to vector<16x16x6xbf16>
    %13 = vector.shape_cast %10 : vector<16x16x6xbf16> to vector<1x16x16x6xbf16>
    tpu.vector_store %arg7[%c0_14, %c0_15, %c0_16, %c6], %13 {strides = array<i32>} : memref<2x16x16x64xbf16, #tpu.memory_space<vmem>>, vector<1x16x16x6xbf16>,
    %c0_17 = arith.constant 0 : index
    %c0_18 = arith.constant 0 : index
    %c2 = arith.constant 2 : index
    %c0_19 = arith.constant 0 : index
    %14 = vector.load %arg1[%c0_17, %c0_18, %c2, %c0_19] : memref<2x18x18x6xf32, #tpu.memory_space<vmem>>, vector<1x16x16x6xf32>
    %15 = vector.shape_cast %14 : vector<1x16x16x6xf32> to vector<16x16x6xf32>
    %16 = arith.truncf %15 : vector<16x16x6xf32> to vector<16x16x6xbf16>
    %c0_20 = arith.constant 0 : index
    %c0_21 = arith.constant 0 : index
    %c0_22 = arith.constant 0 : index
    %c12 = arith.constant 12 : index
    %17 = vector.load %arg7[%c0_20, %c0_21, %c0_22, %c12] : memref<2x16x16x64xbf16, #tpu.memory_space<vmem>>, vector<1x16x16x6xbf16>
    %18 = vector.shape_cast %17 : vector<1x16x16x6xbf16> to vector<16x16x6xbf16>
    %19 = vector.shape_cast %16 : vector<16x16x6xbf16> to vector<1x16x16x6xbf16>
    tpu.vector_store %arg7[%c0_20, %c0_21, %c0_22, %c12], %19 {strides = array<i32>} : memref<2x16x16x64xbf16, #tpu.memory_space<vmem>>, vector<1x16x16x6xbf16>,
    %c0_23 = arith.constant 0 : index
    %c1_24 = arith.constant 1 : index
    %c0_25 = arith.constant 0 : index
    %c0_26 = arith.constant 0 : index
    %20 = vector.load %arg1[%c0_23, %c1_24, %c0_25, %c0_26] : memref<2x18x18x6xf32, #tpu.memory_space<vmem>>, vector<1x16x16x6xf32>
    %21 = vector.shape_cast %20 : vector<1x16x16x6xf32> to vector<16x16x6xf32>
    %22 = arith.truncf %21 : vector<16x16x6xf32> to vector<16x16x6xbf16>
    %c0_27 = arith.constant 0 : index
    %c0_28 = arith.constant 0 : index
    %c0_29 = arith.constant 0 : index
    %c18 = arith.constant 18 : index
    %23 = vector.load %arg7[%c0_27, %c0_28, %c0_29, %c18] : memref<2x16x16x64xbf16, #tpu.memory_space<vmem>>, vector<1x16x16x6xbf16>
    %24 = vector.shape_cast %23 : vector<1x16x16x6xbf16> to vector<16x16x6xbf16>
    %25 = vector.shape_cast %22 : vector<16x16x6xbf16> to vector<1x16x16x6xbf16>
    tpu.vector_store %arg7[%c0_27, %c0_28, %c0_29, %c18], %25 {strides = array<i32>} : memref<2x16x16x64xbf16, #tpu.memory_space<vmem>>, vector<1x16x16x6xbf16>,
    %c0_30 = arith.constant 0 : index
    %c1_31 = arith.constant 1 : index
    %c1_32 = arith.constant 1 : index
    %c0_33 = arith.constant 0 : index
    %26 = vector.load %arg1[%c0_30, %c1_31, %c1_32, %c0_33] : memref<2x18x18x6xf32, #tpu.memory_space<vmem>>, vector<1x16x16x6xf32>
    %27 = vector.shape_cast %26 : vector<1x16x16x6xf32> to vector<16x16x6xf32>
    %28 = arith.truncf %27 : vector<16x16x6xf32> to vector<16x16x6xbf16>
    %c0_34 = arith.constant 0 : index
    %c0_35 = arith.constant 0 : index
    %c0_36 = arith.constant 0 : index
    %c24 = arith.constant 24 : index
    %29 = vector.load %arg7[%c0_34, %c0_35, %c0_36, %c24] : memref<2x16x16x64xbf16, #tpu.memory_space<vmem>>, vector<1x16x16x6xbf16>
    %30 = vector.shape_cast %29 : vector<1x16x16x6xbf16> to vector<16x16x6xbf16>
    %31 = vector.shape_cast %28 : vector<16x16x6xbf16> to vector<1x16x16x6xbf16>
    tpu.vector_store %arg7[%c0_34, %c0_35, %c0_36, %c24], %31 {strides = array<i32>} : memref<2x16x16x64xbf16, #tpu.memory_space<vmem>>, vector<1x16x16x6xbf16>,
    %c0_37 = arith.constant 0 : index
    %c1_38 = arith.constant 1 : index
    %c2_39 = arith.constant 2 : index
    %c0_40 = arith.constant 0 : index
    %32 = vector.load %arg1[%c0_37, %c1_38, %c2_39, %c0_40] : memref<2x18x18x6xf32, #tpu.memory_space<vmem>>, vector<1x16x16x6xf32>
    %33 = vector.shape_cast %32 : vector<1x16x16x6xf32> to vector<16x16x6xf32>
    %34 = arith.truncf %33 : vector<16x16x6xf32> to vector<16x16x6xbf16>
    %c0_41 = arith.constant 0 : index
    %c0_42 = arith.constant 0 : index
    %c0_43 = arith.constant 0 : index
    %c30 = arith.constant 30 : index
    %35 = vector.load %arg7[%c0_41, %c0_42, %c0_43, %c30] : memref<2x16x16x64xbf16, #tpu.memory_space<vmem>>, vector<1x16x16x6xbf16>
    %36 = vector.shape_cast %35 : vector<1x16x16x6xbf16> to vector<16x16x6xbf16>
    %37 = vector.shape_cast %34 : vector<16x16x6xbf16> to vector<1x16x16x6xbf16>
    tpu.vector_store %arg7[%c0_41, %c0_42, %c0_43, %c30], %37 {strides = array<i32>} : memref<2x16x16x64xbf16, #tpu.memory_space<vmem>>, vector<1x16x16x6xbf16>,
    %c0_44 = arith.constant 0 : index
    %c2_45 = arith.constant 2 : index
    %c0_46 = arith.constant 0 : index
    %c0_47 = arith.constant 0 : index
    %38 = vector.load %arg1[%c0_44, %c2_45, %c0_46, %c0_47] : memref<2x18x18x6xf32, #tpu.memory_space<vmem>>, vector<1x16x16x6xf32>
    %39 = vector.shape_cast %38 : vector<1x16x16x6xf32> to vector<16x16x6xf32>
    %40 = arith.truncf %39 : vector<16x16x6xf32> to vector<16x16x6xbf16>
    %c0_48 = arith.constant 0 : index
    %c0_49 = arith.constant 0 : index
    %c0_50 = arith.constant 0 : index
    %c36 = arith.constant 36 : index
    %41 = vector.load %arg7[%c0_48, %c0_49, %c0_50, %c36] : memref<2x16x16x64xbf16, #tpu.memory_space<vmem>>, vector<1x16x16x6xbf16>
    %42 = vector.shape_cast %41 : vector<1x16x16x6xbf16> to vector<16x16x6xbf16>
    %43 = vector.shape_cast %40 : vector<16x16x6xbf16> to vector<1x16x16x6xbf16>
    tpu.vector_store %arg7[%c0_48, %c0_49, %c0_50, %c36], %43 {strides = array<i32>} : memref<2x16x16x64xbf16, #tpu.memory_space<vmem>>, vector<1x16x16x6xbf16>,
    %c0_51 = arith.constant 0 : index
    %c2_52 = arith.constant 2 : index
    %c1_53 = arith.constant 1 : index
    %c0_54 = arith.constant 0 : index
    %44 = vector.load %arg1[%c0_51, %c2_52, %c1_53, %c0_54] : memref<2x18x18x6xf32, #tpu.memory_space<vmem>>, vector<1x16x16x6xf32>
    %45 = vector.shape_cast %44 : vector<1x16x16x6xf32> to vector<16x16x6xf32>
    %46 = arith.truncf %45 : vector<16x16x6xf32> to vector<16x16x6xbf16>
    %c0_55 = arith.constant 0 : index
    %c0_56 = arith.constant 0 : index
    %c0_57 = arith.constant 0 : index
    %c42 = arith.constant 42 : index
    %47 = vector.load %arg7[%c0_55, %c0_56, %c0_57, %c42] : memref<2x16x16x64xbf16, #tpu.memory_space<vmem>>, vector<1x16x16x6xbf16>
    %48 = vector.shape_cast %47 : vector<1x16x16x6xbf16> to vector<16x16x6xbf16>
    %49 = vector.shape_cast %46 : vector<16x16x6xbf16> to vector<1x16x16x6xbf16>
    tpu.vector_store %arg7[%c0_55, %c0_56, %c0_57, %c42], %49 {strides = array<i32>} : memref<2x16x16x64xbf16, #tpu.memory_space<vmem>>, vector<1x16x16x6xbf16>,
    %c0_58 = arith.constant 0 : index
    %c2_59 = arith.constant 2 : index
    %c2_60 = arith.constant 2 : index
    %c0_61 = arith.constant 0 : index
    %50 = vector.load %arg1[%c0_58, %c2_59, %c2_60, %c0_61] : memref<2x18x18x6xf32, #tpu.memory_space<vmem>>, vector<1x16x16x6xf32>
    %51 = vector.shape_cast %50 : vector<1x16x16x6xf32> to vector<16x16x6xf32>
    %52 = arith.truncf %51 : vector<16x16x6xf32> to vector<16x16x6xbf16>
    %c0_62 = arith.constant 0 : index
    %c0_63 = arith.constant 0 : index
    %c0_64 = arith.constant 0 : index
    %c48 = arith.constant 48 : index
    %53 = vector.load %arg7[%c0_62, %c0_63, %c0_64, %c48] : memref<2x16x16x64xbf16, #tpu.memory_space<vmem>>, vector<1x16x16x6xbf16>
    %54 = vector.shape_cast %53 : vector<1x16x16x6xbf16> to vector<16x16x6xbf16>
    %55 = vector.shape_cast %52 : vector<16x16x6xbf16> to vector<1x16x16x6xbf16>
    tpu.vector_store %arg7[%c0_62, %c0_63, %c0_64, %c48], %55 {strides = array<i32>} : memref<2x16x16x64xbf16, #tpu.memory_space<vmem>>, vector<1x16x16x6xbf16>,
    %c1_65 = arith.constant 1 : index
    %c0_66 = arith.constant 0 : index
    %c0_67 = arith.constant 0 : index
    %c0_68 = arith.constant 0 : index
    %56 = vector.load %arg1[%c1_65, %c0_66, %c0_67, %c0_68] : memref<2x18x18x6xf32, #tpu.memory_space<vmem>>, vector<1x16x16x6xf32>
    %57 = vector.shape_cast %56 : vector<1x16x16x6xf32> to vector<16x16x6xf32>
    %58 = arith.truncf %57 : vector<16x16x6xf32> to vector<16x16x6xbf16>
    %c1_69 = arith.constant 1 : index
    %c0_70 = arith.constant 0 : index
    %c0_71 = arith.constant 0 : index
    %c0_72 = arith.constant 0 : index
    %59 = vector.load %arg7[%c1_69, %c0_70, %c0_71, %c0_72] : memref<2x16x16x64xbf16, #tpu.memory_space<vmem>>, vector<1x16x16x6xbf16>
    %60 = vector.shape_cast %59 : vector<1x16x16x6xbf16> to vector<16x16x6xbf16>
    %61 = vector.shape_cast %58 : vector<16x16x6xbf16> to vector<1x16x16x6xbf16>
    tpu.vector_store %arg7[%c1_69, %c0_70, %c0_71, %c0_72], %61 {strides = array<i32>} : memref<2x16x16x64xbf16, #tpu.memory_space<vmem>>, vector<1x16x16x6xbf16>,
    %c1_73 = arith.constant 1 : index
    %c0_74 = arith.constant 0 : index
    %c1_75 = arith.constant 1 : index
    %c0_76 = arith.constant 0 : index
    %62 = vector.load %arg1[%c1_73, %c0_74, %c1_75, %c0_76] : memref<2x18x18x6xf32, #tpu.memory_space<vmem>>, vector<1x16x16x6xf32>
    %63 = vector.shape_cast %62 : vector<1x16x16x6xf32> to vector<16x16x6xf32>
    %64 = arith.truncf %63 : vector<16x16x6xf32> to vector<16x16x6xbf16>
    %c1_77 = arith.constant 1 : index
    %c0_78 = arith.constant 0 : index
    %c0_79 = arith.constant 0 : index
    %c6_80 = arith.constant 6 : index
    %65 = vector.load %arg7[%c1_77, %c0_78, %c0_79, %c6_80] : memref<2x16x16x64xbf16, #tpu.memory_space<vmem>>, vector<1x16x16x6xbf16>
    %66 = vector.shape_cast %65 : vector<1x16x16x6xbf16> to vector<16x16x6xbf16>
    %67 = vector.shape_cast %64 : vector<16x16x6xbf16> to vector<1x16x16x6xbf16>
    tpu.vector_store %arg7[%c1_77, %c0_78, %c0_79, %c6_80], %67 {strides = array<i32>} : memref<2x16x16x64xbf16, #tpu.memory_space<vmem>>, vector<1x16x16x6xbf16>,
    %c1_81 = arith.constant 1 : index
    %c0_82 = arith.constant 0 : index
    %c2_83 = arith.constant 2 : index
    %c0_84 = arith.constant 0 : index
    %68 = vector.load %arg1[%c1_81, %c0_82, %c2_83, %c0_84] : memref<2x18x18x6xf32, #tpu.memory_space<vmem>>, vector<1x16x16x6xf32>
    %69 = vector.shape_cast %68 : vector<1x16x16x6xf32> to vector<16x16x6xf32>
    %70 = arith.truncf %69 : vector<16x16x6xf32> to vector<16x16x6xbf16>
    %c1_85 = arith.constant 1 : index
    %c0_86 = arith.constant 0 : index
    %c0_87 = arith.constant 0 : index
    %c12_88 = arith.constant 12 : index
    %71 = vector.load %arg7[%c1_85, %c0_86, %c0_87, %c12_88] : memref<2x16x16x64xbf16, #tpu.memory_space<vmem>>, vector<1x16x16x6xbf16>
    %72 = vector.shape_cast %71 : vector<1x16x16x6xbf16> to vector<16x16x6xbf16>
    %73 = vector.shape_cast %70 : vector<16x16x6xbf16> to vector<1x16x16x6xbf16>
    tpu.vector_store %arg7[%c1_85, %c0_86, %c0_87, %c12_88], %73 {strides = array<i32>} : memref<2x16x16x64xbf16, #tpu.memory_space<vmem>>, vector<1x16x16x6xbf16>,
    %c1_89 = arith.constant 1 : index
    %c1_90 = arith.constant 1 : index
    %c0_91 = arith.constant 0 : index
    %c0_92 = arith.constant 0 : index
    %74 = vector.load %arg1[%c1_89, %c1_90, %c0_91, %c0_92] : memref<2x18x18x6xf32, #tpu.memory_space<vmem>>, vector<1x16x16x6xf32>
    %75 = vector.shape_cast %74 : vector<1x16x16x6xf32> to vector<16x16x6xf32>
    %76 = arith.truncf %75 : vector<16x16x6xf32> to vector<16x16x6xbf16>
    %c1_93 = arith.constant 1 : index
    %c0_94 = arith.constant 0 : index
    %c0_95 = arith.constant 0 : index
    %c18_96 = arith.constant 18 : index
    %77 = vector.load %arg7[%c1_93, %c0_94, %c0_95, %c18_96] : memref<2x16x16x64xbf16, #tpu.memory_space<vmem>>, vector<1x16x16x6xbf16>
    %78 = vector.shape_cast %77 : vector<1x16x16x6xbf16> to vector<16x16x6xbf16>
    %79 = vector.shape_cast %76 : vector<16x16x6xbf16> to vector<1x16x16x6xbf16>
    tpu.vector_store %arg7[%c1_93, %c0_94, %c0_95, %c18_96], %79 {strides = array<i32>} : memref<2x16x16x64xbf16, #tpu.memory_space<vmem>>, vector<1x16x16x6xbf16>,
    %c1_97 = arith.constant 1 : index
    %c1_98 = arith.constant 1 : index
    %c1_99 = arith.constant 1 : index
    %c0_100 = arith.constant 0 : index
    %80 = vector.load %arg1[%c1_97, %c1_98, %c1_99, %c0_100] : memref<2x18x18x6xf32, #tpu.memory_space<vmem>>, vector<1x16x16x6xf32>
    %81 = vector.shape_cast %80 : vector<1x16x16x6xf32> to vector<16x16x6xf32>
    %82 = arith.truncf %81 : vector<16x16x6xf32> to vector<16x16x6xbf16>
    %c1_101 = arith.constant 1 : index
    %c0_102 = arith.constant 0 : index
    %c0_103 = arith.constant 0 : index
    %c24_104 = arith.constant 24 : index
    %83 = vector.load %arg7[%c1_101, %c0_102, %c0_103, %c24_104] : memref<2x16x16x64xbf16, #tpu.memory_space<vmem>>, vector<1x16x16x6xbf16>
    %84 = vector.shape_cast %83 : vector<1x16x16x6xbf16> to vector<16x16x6xbf16>
    %85 = vector.shape_cast %82 : vector<16x16x6xbf16> to vector<1x16x16x6xbf16>
    tpu.vector_store %arg7[%c1_101, %c0_102, %c0_103, %c24_104], %85 {strides = array<i32>} : memref<2x16x16x64xbf16, #tpu.memory_space<vmem>>, vector<1x16x16x6xbf16>,
    %c1_105 = arith.constant 1 : index
    %c1_106 = arith.constant 1 : index
    %c2_107 = arith.constant 2 : index
    %c0_108 = arith.constant 0 : index
    %86 = vector.load %arg1[%c1_105, %c1_106, %c2_107, %c0_108] : memref<2x18x18x6xf32, #tpu.memory_space<vmem>>, vector<1x16x16x6xf32>
    %87 = vector.shape_cast %86 : vector<1x16x16x6xf32> to vector<16x16x6xf32>
    %88 = arith.truncf %87 : vector<16x16x6xf32> to vector<16x16x6xbf16>
    %c1_109 = arith.constant 1 : index
    %c0_110 = arith.constant 0 : index
    %c0_111 = arith.constant 0 : index
    %c30_112 = arith.constant 30 : index
    %89 = vector.load %arg7[%c1_109, %c0_110, %c0_111, %c30_112] : memref<2x16x16x64xbf16, #tpu.memory_space<vmem>>, vector<1x16x16x6xbf16>
    %90 = vector.shape_cast %89 : vector<1x16x16x6xbf16> to vector<16x16x6xbf16>
    %91 = vector.shape_cast %88 : vector<16x16x6xbf16> to vector<1x16x16x6xbf16>
    tpu.vector_store %arg7[%c1_109, %c0_110, %c0_111, %c30_112], %91 {strides = array<i32>} : memref<2x16x16x64xbf16, #tpu.memory_space<vmem>>, vector<1x16x16x6xbf16>,
    %c1_113 = arith.constant 1 : index
    %c2_114 = arith.constant 2 : index
    %c0_115 = arith.constant 0 : index
    %c0_116 = arith.constant 0 : index
    %92 = vector.load %arg1[%c1_113, %c2_114, %c0_115, %c0_116] : memref<2x18x18x6xf32, #tpu.memory_space<vmem>>, vector<1x16x16x6xf32>
    %93 = vector.shape_cast %92 : vector<1x16x16x6xf32> to vector<16x16x6xf32>
    %94 = arith.truncf %93 : vector<16x16x6xf32> to vector<16x16x6xbf16>
    %c1_117 = arith.constant 1 : index
    %c0_118 = arith.constant 0 : index
    %c0_119 = arith.constant 0 : index
    %c36_120 = arith.constant 36 : index
    %95 = vector.load %arg7[%c1_117, %c0_118, %c0_119, %c36_120] : memref<2x16x16x64xbf16, #tpu.memory_space<vmem>>, vector<1x16x16x6xbf16>
    %96 = vector.shape_cast %95 : vector<1x16x16x6xbf16> to vector<16x16x6xbf16>
    %97 = vector.shape_cast %94 : vector<16x16x6xbf16> to vector<1x16x16x6xbf16>
    tpu.vector_store %arg7[%c1_117, %c0_118, %c0_119, %c36_120], %97 {strides = array<i32>} : memref<2x16x16x64xbf16, #tpu.memory_space<vmem>>, vector<1x16x16x6xbf16>,
    %c1_121 = arith.constant 1 : index
    %c2_122 = arith.constant 2 : index
    %c1_123 = arith.constant 1 : index
    %c0_124 = arith.constant 0 : index
    %98 = vector.load %arg1[%c1_121, %c2_122, %c1_123, %c0_124] : memref<2x18x18x6xf32, #tpu.memory_space<vmem>>, vector<1x16x16x6xf32>
    %99 = vector.shape_cast %98 : vector<1x16x16x6xf32> to vector<16x16x6xf32>
    %100 = arith.truncf %99 : vector<16x16x6xf32> to vector<16x16x6xbf16>
    %c1_125 = arith.constant 1 : index
    %c0_126 = arith.constant 0 : index
    %c0_127 = arith.constant 0 : index
    %c42_128 = arith.constant 42 : index
    %101 = vector.load %arg7[%c1_125, %c0_126, %c0_127, %c42_128] : memref<2x16x16x64xbf16, #tpu.memory_space<vmem>>, vector<1x16x16x6xbf16>
    %102 = vector.shape_cast %101 : vector<1x16x16x6xbf16> to vector<16x16x6xbf16>
    %103 = vector.shape_cast %100 : vector<16x16x6xbf16> to vector<1x16x16x6xbf16>
    tpu.vector_store %arg7[%c1_125, %c0_126, %c0_127, %c42_128], %103 {strides = array<i32>} : memref<2x16x16x64xbf16, #tpu.memory_space<vmem>>, vector<1x16x16x6xbf16>,
    %c1_129 = arith.constant 1 : index
    %c2_130 = arith.constant 2 : index
    %c2_131 = arith.constant 2 : index
    %c0_132 = arith.constant 0 : index
    %104 = vector.load %arg1[%c1_129, %c2_130, %c2_131, %c0_132] : memref<2x18x18x6xf32, #tpu.memory_space<vmem>>, vector<1x16x16x6xf32>
    %105 = vector.shape_cast %104 : vector<1x16x16x6xf32> to vector<16x16x6xf32>
    %106 = arith.truncf %105 : vector<16x16x6xf32> to vector<16x16x6xbf16>
    %c1_133 = arith.constant 1 : index
    %c0_134 = arith.constant 0 : index
    %c0_135 = arith.constant 0 : index
    %c48_136 = arith.constant 48 : index
    %107 = vector.load %arg7[%c1_133, %c0_134, %c0_135, %c48_136] : memref<2x16x16x64xbf16, #tpu.memory_space<vmem>>, vector<1x16x16x6xbf16>
    %108 = vector.shape_cast %107 : vector<1x16x16x6xbf16> to vector<16x16x6xbf16>
    %109 = vector.shape_cast %106 : vector<16x16x6xbf16> to vector<1x16x16x6xbf16>
    tpu.vector_store %arg7[%c1_133, %c0_134, %c0_135, %c48_136], %109 {strides = array<i32>} : memref<2x16x16x64xbf16, #tpu.memory_space<vmem>>, vector<1x16x16x6xbf16>,
    %c0_137 = arith.constant 0 : index
    %c0_138 = arith.constant 0 : index
    %c0_139 = arith.constant 0 : index
    %c0_140 = arith.constant 0 : index
    %110 = vector.load %arg7[%c0_137, %c0_138, %c0_139, %c0_140] : memref<2x16x16x64xbf16, #tpu.memory_space<vmem>>, vector<2x16x16x64xbf16>
    %111 = vector.shape_cast %110 : vector<2x16x16x64xbf16> to vector<512x64xbf16>
    %c0_141 = arith.constant 0 : index
    %c0_142 = arith.constant 0 : index
    %112 = vector.load %arg2[%c0_141, %c0_142] : memref<64x512xbf16, #tpu.memory_space<vmem>>, vector<64x512xbf16>
    %cst_143 = arith.constant dense<0.000000e+00> : vector<512x512xf32>
    %113 = tpu.matmul %111, %112, %cst_143 {dimension_numbers = #tpu.dot_dimension_numbers<[1], [0], [0], [1], [0, 0, 1, 1], [], []>} : vector<512x64xbf16>, vector<64x512xbf16>, vector<512x512xf32> -> vector<512x512xf32>
    %c0_144 = arith.constant 0 : index
    %c0_145 = arith.constant 0 : index
    %114 = vector.load %arg3[%c0_144, %c0_145] : memref<1x512xf32, #tpu.memory_space<vmem>>, vector<1x512xf32>
    %115 = vector.broadcast %114 : vector<1x512xf32> to vector<512x512xf32>
    %116 = arith.addf %113, %115 : vector<512x512xf32>
    %cst_146 = arith.constant 0.000000e+00 : f32
    %117 = vector.broadcast %cst_146 : f32 to vector<512x512xf32>
    %118 = arith.maximumf %116, %117 : vector<512x512xf32>
    %119 = vector.extract_strided_slice %118 {offsets = [0, 0], sizes = [256, 512], strides = [1, 1]} : vector<512x512xf32> to vector<256x512xf32>
    %cst_147 = arith.constant dense<0.000000e+00> : vector<512xf32>
    %120 = vector.multi_reduction <add>, %119, %cst_147 [0] : vector<256x512xf32> to vector<512xf32>
    %121 = vector.shape_cast %120 : vector<512xf32> to vector<1x512xf32>
    %122 = vector.extract_strided_slice %118 {offsets = [256, 0], sizes = [256, 512], strides = [1, 1]} : vector<512x512xf32> to vector<256x512xf32>
    %cst_148 = arith.constant dense<0.000000e+00> : vector<512xf32>
    %123 = vector.multi_reduction <add>, %122, %cst_148 [0] : vector<256x512xf32> to vector<512xf32>
    %124 = vector.shape_cast %123 : vector<512xf32> to vector<1x512xf32>
    %125 = tpu.concatenate %121, %124 in 0 : vector<1x512xf32>, vector<1x512xf32> -> vector<2x512xf32>
    %126 = arith.truncf %125 : vector<2x512xf32> to vector<2x512xbf16>
    %c0_149 = arith.constant 0 : index
    %c0_150 = arith.constant 0 : index
    %127 = vector.load %arg4[%c0_149, %c0_150] : memref<512x128xbf16, #tpu.memory_space<vmem>>, vector<512x128xbf16>
    %cst_151 = arith.constant dense<0.000000e+00> : vector<2x128xf32>
    %128 = tpu.matmul %126, %127, %cst_151 {dimension_numbers = #tpu.dot_dimension_numbers<[1], [0], [0], [1], [0, 0, 1, 1], [], []>} : vector<2x512xbf16>, vector<512x128xbf16>, vector<2x128xf32> -> vector<2x128xf32>
    %c0_152 = arith.constant 0 : index
    %c0_153 = arith.constant 0 : index
    %129 = vector.load %arg5[%c0_152, %c0_153] : memref<1x128xf32, #tpu.memory_space<vmem>>, vector<1x128xf32>
    %130 = vector.broadcast %129 : vector<1x128xf32> to vector<2x128xf32>
    %131 = arith.addf %128, %130 : vector<2x128xf32>
    %c0_154 = arith.constant 0 : index
    %c0_155 = arith.constant 0 : index
    %132 = vector.load %arg6[%c0_154, %c0_155] : memref<2x128xf32, #tpu.memory_space<vmem>>, vector<2x128xf32>
    tpu.vector_store %arg6[%c0_154, %c0_155], %131 {strides = array<i32>} : memref<2x128xf32, #tpu.memory_space<vmem>>, vector<2x128xf32>,
    return
  }
  func.func @transform_0(%arg0: i32) -> (i32, i32, i32, i32) {
    %c0_i32 = arith.constant 0 : i32
    %c0_i32_0 = arith.constant 0 : i32
    %c0_i32_1 = arith.constant 0 : i32
    %c0_i32_2 = arith.constant 0 : i32
    %c0_i32_3 = arith.constant 0 : i32
    return %c0_i32, %c0_i32_0, %c0_i32_1, %c0_i32_2 : i32, i32, i32, i32
  }
  func.func @transform_1(%arg0: i32) -> (i32, i32) {
    %c0_i32 = arith.constant 0 : i32
    %c0_i32_0 = arith.constant 0 : i32
    %c0_i32_1 = arith.constant 0 : i32
    return %c0_i32, %c0_i32_0 : i32, i32
  }
  func.func @transform_2(%arg0: i32) -> (i32, i32) {
    %c0_i32 = arith.constant 0 : i32
    %c0_i32_0 = arith.constant 0 : i32
    %c0_i32_1 = arith.constant 0 : i32
    return %c0_i32, %c0_i32_0 : i32, i32
  }
  func.func @transform_3(%arg0: i32) -> (i32, i32) {
    %c0_i32 = arith.constant 0 : i32
    %c0_i32_0 = arith.constant 0 : i32
    %c0_i32_1 = arith.constant 0 : i32
    return %c0_i32, %c0_i32_0 : i32, i32
  }
  func.func @transform_4(%arg0: i32) -> (i32, i32) {
    %c0_i32 = arith.constant 0 : i32
    %c0_i32_0 = arith.constant 0 : i32
    %c0_i32_1 = arith.constant 0 : i32
    return %c0_i32, %c0_i32_0 : i32, i32
  }
  func.func @transform_5(%arg0: i32) -> (i32, i32) {
    %c0_i32 = arith.constant 0 : i32
    %c0_i32_0 = arith.constant 0 : i32
    %c0_i32_1 = arith.constant 0 : i32
    return %c0_i32, %c0_i32_0 : i32, i32
  }
}

</mosaic_0001>

<llo_original>
// kernel: encoder_forward.1
$region0: #{encoder_forward.1}
  #allocation0 [shape = 'u32[]', space=smem, size = 0x4, offset = 0x4, fixed_abs, tag = 'smem constant byte address 0x4 - core index']
  #allocation1 [shape = 'u32[144,128]{1,0:T(1,128)}', space=vmem, size = 0x12000, scoped, tag = 'internal scratch']
  #allocation2 [shape = 'bf16[2,16,16,64]{3,2,1,0:T(16,128)(2,1)}', space=vmem, size = 0x20000, scoped, tag = 'scratch operand']
  %s0 = inlined_call_operand.vmem [shape: f32[2,18,18,6], index: 0, kind: input, shape index: {}]
  %s1 = inlined_call_operand.vmem [shape: bf16[64,512], index: 1, kind: input, shape index: {}]
  %s2 = inlined_call_operand.vmem [shape: f32[1,512], index: 2, kind: input, shape index: {}]
  %s3 = inlined_call_operand.vmem [shape: bf16[512,128], index: 3, kind: input, shape index: {}]
  %s4 = inlined_call_operand.vmem [shape: f32[1,128], index: 4, kind: input, shape index: {}]
  %s5 = inlined_call_operand.hbm [shape: f32[2,128], index: 5, kind: output, shape index: {}]
  %s6 = sld [smem:[#allocation0]]
  $region30: #{encoder_forward.1} parent=0
    _
  %s8 = ssub.s32 1, %s6
  %s9 = scalar_select 0, %s8, %s6
  $region1: #{encoder_forward.1} parent=0
    #allocation3 [shape = 'u8[1024]{0}', space=vmem, size = 0x400, scoped, tag = 'output window, operand 0, single buffered']
    #allocation4 [shape = 's32[1]{0}', space=sflag, size = 0x4, scoped, tag = 'scoped memory for encoder_forward.1']
    %10 = vsyncpa [#allocation4], 0
    // Predicated region
    $region2: #{encoder_forward.1} parent=1 // pred_check
      _
    $region3: #{encoder_forward.1} parent=1 // pred_check_branch
      %12 = sbr.rel (0) target = $region5
    $region4: #{encoder_forward.1} parent=1 // pred_region
      _
    $region5: #{encoder_forward.1} parent=1 // pred_fallthru
      _
    // Predicated region
    $region6: #{encoder_forward.1} parent=1 // pred_check
      _
    $region7: #{encoder_forward.1} parent=1 // pred_check_branch
      %14 = sbr.rel (0) target = $region9
    $region8: #{encoder_forward.1} parent=1 // pred_region
      _
    $region9: #{encoder_forward.1} parent=1 // pred_fallthru
      _
    // Predicated region
    $region10: #{encoder_forward.1} parent=1 // pred_check
      _
    $region11: #{encoder_forward.1} parent=1 // pred_check_branch
      %16 = sbr.rel (0) target = $region13
    $region12: #{encoder_forward.1} parent=1 // pred_region
      _
    $region13: #{encoder_forward.1} parent=1 // pred_fallthru
      _
    // Predicated region
    $region14: #{encoder_forward.1} parent=1 // pred_check
      _
    $region15: #{encoder_forward.1} parent=1 // pred_check_branch
      %18 = sbr.rel (0) target = $region17
    $region16: #{encoder_forward.1} parent=1 // pred_region
      _
    $region17: #{encoder_forward.1} parent=1 // pred_fallthru
      _
    // Predicated region
    $region18: #{encoder_forward.1} parent=1 // pred_check
      _
    $region19: #{encoder_forward.1} parent=1 // pred_check_branch
      %20 = sbr.rel (0) target = $region21
    $region20: #{encoder_forward.1} parent=1 // pred_region
      _
    $region21: #{encoder_forward.1} parent=1 // pred_fallthru
      _
    %vm22 = vcmask 523264
    %23 = vst.msk [vmem:[#allocation2] sm:$0xff] %vm22, 0
    %24 = vst.msk [vmem:[#allocation2 + $0x8] sm:$0xff] %vm22, 0
    %25 = vst.msk [vmem:[#allocation2 + $0x10] sm:$0xff] %vm22, 0
    %26 = vst.msk [vmem:[#allocation2 + $0x18] sm:$0xff] %vm22, 0
    %27 = vst.msk [vmem:[#allocation2 + $0x20] sm:$0xff] %vm22, 0
    %28 = vst.msk [vmem:[#allocation2 + $0x28] sm:$0xff] %vm22, 0
    %29 = vst.msk [vmem:[#allocation2 + $0x30] sm:$0xff] %vm22, 0
    %30 = vst.msk [vmem:[#allocation2 + $0x38] sm:$0xff] %vm22, 0
    %31 = vst.msk [vmem:[#allocation2 + $0x40] sm:$0xff] %vm22, 0
    %32 = vst.msk [vmem:[#allocation2 + $0x48] sm:$0xff] %vm22, 0
    %33 = vst.msk [vmem:[#allocation2 + $0x50] sm:$0xff] %vm22, 0
    %34 = vst.msk [vmem:[#allocation2 + $0x58] sm:$0xff] %vm22, 0
    %35 = vst.msk [vmem:[#allocation2 + $0x60] sm:$0xff] %vm22, 0
    %36 = vst.msk [vmem:[#allocation2 + $0x68] sm:$0xff] %vm22, 0
    %37 = vst.msk [vmem:[#allocation2 + $0x70] sm:$0xff] %vm22, 0
    %38 = vst.msk [vmem:[#allocation2 + $0x78] sm:$0xff] %vm22, 0
    %39 = vst.msk [vmem:[#allocation2 + $0x80] sm:$0xff] %vm22, 0
    %40 = vst.msk [vmem:[#allocation2 + $0x88] sm:$0xff] %vm22, 0
    %41 = vst.msk [vmem:[#allocation2 + $0x90] sm:$0xff] %vm22, 0
    %42 = vst.msk [vmem:[#allocation2 + $0x98] sm:$0xff] %vm22, 0
    %43 = vst.msk [vmem:[#allocation2 + $0xa0] sm:$0xff] %vm22, 0
    %44 = vst.msk [vmem:[#allocation2 + $0xa8] sm:$0xff] %vm22, 0
    %45 = vst.msk [vmem:[#allocation2 + $0xb0] sm:$0xff] %vm22, 0
    %46 = vst.msk [vmem:[#allocation2 + $0xb8] sm:$0xff] %vm22, 0
    %47 = vst.msk [vmem:[#allocation2 + $0xc0] sm:$0xff] %vm22, 0
    %48 = vst.msk [vmem:[#allocation2 + $0xc8] sm:$0xff] %vm22, 0
    %49 = vst.msk [vmem:[#allocation2 + $0xd0] sm:$0xff] %vm22, 0
    %50 = vst.msk [vmem:[#allocation2 + $0xd8] sm:$0xff] %vm22, 0
    %51 = vst.msk [vmem:[#allocation2 + $0xe0] sm:$0xff] %vm22, 0
    %52 = vst.msk [vmem:[#allocation2 + $0xe8] sm:$0xff] %vm22, 0
    %53 = vst.msk [vmem:[#allocation2 + $0xf0] sm:$0xff] %vm22, 0
    %54 = vst.msk [vmem:[#allocation2 + $0xf8] sm:$0xff] %vm22, 0
    %v55 = vld [vmem:[%s0] sm:$0xff]
    %v56 = vld [vmem:[%s0 + $0x8] sm:$0xff]
    %v57 = vld [vmem:[%s0 + $0x18] sm:$0xff]
    %v58 = vld [vmem:[%s0 + $0x20] sm:$0xff]
    %v59 = vld [vmem:[%s0 + $0x30] sm:$0xff]
    %v60 = vld [vmem:[%s0 + $0x38] sm:$0xff]
    %v61 = vld [vmem:[%s0 + $0x48] sm:$0xff]
    %v62 = vld [vmem:[%s0 + $0x50] sm:$0xff]
    %v63 = vld [vmem:[%s0 + $0x60] sm:$0xff]
    %v64 = vld [vmem:[%s0 + $0x68] sm:$0xff]
    %v65 = vld [vmem:[%s0 + $0x78] sm:$0xff]
    %v66 = vld [vmem:[%s0 + $0x80] sm:$0xff]
    %v67 = vld [vmem:[%s0 + $0x90] sm:$0xff]
    %v68 = vld [vmem:[%s0 + $0x98] sm:$0xff]
    %v69 = vld [vmem:[%s0 + $0xa8] sm:$0xff]
    %v70 = vld [vmem:[%s0 + $0xb0] sm:$0xff]
    %v71 = vld [vmem:[%s0 + $0xc0] sm:$0xff]
    %v72 = vld [vmem:[%s0 + $0xc8] sm:$0xff]
    %v73 = vld [vmem:[%s0 + $0xd8] sm:$0xff]
    %v74 = vld [vmem:[%s0 + $0xe0] sm:$0xff]
    %v75 = vld [vmem:[%s0 + $0xf0] sm:$0xff]
    %v76 = vld [vmem:[%s0 + $0xf8] sm:$0xff]
    %v77 = vld [vmem:[%s0 + $0x108] sm:$0xff]
    %v78 = vld [vmem:[%s0 + $0x110] sm:$0xff]
    %v79 = vld [vmem:[%s0 + $0x120] sm:$0xff]
    %v80 = vld [vmem:[%s0 + $0x128] sm:$0xff]
    %v81 = vld [vmem:[%s0 + $0x138] sm:$0xff]
    %v82 = vld [vmem:[%s0 + $0x140] sm:$0xff]
    %v83 = vld [vmem:[%s0 + $0x150] sm:$0xff]
    %v84 = vld [vmem:[%s0 + $0x158] sm:$0xff]
    %v85 = vld [vmem:[%s0 + $0x168] sm:$0xff]
    %v86 = vld [vmem:[%s0 + $0x170] sm:$0xff]
    %v87 = vpack.c.bf16 %v56, %v55
    %v88 = vpack.c.bf16 %v58, %v57
    %v89 = vpack.c.bf16 %v60, %v59
    %v90 = vpack.c.bf16 %v62, %v61
    %v91 = vpack.c.bf16 %v64, %v63
    %v92 = vpack.c.bf16 %v66, %v65
    %v93 = vpack.c.bf16 %v68, %v67
    %v94 = vpack.c.bf16 %v70, %v69
    %v95 = vpack.c.bf16 %v72, %v71
    %v96 = vpack.c.bf16 %v74, %v73
    %v97 = vpack.c.bf16 %v76, %v75
    %v98 = vpack.c.bf16 %v78, %v77
    %v99 = vpack.c.bf16 %v80, %v79
    %v100 = vpack.c.bf16 %v82, %v81
    %v101 = vpack.c.bf16 %v84, %v83
    %v102 = vpack.c.bf16 %v86, %v85
    %vm103 = vcmask 48128
    %104 = vst.msk [vmem:[#allocation2] sm:$0xff] %vm103, %v87
    %105 = vst.msk [vmem:[#allocation2 + $0x8] sm:$0xff] %vm103, %v88
    %106 = vst.msk [vmem:[#allocation2 + $0x10] sm:$0xff] %vm103, %v89
    %107 = vst.msk [vmem:[#allocation2 + $0x18] sm:$0xff] %vm103, %v90
    %108 = vst.msk [vmem:[#allocation2 + $0x20] sm:$0xff] %vm103, %v91
    %109 = vst.msk [vmem:[#allocation2 + $0x28] sm:$0xff] %vm103, %v92
    %110 = vst.msk [vmem:[#allocation2 + $0x30] sm:$0xff] %vm103, %v93
    %111 = vst.msk [vmem:[#allocation2 + $0x38] sm:$0xff] %vm103, %v94
    %112 = vst.msk [vmem:[#allocation2 + $0x40] sm:$0xff] %vm103, %v95
    %113 = vst.msk [vmem:[#allocation2 + $0x48] sm:$0xff] %vm103, %v96
    %114 = vst.msk [vmem:[#allocation2 + $0x50] sm:$0xff] %vm103, %v97
    %115 = vst.msk [vmem:[#allocation2 + $0x58] sm:$0xff] %vm103, %v98
    %116 = vst.msk [vmem:[#allocation2 + $0x60] sm:$0xff] %vm103, %v99
    %117 = vst.msk [vmem:[#allocation2 + $0x68] sm:$0xff] %vm103, %v100
    %118 = vst.msk [vmem:[#allocation2 + $0x70] sm:$0xff] %vm103, %v101
    %119 = vst.msk [vmem:[#allocation2 + $0x78] sm:$0xff] %vm103, %v102
    %v120 = vld [vmem:[%s0 + $0x1] sm:$0xff]
    %v121 = vld [vmem:[%s0 + $0x9] sm:$0xff]
    %v122 = vld [vmem:[%s0 + $0x19] sm:$0xff]
    %v123 = vld [vmem:[%s0 + $0x21] sm:$0xff]
    %v124 = vld [vmem:[%s0 + $0x31] sm:$0xff]
    %v125 = vld [vmem:[%s0 + $0x39] sm:$0xff]
    %v126 = vld [vmem:[%s0 + $0x49] sm:$0xff]
    %v127 = vld [vmem:[%s0 + $0x51] sm:$0xff]
    %v128 = vld [vmem:[%s0 + $0x61] sm:$0xff]
    %v129 = vld [vmem:[%s0 + $0x69] sm:$0xff]
    %v130 = vld [vmem:[%s0 + $0x79] sm:$0xff]
    %v131 = vld [vmem:[%s0 + $0x81] sm:$0xff]
    %v132 = vld [vmem:[%s0 + $0x91] sm:$0xff]
    %v133 = vld [vmem:[%s0 + $0x99] sm:$0xff]
    %v134 = vld [vmem:[%s0 + $0xa9] sm:$0xff]
    %v135 = vld [vmem:[%s0 + $0xb1] sm:$0xff]
    %v136 = vld [vmem:[%s0 + $0xc1] sm:$0xff]
    %v137 = vld [vmem:[%s0 + $0xc9] sm:$0xff]
    %v138 = vld [vmem:[%s0 + $0xd9] sm:$0xff]
    %v139 = vld [vmem:[%s0 + $0xe1] sm:$0xff]
    %v140 = vld [vmem:[%s0 + $0xf1] sm:$0xff]
    %v141 = vld [vmem:[%s0 + $0xf9] sm:$0xff]
    %v142 = vld [vmem:[%s0 + $0x109] sm:$0xff]
    %v143 = vld [vmem:[%s0 + $0x111] sm:$0xff]
    %v144 = vld [vmem:[%s0 + $0x121] sm:$0xff]
    %v145 = vld [vmem:[%s0 + $0x129] sm:$0xff]
    %v146 = vld [vmem:[%s0 + $0x139] sm:$0xff]
    %v147 = vld [vmem:[%s0 + $0x141] sm:$0xff]
    %v148 = vld [vmem:[%s0 + $0x151] sm:$0xff]
    %v149 = vld [vmem:[%s0 + $0x159] sm:$0xff]
    %v150 = vld [vmem:[%s0 + $0x169] sm:$0xff]
    %v151 = vld [vmem:[%s0 + $0x171] sm:$0xff]
    %v152 = vpack.c.bf16 %v121, %v120
    %v153 = vpack.c.bf16 %v123, %v122
    %v154 = vpack.c.bf16 %v125, %v124
    %v155 = vpack.c.bf16 %v127, %v126
    %v156 = vpack.c.bf16 %v129, %v128
    %v157 = vpack.c.bf16 %v131, %v130
    %v158 = vpack.c.bf16 %v133, %v132
    %v159 = vpack.c.bf16 %v135, %v134
    %v160 = vpack.c.bf16 %v137, %v136
    %v161 = vpack.c.bf16 %v139, %v138
    %v162 = vpack.c.bf16 %v141, %v140
    %v163 = vpack.c.bf16 %v143, %v142
    %v164 = vpack.c.bf16 %v145, %v144
    %v165 = vpack.c.bf16 %v147, %v146
    %v166 = vpack.c.bf16 %v149, %v148
    %v167 = vpack.c.bf16 %v151, %v150
    %184 = vrot.lane.b32.xlu0 %v152, 6
    %v185 = vpop.permute.xlu0 %184
    %186 = vrot.lane.b32.xlu0 %v153, 6
    %v187 = vpop.permute.xlu0 %186
    %188 = vrot.lane.b32.xlu0 %v154, 6
    %v189 = vpop.permute.xlu0 %188
    %190 = vrot.lane.b32.xlu0 %v155, 6
    %v191 = vpop.permute.xlu0 %190
    %192 = vrot.lane.b32.xlu0 %v156, 6
    %v193 = vpop.permute.xlu0 %192
    %194 = vrot.lane.b32.xlu0 %v157, 6
    %v195 = vpop.permute.xlu0 %194
    %196 = vrot.lane.b32.xlu0 %v158, 6
    %v197 = vpop.permute.xlu0 %196
    %198 = vrot.lane.b32.xlu0 %v159, 6
    %v199 = vpop.permute.xlu0 %198
    %200 = vrot.lane.b32.xlu0 %v160, 6
    %v201 = vpop.permute.xlu0 %200
    %202 = vrot.lane.b32.xlu0 %v161, 6
    %v203 = vpop.permute.xlu0 %202
    %204 = vrot.lane.b32.xlu0 %v162, 6
    %v205 = vpop.permute.xlu0 %204
    %206 = vrot.lane.b32.xlu0 %v163, 6
    %v207 = vpop.permute.xlu0 %206
    %208 = vrot.lane.b32.xlu0 %v164, 6
    %v209 = vpop.permute.xlu0 %208
    %210 = vrot.lane.b32.xlu0 %v165, 6
    %v211 = vpop.permute.xlu0 %210
    %212 = vrot.lane.b32.xlu0 %v166, 6
    %v213 = vpop.permute.xlu0 %212
    %214 = vrot.lane.b32.xlu0 %v167, 6
    %v215 = vpop.permute.xlu0 %214
    %vm232 = vcmask 97328
    %233 = vst.msk [vmem:[#allocation2] sm:$0xff] %vm232, %v185
    %234 = vst.msk [vmem:[#allocation2 + $0x8] sm:$0xff] %vm232, %v187
    %235 = vst.msk [vmem:[#allocation2 + $0x10] sm:$0xff] %vm232, %v189
    %236 = vst.msk [vmem:[#allocation2 + $0x18] sm:$0xff] %vm232, %v191
    %237 = vst.msk [vmem:[#allocation2 + $0x20] sm:$0xff] %vm232, %v193
    %238 = vst.msk [vmem:[#allocation2 + $0x28] sm:$0xff] %vm232, %v195
    %239 = vst.msk [vmem:[#allocation2 + $0x30] sm:$0xff] %vm232, %v197
    %240 = vst.msk [vmem:[#allocation2 + $0x38] sm:$0xff] %vm232, %v199
    %241 = vst.msk [vmem:[#allocation2 + $0x40] sm:$0xff] %vm232, %v201
    %242 = vst.msk [vmem:[#allocation2 + $0x48] sm:$0xff] %vm232, %v203
    %243 = vst.msk [vmem:[#allocation2 + $0x50] sm:$0xff] %vm232, %v205
    %244 = vst.msk [vmem:[#allocation2 + $0x58] sm:$0xff] %vm232, %v207
    %245 = vst.msk [vmem:[#allocation2 + $0x60] sm:$0xff] %vm232, %v209
    %246 = vst.msk [vmem:[#allocation2 + $0x68] sm:$0xff] %vm232, %v211
    %247 = vst.msk [vmem:[#allocation2 + $0x70] sm:$0xff] %vm232, %v213
    %248 = vst.msk [vmem:[#allocation2 + $0x78] sm:$0xff] %vm232, %v215
    %v249 = vld [vmem:[%s0 + $0x2] sm:$0xff]
    %v250 = vld [vmem:[%s0 + $0xa] sm:$0xff]
    %v251 = vld [vmem:[%s0 + $0x1a] sm:$0xff]
    %v252 = vld [vmem:[%s0 + $0x22] sm:$0xff]
    %v253 = vld [vmem:[%s0 + $0x32] sm:$0xff]
    %v254 = vld [vmem:[%s0 + $0x3a] sm:$0xff]
    %v255 = vld [vmem:[%s0 + $0x4a] sm:$0xff]
    %v256 = vld [vmem:[%s0 + $0x52] sm:$0xff]
    %v257 = vld [vmem:[%s0 + $0x62] sm:$0xff]
    %v258 = vld [vmem:[%s0 + $0x6a] sm:$0xff]
    %v259 = vld [vmem:[%s0 + $0x7a] sm:$0xff]
    %v260 = vld [vmem:[%s0 + $0x82] sm:$0xff]
    %v261 = vld [vmem:[%s0 + $0x92] sm:$0xff]
    %v262 = vld [vmem:[%s0 + $0x9a] sm:$0xff]
    %v263 = vld [vmem:[%s0 + $0xaa] sm:$0xff]
    %v264 = vld [vmem:[%s0 + $0xb2] sm:$0xff]
    %v265 = vld [vmem:[%s0 + $0xc2] sm:$0xff]
    %v266 = vld [vmem:[%s0 + $0xca] sm:$0xff]
    %v267 = vld [vmem:[%s0 + $0xda] sm:$0xff]
    %v268 = vld [vmem:[%s0 + $0xe2] sm:$0xff]
    %v269 = vld [vmem:[%s0 + $0xf2] sm:$0xff]
    %v270 = vld [vmem:[%s0 + $0xfa] sm:$0xff]
    %v271 = vld [vmem:[%s0 + $0x10a] sm:$0xff]
    %v272 = vld [vmem:[%s0 + $0x112] sm:$0xff]
    %v273 = vld [vmem:[%s0 + $0x122] sm:$0xff]
    %v274 = vld [vmem:[%s0 + $0x12a] sm:$0xff]
    %v275 = vld [vmem:[%s0 + $0x13a] sm:$0xff]
    %v276 = vld [vmem:[%s0 + $0x142] sm:$0xff]
    %v277 = vld [vmem:[%s0 + $0x152] sm:$0xff]
    %v278 = vld [vmem:[%s0 + $0x15a] sm:$0xff]
    %v279 = vld [vmem:[%s0 + $0x16a] sm:$0xff]
    %v280 = vld [vmem:[%s0 + $0x172] sm:$0xff]
    %v281 = vpack.c.bf16 %v250, %v249
    %v282 = vpack.c.bf16 %v252, %v251
    %v283 = vpack.c.bf16 %v254, %v253
    %v284 = vpack.c.bf16 %v256, %v255
    %v285 = vpack.c.bf16 %v258, %v257
    %v286 = vpack.c.bf16 %v260, %v259
    %v287 = vpack.c.bf16 %v262, %v261
    %v288 = vpack.c.bf16 %v264, %v263
    %v289 = vpack.c.bf16 %v266, %v265
    %v290 = vpack.c.bf16 %v268, %v267
    %v291 = vpack.c.bf16 %v270, %v269
    %v292 = vpack.c.bf16 %v272, %v271
    %v293 = vpack.c.bf16 %v274, %v273
    %v294 = vpack.c.bf16 %v276, %v275
    %v295 = vpack.c.bf16 %v278, %v277
    %v296 = vpack.c.bf16 %v280, %v279
    %313 = vrot.lane.b32.xlu0 %v281, 12
    %v314 = vpop.permute.xlu0 %313
    %315 = vrot.lane.b32.xlu0 %v282, 12
    %v316 = vpop.permute.xlu0 %315
    %317 = vrot.lane.b32.xlu0 %v283, 12
    %v318 = vpop.permute.xlu0 %317
    %319 = vrot.lane.b32.xlu0 %v284, 12
    %v320 = vpop.permute.xlu0 %319
    %321 = vrot.lane.b32.xlu0 %v285, 12
    %v322 = vpop.permute.xlu0 %321
    %323 = vrot.lane.b32.xlu0 %v286, 12
    %v324 = vpop.permute.xlu0 %323
    %325 = vrot.lane.b32.xlu0 %v287, 12
    %v326 = vpop.permute.xlu0 %325
    %327 = vrot.lane.b32.xlu0 %v288, 12
    %v328 = vpop.permute.xlu0 %327
    %329 = vrot.lane.b32.xlu0 %v289, 12
    %v330 = vpop.permute.xlu0 %329
    %331 = vrot.lane.b32.xlu0 %v290, 12
    %v332 = vpop.permute.xlu0 %331
    %333 = vrot.lane.b32.xlu0 %v291, 12
    %v334 = vpop.permute.xlu0 %333
    %335 = vrot.lane.b32.xlu0 %v292, 12
    %v336 = vpop.permute.xlu0 %335
    %337 = vrot.lane.b32.xlu0 %v293, 12
    %v338 = vpop.permute.xlu0 %337
    %339 = vrot.lane.b32.xlu0 %v294, 12
    %v340 = vpop.permute.xlu0 %339
    %341 = vrot.lane.b32.xlu0 %v295, 12
    %v342 = vpop.permute.xlu0 %341
    %343 = vrot.lane.b32.xlu0 %v296, 12
    %v344 = vpop.permute.xlu0 %343
    %vm361 = vcmask 146528
    %362 = vst.msk [vmem:[#allocation2] sm:$0xff] %vm361, %v314
    %363 = vst.msk [vmem:[#allocation2 + $0x8] sm:$0xff] %vm361, %v316
    %364 = vst.msk [vmem:[#allocation2 + $0x10] sm:$0xff] %vm361, %v318
    %365 = vst.msk [vmem:[#allocation2 + $0x18] sm:$0xff] %vm361, %v320
    %366 = vst.msk [vmem:[#allocation2 + $0x20] sm:$0xff] %vm361, %v322
    %367 = vst.msk [vmem:[#allocation2 + $0x28] sm:$0xff] %vm361, %v324
    %368 = vst.msk [vmem:[#allocation2 + $0x30] sm:$0xff] %vm361, %v326
    %369 = vst.msk [vmem:[#allocation2 + $0x38] sm:$0xff] %vm361, %v328
    %370 = vst.msk [vmem:[#allocation2 + $0x40] sm:$0xff] %vm361, %v330
    %371 = vst.msk [vmem:[#allocation2 + $0x48] sm:$0xff] %vm361, %v332
    %372 = vst.msk [vmem:[#allocation2 + $0x50] sm:$0xff] %vm361, %v334
    %373 = vst.msk [vmem:[#allocation2 + $0x58] sm:$0xff] %vm361, %v336
    %374 = vst.msk [vmem:[#allocation2 + $0x60] sm:$0xff] %vm361, %v338
    %375 = vst.msk [vmem:[#allocation2 + $0x68] sm:$0xff] %vm361, %v340
    %376 = vst.msk [vmem:[#allocation2 + $0x70] sm:$0xff] %vm361, %v342
    %377 = vst.msk [vmem:[#allocation2 + $0x78] sm:$0xff] %vm361, %v344
    %s378 = scalar_lea.vmem %s0, 24
    %v379 = vld [vmem:[%s378] sm:$0xff]
    %v380 = vld [vmem:[%s378 + $0x8] sm:$0xff]
    %v381 = vld [vmem:[%s378 + $0x18] sm:$0xff]
    %v382 = vld [vmem:[%s378 + $0x20] sm:$0xff]
    %v383 = vld [vmem:[%s378 + $0x30] sm:$0xff]
    %v384 = vld [vmem:[%s378 + $0x38] sm:$0xff]
    %v385 = vld [vmem:[%s378 + $0x48] sm:$0xff]
    %v386 = vld [vmem:[%s378 + $0x50] sm:$0xff]
    %v387 = vld [vmem:[%s378 + $0x60] sm:$0xff]
    %v388 = vld [vmem:[%s378 + $0x68] sm:$0xff]
    %v389 = vld [vmem:[%s378 + $0x78] sm:$0xff]
    %v390 = vld [vmem:[%s378 + $0x80] sm:$0xff]
    %v391 = vld [vmem:[%s378 + $0x90] sm:$0xff]
    %v392 = vld [vmem:[%s378 + $0x98] sm:$0xff]
    %v393 = vld [vmem:[%s378 + $0xa8] sm:$0xff]
    %v394 = vld [vmem:[%s378 + $0xb0] sm:$0xff]
    %v395 = vld [vmem:[%s378 + $0xc0] sm:$0xff]
    %v396 = vld [vmem:[%s378 + $0xc8] sm:$0xff]
    %v397 = vld [vmem:[%s378 + $0xd8] sm:$0xff]
    %v398 = vld [vmem:[%s378 + $0xe0] sm:$0xff]
    %v399 = vld [vmem:[%s378 + $0xf0] sm:$0xff]
    %v400 = vld [vmem:[%s378 + $0xf8] sm:$0xff]
    %v401 = vld [vmem:[%s378 + $0x108] sm:$0xff]
    %v402 = vld [vmem:[%s378 + $0x110] sm:$0xff]
    %v403 = vld [vmem:[%s378 + $0x120] sm:$0xff]
    %v404 = vld [vmem:[%s378 + $0x128] sm:$0xff]
    %v405 = vld [vmem:[%s378 + $0x138] sm:$0xff]
    %v406 = vld [vmem:[%s378 + $0x140] sm:$0xff]
    %v407 = vld [vmem:[%s378 + $0x150] sm:$0xff]
    %v408 = vld [vmem:[%s378 + $0x158] sm:$0xff]
    %v409 = vld [vmem:[%s378 + $0x168] sm:$0xff]
    %v410 = vld [vmem:[%s378 + $0x170] sm:$0xff]
    %v411 = vpack.c.bf16 %v380, %v379
    %v412 = vpack.c.bf16 %v382, %v381
    %v413 = vpack.c.bf16 %v384, %v383
    %v414 = vpack.c.bf16 %v386, %v385
    %v415 = vpack.c.bf16 %v388, %v387
    %v416 = vpack.c.bf16 %v390, %v389
    %v417 = vpack.c.bf16 %v392, %v391
    %v418 = vpack.c.bf16 %v394, %v393
    %v419 = vpack.c.bf16 %v396, %v395
    %v420 = vpack.c.bf16 %v398, %v397
    %v421 = vpack.c.bf16 %v400, %v399
    %v422 = vpack.c.bf16 %v402, %v401
    %v423 = vpack.c.bf16 %v404, %v403
    %v424 = vpack.c.bf16 %v406, %v405
    %v425 = vpack.c.bf16 %v408, %v407
    %v426 = vpack.c.bf16 %v410, %v409
    %443 = vrot.lane.b32.xlu0 %v411, 18
    %v444 = vpop.permute.xlu0 %443
    %445 = vrot.lane.b32.xlu0 %v412, 18
    %v446 = vpop.permute.xlu0 %445
    %447 = vrot.lane.b32.xlu0 %v413, 18
    %v448 = vpop.permute.xlu0 %447
    %449 = vrot.lane.b32.xlu0 %v414, 18
    %v450 = vpop.permute.xlu0 %449
    %451 = vrot.lane.b32.xlu0 %v415, 18
    %v452 = vpop.permute.xlu0 %451
    %453 = vrot.lane.b32.xlu0 %v416, 18
    %v454 = vpop.permute.xlu0 %453
    %455 = vrot.lane.b32.xlu0 %v417, 18
    %v456 = vpop.permute.xlu0 %455
    %457 = vrot.lane.b32.xlu0 %v418, 18
    %v458 = vpop.permute.xlu0 %457
    %459 = vrot.lane.b32.xlu0 %v419, 18
    %v460 = vpop.permute.xlu0 %459
    %461 = vrot.lane.b32.xlu0 %v420, 18
    %v462 = vpop.permute.xlu0 %461
    %463 = vrot.lane.b32.xlu0 %v421, 18
    %v464 = vpop.permute.xlu0 %463
    %465 = vrot.lane.b32.xlu0 %v422, 18
    %v466 = vpop.permute.xlu0 %465
    %467 = vrot.lane.b32.xlu0 %v423, 18
    %v468 = vpop.permute.xlu0 %467
    %469 = vrot.lane.b32.xlu0 %v424, 18
    %v470 = vpop.permute.xlu0 %469
    %471 = vrot.lane.b32.xlu0 %v425, 18
    %v472 = vpop.permute.xlu0 %471
    %473 = vrot.lane.b32.xlu0 %v426, 18
    %v474 = vpop.permute.xlu0 %473
    %vm491 = vcmask 195728
    %492 = vst.msk [vmem:[#allocation2] sm:$0xff] %vm491, %v444
    %493 = vst.msk [vmem:[#allocation2 + $0x8] sm:$0xff] %vm491, %v446
    %494 = vst.msk [vmem:[#allocation2 + $0x10] sm:$0xff] %vm491, %v448
    %495 = vst.msk [vmem:[#allocation2 + $0x18] sm:$0xff] %vm491, %v450
    %496 = vst.msk [vmem:[#allocation2 + $0x20] sm:$0xff] %vm491, %v452
    %497 = vst.msk [vmem:[#allocation2 + $0x28] sm:$0xff] %vm491, %v454
    %498 = vst.msk [vmem:[#allocation2 + $0x30] sm:$0xff] %vm491, %v456
    %499 = vst.msk [vmem:[#allocation2 + $0x38] sm:$0xff] %vm491, %v458
    %500 = vst.msk [vmem:[#allocation2 + $0x40] sm:$0xff] %vm491, %v460
    %501 = vst.msk [vmem:[#allocation2 + $0x48] sm:$0xff] %vm491, %v462
    %502 = vst.msk [vmem:[#allocation2 + $0x50] sm:$0xff] %vm491, %v464
    %503 = vst.msk [vmem:[#allocation2 + $0x58] sm:$0xff] %vm491, %v466
    %504 = vst.msk [vmem:[#allocation2 + $0x60] sm:$0xff] %vm491, %v468
    %505 = vst.msk [vmem:[#allocation2 + $0x68] sm:$0xff] %vm491, %v470
    %506 = vst.msk [vmem:[#allocation2 + $0x70] sm:$0xff] %vm491, %v472
    %507 = vst.msk [vmem:[#allocation2 + $0x78] sm:$0xff] %vm491, %v474
    %v508 = vld [vmem:[%s378 + $0x1] sm:$0xff]
    %v509 = vld [vmem:[%s378 + $0x9] sm:$0xff]
    %v510 = vld [vmem:[%s378 + $0x19] sm:$0xff]
    %v511 = vld [vmem:[%s378 + $0x21] sm:$0xff]
    %v512 = vld [vmem:[%s378 + $0x31] sm:$0xff]
    %v513 = vld [vmem:[%s378 + $0x39] sm:$0xff]
    %v514 = vld [vmem:[%s378 + $0x49] sm:$0xff]
    %v515 = vld [vmem:[%s378 + $0x51] sm:$0xff]
    %v516 = vld [vmem:[%s378 + $0x61] sm:$0xff]
    %v517 = vld [vmem:[%s378 + $0x69] sm:$0xff]
    %v518 = vld [vmem:[%s378 + $0x79] sm:$0xff]
    %v519 = vld [vmem:[%s378 + $0x81] sm:$0xff]
    %v520 = vld [vmem:[%s378 + $0x91] sm:$0xff]
    %v521 = vld [vmem:[%s378 + $0x99] sm:$0xff]
    %v522 = vld [vmem:[%s378 + $0xa9] sm:$0xff]
    %v523 = vld [vmem:[%s378 + $0xb1] sm:$0xff]
    %v524 = vld [vmem:[%s378 + $0xc1] sm:$0xff]
    %v525 = vld [vmem:[%s378 + $0xc9] sm:$0xff]
    %v526 = vld [vmem:[%s378 + $0xd9] sm:$0xff]
    %v527 = vld [vmem:[%s378 + $0xe1] sm:$0xff]
    %v528 = vld [vmem:[%s378 + $0xf1] sm:$0xff]
    %v529 = vld [vmem:[%s378 + $0xf9] sm:$0xff]
    %v530 = vld [vmem:[%s378 + $0x109] sm:$0xff]
    %v531 = vld [vmem:[%s378 + $0x111] sm:$0xff]
    %v532 = vld [vmem:[%s378 + $0x121] sm:$0xff]
    %v533 = vld [vmem:[%s378 + $0x129] sm:$0xff]
    %v534 = vld [vmem:[%s378 + $0x139] sm:$0xff]
    %v535 = vld [vmem:[%s378 + $0x141] sm:$0xff]
    %v536 = vld [vmem:[%s378 + $0x151] sm:$0xff]
    %v537 = vld [vmem:[%s378 + $0x159] sm:$0xff]
    %v538 = vld [vmem:[%s378 + $0x169] sm:$0xff]
    %v539 = vld [vmem:[%s378 + $0x171] sm:$0xff]
    %v540 = vpack.c.bf16 %v509, %v508
    %v541 = vpack.c.bf16 %v511, %v510
    %v542 = vpack.c.bf16 %v513, %v512
    %v543 = vpack.c.bf16 %v515, %v514
    %v544 = vpack.c.bf16 %v517, %v516
    %v545 = vpack.c.bf16 %v519, %v518
    %v546 = vpack.c.bf16 %v521, %v520
    %v547 = vpack.c.bf16 %v523, %v522
    %v548 = vpack.c.bf16 %v525, %v524
    %v549 = vpack.c.bf16 %v527, %v526
    %v550 = vpack.c.bf16 %v529, %v528
    %v551 = vpack.c.bf16 %v531, %v530
    %v552 = vpack.c.bf16 %v533, %v532
    %v553 = vpack.c.bf16 %v535, %v534
    %v554 = vpack.c.bf16 %v537, %v536
    %v555 = vpack.c.bf16 %v539, %v538
    %572 = vrot.lane.b32.xlu0 %v540, 24
    %v573 = vpop.permute.xlu0 %572
    %574 = vrot.lane.b32.xlu0 %v541, 24
    %v575 = vpop.permute.xlu0 %574
    %576 = vrot.lane.b32.xlu0 %v542, 24
    %v577 = vpop.permute.xlu0 %576
    %578 = vrot.lane.b32.xlu0 %v543, 24
    %v579 = vpop.permute.xlu0 %578
    %580 = vrot.lane.b32.xlu0 %v544, 24
    %v581 = vpop.permute.xlu0 %580
    %582 = vrot.lane.b32.xlu0 %v545, 24
    %v583 = vpop.permute.xlu0 %582
    %584 = vrot.lane.b32.xlu0 %v546, 24
    %v585 = vpop.permute.xlu0 %584
    %586 = vrot.lane.b32.xlu0 %v547, 24
    %v587 = vpop.permute.xlu0 %586
    %588 = vrot.lane.b32.xlu0 %v548, 24
    %v589 = vpop.permute.xlu0 %588
    %590 = vrot.lane.b32.xlu0 %v549, 24
    %v591 = vpop.permute.xlu0 %590
    %592 = vrot.lane.b32.xlu0 %v550, 24
    %v593 = vpop.permute.xlu0 %592
    %594 = vrot.lane.b32.xlu0 %v551, 24
    %v595 = vpop.permute.xlu0 %594
    %596 = vrot.lane.b32.xlu0 %v552, 24
    %v597 = vpop.permute.xlu0 %596
    %598 = vrot.lane.b32.xlu0 %v553, 24
    %v599 = vpop.permute.xlu0 %598
    %600 = vrot.lane.b32.xlu0 %v554, 24
    %v601 = vpop.permute.xlu0 %600
    %602 = vrot.lane.b32.xlu0 %v555, 24
    %v603 = vpop.permute.xlu0 %602
    %vm620 = vcmask 244928
    %621 = vst.msk [vmem:[#allocation2] sm:$0xff] %vm620, %v573
    %622 = vst.msk [vmem:[#allocation2 + $0x8] sm:$0xff] %vm620, %v575
    %623 = vst.msk [vmem:[#allocation2 + $0x10] sm:$0xff] %vm620, %v577
    %624 = vst.msk [vmem:[#allocation2 + $0x18] sm:$0xff] %vm620, %v579
    %625 = vst.msk [vmem:[#allocation2 + $0x20] sm:$0xff] %vm620, %v581
    %626 = vst.msk [vmem:[#allocation2 + $0x28] sm:$0xff] %vm620, %v583
    %627 = vst.msk [vmem:[#allocation2 + $0x30] sm:$0xff] %vm620, %v585
    %628 = vst.msk [vmem:[#allocation2 + $0x38] sm:$0xff] %vm620, %v587
    %629 = vst.msk [vmem:[#allocation2 + $0x40] sm:$0xff] %vm620, %v589
    %630 = vst.msk [vmem:[#allocation2 + $0x48] sm:$0xff] %vm620, %v591
    %631 = vst.msk [vmem:[#allocation2 + $0x50] sm:$0xff] %vm620, %v593
    %632 = vst.msk [vmem:[#allocation2 + $0x58] sm:$0xff] %vm620, %v595
    %633 = vst.msk [vmem:[#allocation2 + $0x60] sm:$0xff] %vm620, %v597
    %634 = vst.msk [vmem:[#allocation2 + $0x68] sm:$0xff] %vm620, %v599
    %635 = vst.msk [vmem:[#allocation2 + $0x70] sm:$0xff] %vm620, %v601
    %636 = vst.msk [vmem:[#allocation2 + $0x78] sm:$0xff] %vm620, %v603
    %v637 = vld [vmem:[%s378 + $0x2] sm:$0xff]
    %v638 = vld [vmem:[%s378 + $0xa] sm:$0xff]
    %v639 = vld [vmem:[%s378 + $0x1a] sm:$0xff]
    %v640 = vld [vmem:[%s378 + $0x22] sm:$0xff]
    %v641 = vld [vmem:[%s378 + $0x32] sm:$0xff]
    %v642 = vld [vmem:[%s378 + $0x3a] sm:$0xff]
    %v643 = vld [vmem:[%s378 + $0x4a] sm:$0xff]
    %v644 = vld [vmem:[%s378 + $0x52] sm:$0xff]
    %v645 = vld [vmem:[%s378 + $0x62] sm:$0xff]
    %v646 = vld [vmem:[%s378 + $0x6a] sm:$0xff]
    %v647 = vld [vmem:[%s378 + $0x7a] sm:$0xff]
    %v648 = vld [vmem:[%s378 + $0x82] sm:$0xff]
    %v649 = vld [vmem:[%s378 + $0x92] sm:$0xff]
    %v650 = vld [vmem:[%s378 + $0x9a] sm:$0xff]
    %v651 = vld [vmem:[%s378 + $0xaa] sm:$0xff]
    %v652 = vld [vmem:[%s378 + $0xb2] sm:$0xff]
    %v653 = vld [vmem:[%s378 + $0xc2] sm:$0xff]
    %v654 = vld [vmem:[%s378 + $0xca] sm:$0xff]
    %v655 = vld [vmem:[%s378 + $0xda] sm:$0xff]
    %v656 = vld [vmem:[%s378 + $0xe2] sm:$0xff]
    %v657 = vld [vmem:[%s378 + $0xf2] sm:$0xff]
    %v658 = vld [vmem:[%s378 + $0xfa] sm:$0xff]
    %v659 = vld [vmem:[%s378 + $0x10a] sm:$0xff]
    %v660 = vld [vmem:[%s378 + $0x112] sm:$0xff]
    %v661 = vld [vmem:[%s378 + $0x122] sm:$0xff]
    %v662 = vld [vmem:[%s378 + $0x12a] sm:$0xff]
    %v663 = vld [vmem:[%s378 + $0x13a] sm:$0xff]
    %v664 = vld [vmem:[%s378 + $0x142] sm:$0xff]
    %v665 = vld [vmem:[%s378 + $0x152] sm:$0xff]
    %v666 = vld [vmem:[%s378 + $0x15a] sm:$0xff]
    %v667 = vld [vmem:[%s378 + $0x16a] sm:$0xff]
    %v668 = vld [vmem:[%s378 + $0x172] sm:$0xff]
    %v669 = vpack.c.bf16 %v638, %v637
    %v670 = vpack.c.bf16 %v640, %v639
    %v671 = vpack.c.bf16 %v642, %v641
    %v672 = vpack.c.bf16 %v644, %v643
    %v673 = vpack.c.bf16 %v646, %v645
    %v674 = vpack.c.bf16 %v648, %v647
    %v675 = vpack.c.bf16 %v650, %v649
    %v676 = vpack.c.bf16 %v652, %v651
    %v677 = vpack.c.bf16 %v654, %v653
    %v678 = vpack.c.bf16 %v656, %v655
    %v679 = vpack.c.bf16 %v658, %v657
    %v680 = vpack.c.bf16 %v660, %v659
    %v681 = vpack.c.bf16 %v662, %v661
    %v682 = vpack.c.bf16 %v664, %v663
    %v683 = vpack.c.bf16 %v666, %v665
    %v684 = vpack.c.bf16 %v668, %v667
    %701 = vrot.lane.b32.xlu0 %v669, 30
    %v702 = vpop.permute.xlu0 %701
    %703 = vrot.lane.b32.xlu0 %v670, 30
    %v704 = vpop.permute.xlu0 %703
    %705 = vrot.lane.b32.xlu0 %v671, 30
    %v706 = vpop.permute.xlu0 %705
    %707 = vrot.lane.b32.xlu0 %v672, 30
    %v708 = vpop.permute.xlu0 %707
    %709 = vrot.lane.b32.xlu0 %v673, 30
    %v710 = vpop.permute.xlu0 %709
    %711 = vrot.lane.b32.xlu0 %v674, 30
    %v712 = vpop.permute.xlu0 %711
    %713 = vrot.lane.b32.xlu0 %v675, 30
    %v714 = vpop.permute.xlu0 %713
    %715 = vrot.lane.b32.xlu0 %v676, 30
    %v716 = vpop.permute.xlu0 %715
    %717 = vrot.lane.b32.xlu0 %v677, 30
    %v718 = vpop.permute.xlu0 %717
    %719 = vrot.lane.b32.xlu0 %v678, 30
    %v720 = vpop.permute.xlu0 %719
    %721 = vrot.lane.b32.xlu0 %v679, 30
    %v722 = vpop.permute.xlu0 %721
    %723 = vrot.lane.b32.xlu0 %v680, 30
    %v724 = vpop.permute.xlu0 %723
    %725 = vrot.lane.b32.xlu0 %v681, 30
    %v726 = vpop.permute.xlu0 %725
    %727 = vrot.lane.b32.xlu0 %v682, 30
    %v728 = vpop.permute.xlu0 %727
    %729 = vrot.lane.b32.xlu0 %v683, 30
    %v730 = vpop.permute.xlu0 %729
    %731 = vrot.lane.b32.xlu0 %v684, 30
    %v732 = vpop.permute.xlu0 %731
    %vm749 = vcmask 294128
    %750 = vst.msk [vmem:[#allocation2] sm:$0xff] %vm749, %v702
    %751 = vst.msk [vmem:[#allocation2 + $0x8] sm:$0xff] %vm749, %v704
    %752 = vst.msk [vmem:[#allocation2 + $0x10] sm:$0xff] %vm749, %v706
    %753 = vst.msk [vmem:[#allocation2 + $0x18] sm:$0xff] %vm749, %v708
    %754 = vst.msk [vmem:[#allocation2 + $0x20] sm:$0xff] %vm749, %v710
    %755 = vst.msk [vmem:[#allocation2 + $0x28] sm:$0xff] %vm749, %v712
    %756 = vst.msk [vmem:[#allocation2 + $0x30] sm:$0xff] %vm749, %v714
    %757 = vst.msk [vmem:[#allocation2 + $0x38] sm:$0xff] %vm749, %v716
    %758 = vst.msk [vmem:[#allocation2 + $0x40] sm:$0xff] %vm749, %v718
    %759 = vst.msk [vmem:[#allocation2 + $0x48] sm:$0xff] %vm749, %v720
    %760 = vst.msk [vmem:[#allocation2 + $0x50] sm:$0xff] %vm749, %v722
    %761 = vst.msk [vmem:[#allocation2 + $0x58] sm:$0xff] %vm749, %v724
    %762 = vst.msk [vmem:[#allocation2 + $0x60] sm:$0xff] %vm749, %v726
    %763 = vst.msk [vmem:[#allocation2 + $0x68] sm:$0xff] %vm749, %v728
    %764 = vst.msk [vmem:[#allocation2 + $0x70] sm:$0xff] %vm749, %v730
    %765 = vst.msk [vmem:[#allocation2 + $0x78] sm:$0xff] %vm749, %v732
    %s766 = scalar_lea.vmem %s0, 48
    %v767 = vld [vmem:[%s766] sm:$0xff]
    %v768 = vld [vmem:[%s766 + $0x8] sm:$0xff]
    %v769 = vld [vmem:[%s766 + $0x18] sm:$0xff]
    %v770 = vld [vmem:[%s766 + $0x20] sm:$0xff]
    %v771 = vld [vmem:[%s766 + $0x30] sm:$0xff]
    %v772 = vld [vmem:[%s766 + $0x38] sm:$0xff]
    %v773 = vld [vmem:[%s766 + $0x48] sm:$0xff]
    %v774 = vld [vmem:[%s766 + $0x50] sm:$0xff]
    %v775 = vld [vmem:[%s766 + $0x60] sm:$0xff]
    %v776 = vld [vmem:[%s766 + $0x68] sm:$0xff]
    %v777 = vld [vmem:[%s766 + $0x78] sm:$0xff]
    %v778 = vld [vmem:[%s766 + $0x80] sm:$0xff]
    %v779 = vld [vmem:[%s766 + $0x90] sm:$0xff]
    %v780 = vld [vmem:[%s766 + $0x98] sm:$0xff]
    %v781 = vld [vmem:[%s766 + $0xa8] sm:$0xff]
    %v782 = vld [vmem:[%s766 + $0xb0] sm:$0xff]
    %v783 = vld [vmem:[%s766 + $0xc0] sm:$0xff]
    %v784 = vld [vmem:[%s766 + $0xc8] sm:$0xff]
    %v785 = vld [vmem:[%s766 + $0xd8] sm:$0xff]
    %v786 = vld [vmem:[%s766 + $0xe0] sm:$0xff]
    %v787 = vld [vmem:[%s766 + $0xf0] sm:$0xff]
    %v788 = vld [vmem:[%s766 + $0xf8] sm:$0xff]
    %v789 = vld [vmem:[%s766 + $0x108] sm:$0xff]
    %v790 = vld [vmem:[%s766 + $0x110] sm:$0xff]
    %v791 = vld [vmem:[%s766 + $0x120] sm:$0xff]
    %v792 = vld [vmem:[%s766 + $0x128] sm:$0xff]
    %v793 = vld [vmem:[%s766 + $0x138] sm:$0xff]
    %v794 = vld [vmem:[%s766 + $0x140] sm:$0xff]
    %v795 = vld [vmem:[%s766 + $0x150] sm:$0xff]
    %v796 = vld [vmem:[%s766 + $0x158] sm:$0xff]
    %v797 = vld [vmem:[%s766 + $0x168] sm:$0xff]
    %v798 = vld [vmem:[%s766 + $0x170] sm:$0xff]
    %v799 = vpack.c.bf16 %v768, %v767
    %v800 = vpack.c.bf16 %v770, %v769
    %v801 = vpack.c.bf16 %v772, %v771
    %v802 = vpack.c.bf16 %v774, %v773
    %v803 = vpack.c.bf16 %v776, %v775
    %v804 = vpack.c.bf16 %v778, %v777
    %v805 = vpack.c.bf16 %v780, %v779
    %v806 = vpack.c.bf16 %v782, %v781
    %v807 = vpack.c.bf16 %v784, %v783
    %v808 = vpack.c.bf16 %v786, %v785
    %v809 = vpack.c.bf16 %v788, %v787
    %v810 = vpack.c.bf16 %v790, %v789
    %v811 = vpack.c.bf16 %v792, %v791
    %v812 = vpack.c.bf16 %v794, %v793
    %v813 = vpack.c.bf16 %v796, %v795
    %v814 = vpack.c.bf16 %v798, %v797
    %831 = vrot.lane.b32.xlu0 %v799, 36
    %v832 = vpop.permute.xlu0 %831
    %833 = vrot.lane.b32.xlu0 %v800, 36
    %v834 = vpop.permute.xlu0 %833
    %835 = vrot.lane.b32.xlu0 %v801, 36
    %v836 = vpop.permute.xlu0 %835
    %837 = vrot.lane.b32.xlu0 %v802, 36
    %v838 = vpop.permute.xlu0 %837
    %839 = vrot.lane.b32.xlu0 %v803, 36
    %v840 = vpop.permute.xlu0 %839
    %841 = vrot.lane.b32.xlu0 %v804, 36
    %v842 = vpop.permute.xlu0 %841
    %843 = vrot.lane.b32.xlu0 %v805, 36
    %v844 = vpop.permute.xlu0 %843
    %845 = vrot.lane.b32.xlu0 %v806, 36
    %v846 = vpop.permute.xlu0 %845
    %847 = vrot.lane.b32.xlu0 %v807, 36
    %v848 = vpop.permute.xlu0 %847
    %849 = vrot.lane.b32.xlu0 %v808, 36
    %v850 = vpop.permute.xlu0 %849
    %851 = vrot.lane.b32.xlu0 %v809, 36
    %v852 = vpop.permute.xlu0 %851
    %853 = vrot.lane.b32.xlu0 %v810, 36
    %v854 = vpop.permute.xlu0 %853
    %855 = vrot.lane.b32.xlu0 %v811, 36
    %v856 = vpop.permute.xlu0 %855
    %857 = vrot.lane.b32.xlu0 %v812, 36
    %v858 = vpop.permute.xlu0 %857
    %859 = vrot.lane.b32.xlu0 %v813, 36
    %v860 = vpop.permute.xlu0 %859
    %861 = vrot.lane.b32.xlu0 %v814, 36
    %v862 = vpop.permute.xlu0 %861
    %vm879 = vcmask 343328
    %880 = vst.msk [vmem:[#allocation2] sm:$0xff] %vm879, %v832
    %881 = vst.msk [vmem:[#allocation2 + $0x8] sm:$0xff] %vm879, %v834
    %882 = vst.msk [vmem:[#allocation2 + $0x10] sm:$0xff] %vm879, %v836
    %883 = vst.msk [vmem:[#allocation2 + $0x18] sm:$0xff] %vm879, %v838
    %884 = vst.msk [vmem:[#allocation2 + $0x20] sm:$0xff] %vm879, %v840
    %885 = vst.msk [vmem:[#allocation2 + $0x28] sm:$0xff] %vm879, %v842
    %886 = vst.msk [vmem:[#allocation2 + $0x30] sm:$0xff] %vm879, %v844
    %887 = vst.msk [vmem:[#allocation2 + $0x38] sm:$0xff] %vm879, %v846
    %888 = vst.msk [vmem:[#allocation2 + $0x40] sm:$0xff] %vm879, %v848
    %889 = vst.msk [vmem:[#allocation2 + $0x48] sm:$0xff] %vm879, %v850
    %890 = vst.msk [vmem:[#allocation2 + $0x50] sm:$0xff] %vm879, %v852
    %891 = vst.msk [vmem:[#allocation2 + $0x58] sm:$0xff] %vm879, %v854
    %892 = vst.msk [vmem:[#allocation2 + $0x60] sm:$0xff] %vm879, %v856
    %893 = vst.msk [vmem:[#allocation2 + $0x68] sm:$0xff] %vm879, %v858
    %894 = vst.msk [vmem:[#allocation2 + $0x70] sm:$0xff] %vm879, %v860
    %895 = vst.msk [vmem:[#allocation2 + $0x78] sm:$0xff] %vm879, %v862
    %v896 = vld [vmem:[%s766 + $0x1] sm:$0xff]
    %v897 = vld [vmem:[%s766 + $0x9] sm:$0xff]
    %v898 = vld [vmem:[%s766 + $0x19] sm:$0xff]
    %v899 = vld [vmem:[%s766 + $0x21] sm:$0xff]
    %v900 = vld [vmem:[%s766 + $0x31] sm:$0xff]
    %v901 = vld [vmem:[%s766 + $0x39] sm:$0xff]
    %v902 = vld [vmem:[%s766 + $0x49] sm:$0xff]
    %v903 = vld [vmem:[%s766 + $0x51] sm:$0xff]
    %v904 = vld [vmem:[%s766 + $0x61] sm:$0xff]
    %v905 = vld [vmem:[%s766 + $0x69] sm:$0xff]
    %v906 = vld [vmem:[%s766 + $0x79] sm:$0xff]
    %v907 = vld [vmem:[%s766 + $0x81] sm:$0xff]
    %v908 = vld [vmem:[%s766 + $0x91] sm:$0xff]
    %v909 = vld [vmem:[%s766 + $0x99] sm:$0xff]
    %v910 = vld [vmem:[%s766 + $0xa9] sm:$0xff]
    %v911 = vld [vmem:[%s766 + $0xb1] sm:$0xff]
    %v912 = vld [vmem:[%s766 + $0xc1] sm:$0xff]
    %v913 = vld [vmem:[%s766 + $0xc9] sm:$0xff]
    %v914 = vld [vmem:[%s766 + $0xd9] sm:$0xff]
    %v915 = vld [vmem:[%s766 + $0xe1] sm:$0xff]
    %v916 = vld [vmem:[%s766 + $0xf1] sm:$0xff]
    %v917 = vld [vmem:[%s766 + $0xf9] sm:$0xff]
    %v918 = vld [vmem:[%s766 + $0x109] sm:$0xff]
    %v919 = vld [vmem:[%s766 + $0x111] sm:$0xff]
    %v920 = vld [vmem:[%s766 + $0x121] sm:$0xff]
    %v921 = vld [vmem:[%s766 + $0x129] sm:$0xff]
    %v922 = vld [vmem:[%s766 + $0x139] sm:$0xff]
    %v923 = vld [vmem:[%s766 + $0x141] sm:$0xff]
    %v924 = vld [vmem:[%s766 + $0x151] sm:$0xff]
    %v925 = vld [vmem:[%s766 + $0x159] sm:$0xff]
    %v926 = vld [vmem:[%s766 + $0x169] sm:$0xff]
    %v927 = vld [vmem:[%s766 + $0x171] sm:$0xff]
    %v928 = vpack.c.bf16 %v897, %v896
    %v929 = vpack.c.bf16 %v899, %v898
    %v930 = vpack.c.bf16 %v901, %v900
    %v931 = vpack.c.bf16 %v903, %v902
    %v932 = vpack.c.bf16 %v905, %v904
    %v933 = vpack.c.bf16 %v907, %v906
    %v934 = vpack.c.bf16 %v909, %v908
    %v935 = vpack.c.bf16 %v911, %v910
    %v936 = vpack.c.bf16 %v913, %v912
    %v937 = vpack.c.bf16 %v915, %v914
    %v938 = vpack.c.bf16 %v917, %v916
    %v939 = vpack.c.bf16 %v919, %v918
    %v940 = vpack.c.bf16 %v921, %v920
    %v941 = vpack.c.bf16 %v923, %v922
    %v942 = vpack.c.bf16 %v925, %v924
    %v943 = vpack.c.bf16 %v927, %v926
    %960 = vrot.lane.b32.xlu0 %v928, 42
    %v961 = vpop.permute.xlu0 %960
    %962 = vrot.lane.b32.xlu0 %v929, 42
    %v963 = vpop.permute.xlu0 %962
    %964 = vrot.lane.b32.xlu0 %v930, 42
    %v965 = vpop.permute.xlu0 %964
    %966 = vrot.lane.b32.xlu0 %v931, 42
    %v967 = vpop.permute.xlu0 %966
    %968 = vrot.lane.b32.xlu0 %v932, 42
    %v969 = vpop.permute.xlu0 %968
    %970 = vrot.lane.b32.xlu0 %v933, 42
    %v971 = vpop.permute.xlu0 %970
    %972 = vrot.lane.b32.xlu0 %v934, 42
    %v973 = vpop.permute.xlu0 %972
    %974 = vrot.lane.b32.xlu0 %v935, 42
    %v975 = vpop.permute.xlu0 %974
    %976 = vrot.lane.b32.xlu0 %v936, 42
    %v977 = vpop.permute.xlu0 %976
    %978 = vrot.lane.b32.xlu0 %v937, 42
    %v979 = vpop.permute.xlu0 %978
    %980 = vrot.lane.b32.xlu0 %v938, 42
    %v981 = vpop.permute.xlu0 %980
    %982 = vrot.lane.b32.xlu0 %v939, 42
    %v983 = vpop.permute.xlu0 %982
    %984 = vrot.lane.b32.xlu0 %v940, 42
    %v985 = vpop.permute.xlu0 %984
    %986 = vrot.lane.b32.xlu0 %v941, 42
    %v987 = vpop.permute.xlu0 %986
    %988 = vrot.lane.b32.xlu0 %v942, 42
    %v989 = vpop.permute.xlu0 %988
    %990 = vrot.lane.b32.xlu0 %v943, 42
    %v991 = vpop.permute.xlu0 %990
    %vm1008 = vcmask 392528
    %1009 = vst.msk [vmem:[#allocation2] sm:$0xff] %vm1008, %v961
    %1010 = vst.msk [vmem:[#allocation2 + $0x8] sm:$0xff] %vm1008, %v963
    %1011 = vst.msk [vmem:[#allocation2 + $0x10] sm:$0xff] %vm1008, %v965
    %1012 = vst.msk [vmem:[#allocation2 + $0x18] sm:$0xff] %vm1008, %v967
    %1013 = vst.msk [vmem:[#allocation2 + $0x20] sm:$0xff] %vm1008, %v969
    %1014 = vst.msk [vmem:[#allocation2 + $0x28] sm:$0xff] %vm1008, %v971
    %1015 = vst.msk [vmem:[#allocation2 + $0x30] sm:$0xff] %vm1008, %v973
    %1016 = vst.msk [vmem:[#allocation2 + $0x38] sm:$0xff] %vm1008, %v975
    %1017 = vst.msk [vmem:[#allocation2 + $0x40] sm:$0xff] %vm1008, %v977
    %1018 = vst.msk [vmem:[#allocation2 + $0x48] sm:$0xff] %vm1008, %v979
    %1019 = vst.msk [vmem:[#allocation2 + $0x50] sm:$0xff] %vm1008, %v981
    %1020 = vst.msk [vmem:[#allocation2 + $0x58] sm:$0xff] %vm1008, %v983
    %1021 = vst.msk [vmem:[#allocation2 + $0x60] sm:$0xff] %vm1008, %v985
    %1022 = vst.msk [vmem:[#allocation2 + $0x68] sm:$0xff] %vm1008, %v987
    %1023 = vst.msk [vmem:[#allocation2 + $0x70] sm:$0xff] %vm1008, %v989
    %1024 = vst.msk [vmem:[#allocation2 + $0x78] sm:$0xff] %vm1008, %v991
    %v1025 = vld [vmem:[%s766 + $0x2] sm:$0xff]
    %v1026 = vld [vmem:[%s766 + $0xa] sm:$0xff]
    %v1027 = vld [vmem:[%s766 + $0x1a] sm:$0xff]
    %v1028 = vld [vmem:[%s766 + $0x22] sm:$0xff]
    %v1029 = vld [vmem:[%s766 + $0x32] sm:$0xff]
    %v1030 = vld [vmem:[%s766 + $0x3a] sm:$0xff]
    %v1031 = vld [vmem:[%s766 + $0x4a] sm:$0xff]
    %v1032 = vld [vmem:[%s766 + $0x52] sm:$0xff]
    %v1033 = vld [vmem:[%s766 + $0x62] sm:$0xff]
    %v1034 = vld [vmem:[%s766 + $0x6a] sm:$0xff]
    %v1035 = vld [vmem:[%s766 + $0x7a] sm:$0xff]
    %v1036 = vld [vmem:[%s766 + $0x82] sm:$0xff]
    %v1037 = vld [vmem:[%s766 + $0x92] sm:$0xff]
    %v1038 = vld [vmem:[%s766 + $0x9a] sm:$0xff]
    %v1039 = vld [vmem:[%s766 + $0xaa] sm:$0xff]
    %v1040 = vld [vmem:[%s766 + $0xb2] sm:$0xff]
    %v1041 = vld [vmem:[%s766 + $0xc2] sm:$0xff]
    %v1042 = vld [vmem:[%s766 + $0xca] sm:$0xff]
    %v1043 = vld [vmem:[%s766 + $0xda] sm:$0xff]
    %v1044 = vld [vmem:[%s766 + $0xe2] sm:$0xff]
    %v1045 = vld [vmem:[%s766 + $0xf2] sm:$0xff]
    %v1046 = vld [vmem:[%s766 + $0xfa] sm:$0xff]
    %v1047 = vld [vmem:[%s766 + $0x10a] sm:$0xff]
    %v1048 = vld [vmem:[%s766 + $0x112] sm:$0xff]
    %v1049 = vld [vmem:[%s766 + $0x122] sm:$0xff]
    %v1050 = vld [vmem:[%s766 + $0x12a] sm:$0xff]
    %v1051 = vld [vmem:[%s766 + $0x13a] sm:$0xff]
    %v1052 = vld [vmem:[%s766 + $0x142] sm:$0xff]
    %v1053 = vld [vmem:[%s766 + $0x152] sm:$0xff]
    %v1054 = vld [vmem:[%s766 + $0x15a] sm:$0xff]
    %v1055 = vld [vmem:[%s766 + $0x16a] sm:$0xff]
    %v1056 = vld [vmem:[%s766 + $0x172] sm:$0xff]
    %v1057 = vpack.c.bf16 %v1026, %v1025
    %v1058 = vpack.c.bf16 %v1028, %v1027
    %v1059 = vpack.c.bf16 %v1030, %v1029
    %v1060 = vpack.c.bf16 %v1032, %v1031
    %v1061 = vpack.c.bf16 %v1034, %v1033
    %v1062 = vpack.c.bf16 %v1036, %v1035
    %v1063 = vpack.c.bf16 %v1038, %v1037
    %v1064 = vpack.c.bf16 %v1040, %v1039
    %v1065 = vpack.c.bf16 %v1042, %v1041
    %v1066 = vpack.c.bf16 %v1044, %v1043
    %v1067 = vpack.c.bf16 %v1046, %v1045
    %v1068 = vpack.c.bf16 %v1048, %v1047
    %v1069 = vpack.c.bf16 %v1050, %v1049
    %v1070 = vpack.c.bf16 %v1052, %v1051
    %v1071 = vpack.c.bf16 %v1054, %v1053
    %v1072 = vpack.c.bf16 %v1056, %v1055
    %1089 = vrot.lane.b32.xlu0 %v1057, 48
    %v1090 = vpop.permute.xlu0 %1089
    %1091 = vrot.lane.b32.xlu0 %v1058, 48
    %v1092 = vpop.permute.xlu0 %1091
    %1093 = vrot.lane.b32.xlu0 %v1059, 48
    %v1094 = vpop.permute.xlu0 %1093
    %1095 = vrot.lane.b32.xlu0 %v1060, 48
    %v1096 = vpop.permute.xlu0 %1095
    %1097 = vrot.lane.b32.xlu0 %v1061, 48
    %v1098 = vpop.permute.xlu0 %1097
    %1099 = vrot.lane.b32.xlu0 %v1062, 48
    %v1100 = vpop.permute.xlu0 %1099
    %1101 = vrot.lane.b32.xlu0 %v1063, 48
    %v1102 = vpop.permute.xlu0 %1101
    %1103 = vrot.lane.b32.xlu0 %v1064, 48
    %v1104 = vpop.permute.xlu0 %1103
    %1105 = vrot.lane.b32.xlu0 %v1065, 48
    %v1106 = vpop.permute.xlu0 %1105
    %1107 = vrot.lane.b32.xlu0 %v1066, 48
    %v1108 = vpop.permute.xlu0 %1107
    %1109 = vrot.lane.b32.xlu0 %v1067, 48
    %v1110 = vpop.permute.xlu0 %1109
    %1111 = vrot.lane.b32.xlu0 %v1068, 48
    %v1112 = vpop.permute.xlu0 %1111
    %1113 = vrot.lane.b32.xlu0 %v1069, 48
    %v1114 = vpop.permute.xlu0 %1113
    %1115 = vrot.lane.b32.xlu0 %v1070, 48
    %v1116 = vpop.permute.xlu0 %1115
    %1117 = vrot.lane.b32.xlu0 %v1071, 48
    %v1118 = vpop.permute.xlu0 %1117
    %1119 = vrot.lane.b32.xlu0 %v1072, 48
    %v1120 = vpop.permute.xlu0 %1119
    %vm1137 = vcmask 441728
    %1138 = vst.msk [vmem:[#allocation2] sm:$0xff] %vm1137, %v1090
    %1139 = vst.msk [vmem:[#allocation2 + $0x8] sm:$0xff] %vm1137, %v1092
    %1140 = vst.msk [vmem:[#allocation2 + $0x10] sm:$0xff] %vm1137, %v1094
    %1141 = vst.msk [vmem:[#allocation2 + $0x18] sm:$0xff] %vm1137, %v1096
    %1142 = vst.msk [vmem:[#allocation2 + $0x20] sm:$0xff] %vm1137, %v1098
    %1143 = vst.msk [vmem:[#allocation2 + $0x28] sm:$0xff] %vm1137, %v1100
    %1144 = vst.msk [vmem:[#allocation2 + $0x30] sm:$0xff] %vm1137, %v1102
    %1145 = vst.msk [vmem:[#allocation2 + $0x38] sm:$0xff] %vm1137, %v1104
    %1146 = vst.msk [vmem:[#allocation2 + $0x40] sm:$0xff] %vm1137, %v1106
    %1147 = vst.msk [vmem:[#allocation2 + $0x48] sm:$0xff] %vm1137, %v1108
    %1148 = vst.msk [vmem:[#allocation2 + $0x50] sm:$0xff] %vm1137, %v1110
    %1149 = vst.msk [vmem:[#allocation2 + $0x58] sm:$0xff] %vm1137, %v1112
    %1150 = vst.msk [vmem:[#allocation2 + $0x60] sm:$0xff] %vm1137, %v1114
    %1151 = vst.msk [vmem:[#allocation2 + $0x68] sm:$0xff] %vm1137, %v1116
    %1152 = vst.msk [vmem:[#allocation2 + $0x70] sm:$0xff] %vm1137, %v1118
    %1153 = vst.msk [vmem:[#allocation2 + $0x78] sm:$0xff] %vm1137, %v1120
    %s1154 = scalar_lea.vmem %s0, 432
    %v1155 = vld [vmem:[%s1154] sm:$0xff]
    %v1156 = vld [vmem:[%s1154 + $0x8] sm:$0xff]
    %v1157 = vld [vmem:[%s1154 + $0x18] sm:$0xff]
    %v1158 = vld [vmem:[%s1154 + $0x20] sm:$0xff]
    %v1159 = vld [vmem:[%s1154 + $0x30] sm:$0xff]
    %v1160 = vld [vmem:[%s1154 + $0x38] sm:$0xff]
    %v1161 = vld [vmem:[%s1154 + $0x48] sm:$0xff]
    %v1162 = vld [vmem:[%s1154 + $0x50] sm:$0xff]
    %v1163 = vld [vmem:[%s1154 + $0x60] sm:$0xff]
    %v1164 = vld [vmem:[%s1154 + $0x68] sm:$0xff]
    %v1165 = vld [vmem:[%s1154 + $0x78] sm:$0xff]
    %v1166 = vld [vmem:[%s1154 + $0x80] sm:$0xff]
    %v1167 = vld [vmem:[%s1154 + $0x90] sm:$0xff]
    %v1168 = vld [vmem:[%s1154 + $0x98] sm:$0xff]
    %v1169 = vld [vmem:[%s1154 + $0xa8] sm:$0xff]
    %v1170 = vld [vmem:[%s1154 + $0xb0] sm:$0xff]
    %v1171 = vld [vmem:[%s1154 + $0xc0] sm:$0xff]
    %v1172 = vld [vmem:[%s1154 + $0xc8] sm:$0xff]
    %v1173 = vld [vmem:[%s1154 + $0xd8] sm:$0xff]
    %v1174 = vld [vmem:[%s1154 + $0xe0] sm:$0xff]
    %v1175 = vld [vmem:[%s1154 + $0xf0] sm:$0xff]
    %v1176 = vld [vmem:[%s1154 + $0xf8] sm:$0xff]
    %v1177 = vld [vmem:[%s1154 + $0x108] sm:$0xff]
    %v1178 = vld [vmem:[%s1154 + $0x110] sm:$0xff]
    %v1179 = vld [vmem:[%s1154 + $0x120] sm:$0xff]
    %v1180 = vld [vmem:[%s1154 + $0x128] sm:$0xff]
    %v1181 = vld [vmem:[%s1154 + $0x138] sm:$0xff]
    %v1182 = vld [vmem:[%s1154 + $0x140] sm:$0xff]
    %v1183 = vld [vmem:[%s1154 + $0x150] sm:$0xff]
    %v1184 = vld [vmem:[%s1154 + $0x158] sm:$0xff]
    %v1185 = vld [vmem:[%s1154 + $0x168] sm:$0xff]
    %v1186 = vld [vmem:[%s1154 + $0x170] sm:$0xff]
    %v1187 = vpack.c.bf16 %v1156, %v1155
    %v1188 = vpack.c.bf16 %v1158, %v1157
    %v1189 = vpack.c.bf16 %v1160, %v1159
    %v1190 = vpack.c.bf16 %v1162, %v1161
    %v1191 = vpack.c.bf16 %v1164, %v1163
    %v1192 = vpack.c.bf16 %v1166, %v1165
    %v1193 = vpack.c.bf16 %v1168, %v1167
    %v1194 = vpack.c.bf16 %v1170, %v1169
    %v1195 = vpack.c.bf16 %v1172, %v1171
    %v1196 = vpack.c.bf16 %v1174, %v1173
    %v1197 = vpack.c.bf16 %v1176, %v1175
    %v1198 = vpack.c.bf16 %v1178, %v1177
    %v1199 = vpack.c.bf16 %v1180, %v1179
    %v1200 = vpack.c.bf16 %v1182, %v1181
    %v1201 = vpack.c.bf16 %v1184, %v1183
    %v1202 = vpack.c.bf16 %v1186, %v1185
    %s1203 = scalar_lea.vmem [#allocation2], 128
    %1204 = vst.msk [vmem:[%s1203] sm:$0xff] %vm103, %v1187
    %1205 = vst.msk [vmem:[%s1203 + $0x8] sm:$0xff] %vm103, %v1188
    %1206 = vst.msk [vmem:[%s1203 + $0x10] sm:$0xff] %vm103, %v1189
    %1207 = vst.msk [vmem:[%s1203 + $0x18] sm:$0xff] %vm103, %v1190
    %1208 = vst.msk [vmem:[%s1203 + $0x20] sm:$0xff] %vm103, %v1191
    %1209 = vst.msk [vmem:[%s1203 + $0x28] sm:$0xff] %vm103, %v1192
    %1210 = vst.msk [vmem:[%s1203 + $0x30] sm:$0xff] %vm103, %v1193
    %1211 = vst.msk [vmem:[%s1203 + $0x38] sm:$0xff] %vm103, %v1194
    %1212 = vst.msk [vmem:[%s1203 + $0x40] sm:$0xff] %vm103, %v1195
    %1213 = vst.msk [vmem:[%s1203 + $0x48] sm:$0xff] %vm103, %v1196
    %1214 = vst.msk [vmem:[%s1203 + $0x50] sm:$0xff] %vm103, %v1197
    %1215 = vst.msk [vmem:[%s1203 + $0x58] sm:$0xff] %vm103, %v1198
    %1216 = vst.msk [vmem:[%s1203 + $0x60] sm:$0xff] %vm103, %v1199
    %1217 = vst.msk [vmem:[%s1203 + $0x68] sm:$0xff] %vm103, %v1200
    %1218 = vst.msk [vmem:[%s1203 + $0x70] sm:$0xff] %vm103, %v1201
    %1219 = vst.msk [vmem:[%s1203 + $0x78] sm:$0xff] %vm103, %v1202
    %v1220 = vld [vmem:[%s1154 + $0x1] sm:$0xff]
    %v1221 = vld [vmem:[%s1154 + $0x9] sm:$0xff]
    %v1222 = vld [vmem:[%s1154 + $0x19] sm:$0xff]
    %v1223 = vld [vmem:[%s1154 + $0x21] sm:$0xff]
    %v1224 = vld [vmem:[%s1154 + $0x31] sm:$0xff]
    %v1225 = vld [vmem:[%s1154 + $0x39] sm:$0xff]
    %v1226 = vld [vmem:[%s1154 + $0x49] sm:$0xff]
    %v1227 = vld [vmem:[%s1154 + $0x51] sm:$0xff]
    %v1228 = vld [vmem:[%s1154 + $0x61] sm:$0xff]
    %v1229 = vld [vmem:[%s1154 + $0x69] sm:$0xff]
    %v1230 = vld [vmem:[%s1154 + $0x79] sm:$0xff]
    %v1231 = vld [vmem:[%s1154 + $0x81] sm:$0xff]
    %v1232 = vld [vmem:[%s1154 + $0x91] sm:$0xff]
    %v1233 = vld [vmem:[%s1154 + $0x99] sm:$0xff]
    %v1234 = vld [vmem:[%s1154 + $0xa9] sm:$0xff]
    %v1235 = vld [vmem:[%s1154 + $0xb1] sm:$0xff]
    %v1236 = vld [vmem:[%s1154 + $0xc1] sm:$0xff]
    %v1237 = vld [vmem:[%s1154 + $0xc9] sm:$0xff]
    %v1238 = vld [vmem:[%s1154 + $0xd9] sm:$0xff]
    %v1239 = vld [vmem:[%s1154 + $0xe1] sm:$0xff]
    %v1240 = vld [vmem:[%s1154 + $0xf1] sm:$0xff]
    %v1241 = vld [vmem:[%s1154 + $0xf9] sm:$0xff]
    %v1242 = vld [vmem:[%s1154 + $0x109] sm:$0xff]
    %v1243 = vld [vmem:[%s1154 + $0x111] sm:$0xff]
    %v1244 = vld [vmem:[%s1154 + $0x121] sm:$0xff]
    %v1245 = vld [vmem:[%s1154 + $0x129] sm:$0xff]
    %v1246 = vld [vmem:[%s1154 + $0x139] sm:$0xff]
    %v1247 = vld [vmem:[%s1154 + $0x141] sm:$0xff]
    %v1248 = vld [vmem:[%s1154 + $0x151] sm:$0xff]
    %v1249 = vld [vmem:[%s1154 + $0x159] sm:$0xff]
    %v1250 = vld [vmem:[%s1154 + $0x169] sm:$0xff]
    %v1251 = vld [vmem:[%s1154 + $0x171] sm:$0xff]
    %v1252 = vpack.c.bf16 %v1221, %v1220
    %v1253 = vpack.c.bf16 %v1223, %v1222
    %v1254 = vpack.c.bf16 %v1225, %v1224
    %v1255 = vpack.c.bf16 %v1227, %v1226
    %v1256 = vpack.c.bf16 %v1229, %v1228
    %v1257 = vpack.c.bf16 %v1231, %v1230
    %v1258 = vpack.c.bf16 %v1233, %v1232
    %v1259 = vpack.c.bf16 %v1235, %v1234
    %v1260 = vpack.c.bf16 %v1237, %v1236
    %v1261 = vpack.c.bf16 %v1239, %v1238
    %v1262 = vpack.c.bf16 %v1241, %v1240
    %v1263 = vpack.c.bf16 %v1243, %v1242
    %v1264 = vpack.c.bf16 %v1245, %v1244
    %v1265 = vpack.c.bf16 %v1247, %v1246
    %v1266 = vpack.c.bf16 %v1249, %v1248
    %v1267 = vpack.c.bf16 %v1251, %v1250
    %1284 = vrot.lane.b32.xlu0 %v1252, 6
    %v1285 = vpop.permute.xlu0 %1284
    %1286 = vrot.lane.b32.xlu0 %v1253, 6
    %v1287 = vpop.permute.xlu0 %1286
    %1288 = vrot.lane.b32.xlu0 %v1254, 6
    %v1289 = vpop.permute.xlu0 %1288
    %1290 = vrot.lane.b32.xlu0 %v1255, 6
    %v1291 = vpop.permute.xlu0 %1290
    %1292 = vrot.lane.b32.xlu0 %v1256, 6
    %v1293 = vpop.permute.xlu0 %1292
    %1294 = vrot.lane.b32.xlu0 %v1257, 6
    %v1295 = vpop.permute.xlu0 %1294
    %1296 = vrot.lane.b32.xlu0 %v1258, 6
    %v1297 = vpop.permute.xlu0 %1296
    %1298 = vrot.lane.b32.xlu0 %v1259, 6
    %v1299 = vpop.permute.xlu0 %1298
    %1300 = vrot.lane.b32.xlu0 %v1260, 6
    %v1301 = vpop.permute.xlu0 %1300
    %1302 = vrot.lane.b32.xlu0 %v1261, 6
    %v1303 = vpop.permute.xlu0 %1302
    %1304 = vrot.lane.b32.xlu0 %v1262, 6
    %v1305 = vpop.permute.xlu0 %1304
    %1306 = vrot.lane.b32.xlu0 %v1263, 6
    %v1307 = vpop.permute.xlu0 %1306
    %1308 = vrot.lane.b32.xlu0 %v1264, 6
    %v1309 = vpop.permute.xlu0 %1308
    %1310 = vrot.lane.b32.xlu0 %v1265, 6
    %v1311 = vpop.permute.xlu0 %1310
    %1312 = vrot.lane.b32.xlu0 %v1266, 6
    %v1313 = vpop.permute.xlu0 %1312
    %1314 = vrot.lane.b32.xlu0 %v1267, 6
    %v1315 = vpop.permute.xlu0 %1314
    %1332 = vst.msk [vmem:[%s1203] sm:$0xff] %vm232, %v1285
    %1333 = vst.msk [vmem:[%s1203 + $0x8] sm:$0xff] %vm232, %v1287
    %1334 = vst.msk [vmem:[%s1203 + $0x10] sm:$0xff] %vm232, %v1289
    %1335 = vst.msk [vmem:[%s1203 + $0x18] sm:$0xff] %vm232, %v1291
    %1336 = vst.msk [vmem:[%s1203 + $0x20] sm:$0xff] %vm232, %v1293
    %1337 = vst.msk [vmem:[%s1203 + $0x28] sm:$0xff] %vm232, %v1295
    %1338 = vst.msk [vmem:[%s1203 + $0x30] sm:$0xff] %vm232, %v1297
    %1339 = vst.msk [vmem:[%s1203 + $0x38] sm:$0xff] %vm232, %v1299
    %1340 = vst.msk [vmem:[%s1203 + $0x40] sm:$0xff] %vm232, %v1301
    %1341 = vst.msk [vmem:[%s1203 + $0x48] sm:$0xff] %vm232, %v1303
    %1342 = vst.msk [vmem:[%s1203 + $0x50] sm:$0xff] %vm232, %v1305
    %1343 = vst.msk [vmem:[%s1203 + $0x58] sm:$0xff] %vm232, %v1307
    %1344 = vst.msk [vmem:[%s1203 + $0x60] sm:$0xff] %vm232, %v1309
    %1345 = vst.msk [vmem:[%s1203 + $0x68] sm:$0xff] %vm232, %v1311
    %1346 = vst.msk [vmem:[%s1203 + $0x70] sm:$0xff] %vm232, %v1313
    %1347 = vst.msk [vmem:[%s1203 + $0x78] sm:$0xff] %vm232, %v1315
    %v1348 = vld [vmem:[%s1154 + $0x2] sm:$0xff]
    %v1349 = vld [vmem:[%s1154 + $0xa] sm:$0xff]
    %v1350 = vld [vmem:[%s1154 + $0x1a] sm:$0xff]
    %v1351 = vld [vmem:[%s1154 + $0x22] sm:$0xff]
    %v1352 = vld [vmem:[%s1154 + $0x32] sm:$0xff]
    %v1353 = vld [vmem:[%s1154 + $0x3a] sm:$0xff]
    %v1354 = vld [vmem:[%s1154 + $0x4a] sm:$0xff]
    %v1355 = vld [vmem:[%s1154 + $0x52] sm:$0xff]
    %v1356 = vld [vmem:[%s1154 + $0x62] sm:$0xff]
    %v1357 = vld [vmem:[%s1154 + $0x6a] sm:$0xff]
    %v1358 = vld [vmem:[%s1154 + $0x7a] sm:$0xff]
    %v1359 = vld [vmem:[%s1154 + $0x82] sm:$0xff]
    %v1360 = vld [vmem:[%s1154 + $0x92] sm:$0xff]
    %v1361 = vld [vmem:[%s1154 + $0x9a] sm:$0xff]
    %v1362 = vld [vmem:[%s1154 + $0xaa] sm:$0xff]
    %v1363 = vld [vmem:[%s1154 + $0xb2] sm:$0xff]
    %v1364 = vld [vmem:[%s1154 + $0xc2] sm:$0xff]
    %v1365 = vld [vmem:[%s1154 + $0xca] sm:$0xff]
    %v1366 = vld [vmem:[%s1154 + $0xda] sm:$0xff]
    %v1367 = vld [vmem:[%s1154 + $0xe2] sm:$0xff]
    %v1368 = vld [vmem:[%s1154 + $0xf2] sm:$0xff]
    %v1369 = vld [vmem:[%s1154 + $0xfa] sm:$0xff]
    %v1370 = vld [vmem:[%s1154 + $0x10a] sm:$0xff]
    %v1371 = vld [vmem:[%s1154 + $0x112] sm:$0xff]
    %v1372 = vld [vmem:[%s1154 + $0x122] sm:$0xff]
    %v1373 = vld [vmem:[%s1154 + $0x12a] sm:$0xff]
    %v1374 = vld [vmem:[%s1154 + $0x13a] sm:$0xff]
    %v1375 = vld [vmem:[%s1154 + $0x142] sm:$0xff]
    %v1376 = vld [vmem:[%s1154 + $0x152] sm:$0xff]
    %v1377 = vld [vmem:[%s1154 + $0x15a] sm:$0xff]
    %v1378 = vld [vmem:[%s1154 + $0x16a] sm:$0xff]
    %v1379 = vld [vmem:[%s1154 + $0x172] sm:$0xff]
    %v1380 = vpack.c.bf16 %v1349, %v1348
    %v1381 = vpack.c.bf16 %v1351, %v1350
    %v1382 = vpack.c.bf16 %v1353, %v1352
    %v1383 = vpack.c.bf16 %v1355, %v1354
    %v1384 = vpack.c.bf16 %v1357, %v1356
    %v1385 = vpack.c.bf16 %v1359, %v1358
    %v1386 = vpack.c.bf16 %v1361, %v1360
    %v1387 = vpack.c.bf16 %v1363, %v1362
    %v1388 = vpack.c.bf16 %v1365, %v1364
    %v1389 = vpack.c.bf16 %v1367, %v1366
    %v1390 = vpack.c.bf16 %v1369, %v1368
    %v1391 = vpack.c.bf16 %v1371, %v1370
    %v1392 = vpack.c.bf16 %v1373, %v1372
    %v1393 = vpack.c.bf16 %v1375, %v1374
    %v1394 = vpack.c.bf16 %v1377, %v1376
    %v1395 = vpack.c.bf16 %v1379, %v1378
    %1412 = vrot.lane.b32.xlu0 %v1380, 12
    %v1413 = vpop.permute.xlu0 %1412
    %1414 = vrot.lane.b32.xlu0 %v1381, 12
    %v1415 = vpop.permute.xlu0 %1414
    %1416 = vrot.lane.b32.xlu0 %v1382, 12
    %v1417 = vpop.permute.xlu0 %1416
    %1418 = vrot.lane.b32.xlu0 %v1383, 12
    %v1419 = vpop.permute.xlu0 %1418
    %1420 = vrot.lane.b32.xlu0 %v1384, 12
    %v1421 = vpop.permute.xlu0 %1420
    %1422 = vrot.lane.b32.xlu0 %v1385, 12
    %v1423 = vpop.permute.xlu0 %1422
    %1424 = vrot.lane.b32.xlu0 %v1386, 12
    %v1425 = vpop.permute.xlu0 %1424
    %1426 = vrot.lane.b32.xlu0 %v1387, 12
    %v1427 = vpop.permute.xlu0 %1426
    %1428 = vrot.lane.b32.xlu0 %v1388, 12
    %v1429 = vpop.permute.xlu0 %1428
    %1430 = vrot.lane.b32.xlu0 %v1389, 12
    %v1431 = vpop.permute.xlu0 %1430
    %1432 = vrot.lane.b32.xlu0 %v1390, 12
    %v1433 = vpop.permute.xlu0 %1432
    %1434 = vrot.lane.b32.xlu0 %v1391, 12
    %v1435 = vpop.permute.xlu0 %1434
    %1436 = vrot.lane.b32.xlu0 %v1392, 12
    %v1437 = vpop.permute.xlu0 %1436
    %1438 = vrot.lane.b32.xlu0 %v1393, 12
    %v1439 = vpop.permute.xlu0 %1438
    %1440 = vrot.lane.b32.xlu0 %v1394, 12
    %v1441 = vpop.permute.xlu0 %1440
    %1442 = vrot.lane.b32.xlu0 %v1395, 12
    %v1443 = vpop.permute.xlu0 %1442
    %1460 = vst.msk [vmem:[%s1203] sm:$0xff] %vm361, %v1413
    %1461 = vst.msk [vmem:[%s1203 + $0x8] sm:$0xff] %vm361, %v1415
    %1462 = vst.msk [vmem:[%s1203 + $0x10] sm:$0xff] %vm361, %v1417
    %1463 = vst.msk [vmem:[%s1203 + $0x18] sm:$0xff] %vm361, %v1419
    %1464 = vst.msk [vmem:[%s1203 + $0x20] sm:$0xff] %vm361, %v1421
    %1465 = vst.msk [vmem:[%s1203 + $0x28] sm:$0xff] %vm361, %v1423
    %1466 = vst.msk [vmem:[%s1203 + $0x30] sm:$0xff] %vm361, %v1425
    %1467 = vst.msk [vmem:[%s1203 + $0x38] sm:$0xff] %vm361, %v1427
    %1468 = vst.msk [vmem:[%s1203 + $0x40] sm:$0xff] %vm361, %v1429
    %1469 = vst.msk [vmem:[%s1203 + $0x48] sm:$0xff] %vm361, %v1431
    %1470 = vst.msk [vmem:[%s1203 + $0x50] sm:$0xff] %vm361, %v1433
    %1471 = vst.msk [vmem:[%s1203 + $0x58] sm:$0xff] %vm361, %v1435
    %1472 = vst.msk [vmem:[%s1203 + $0x60] sm:$0xff] %vm361, %v1437
    %1473 = vst.msk [vmem:[%s1203 + $0x68] sm:$0xff] %vm361, %v1439
    %1474 = vst.msk [vmem:[%s1203 + $0x70] sm:$0xff] %vm361, %v1441
    %1475 = vst.msk [vmem:[%s1203 + $0x78] sm:$0xff] %vm361, %v1443
    %s1476 = scalar_lea.vmem %s0, 456
    %v1477 = vld [vmem:[%s1476] sm:$0xff]
    %v1478 = vld [vmem:[%s1476 + $0x8] sm:$0xff]
    %v1479 = vld [vmem:[%s1476 + $0x18] sm:$0xff]
    %v1480 = vld [vmem:[%s1476 + $0x20] sm:$0xff]
    %v1481 = vld [vmem:[%s1476 + $0x30] sm:$0xff]
    %v1482 = vld [vmem:[%s1476 + $0x38] sm:$0xff]
    %v1483 = vld [vmem:[%s1476 + $0x48] sm:$0xff]
    %v1484 = vld [vmem:[%s1476 + $0x50] sm:$0xff]
    %v1485 = vld [vmem:[%s1476 + $0x60] sm:$0xff]
    %v1486 = vld [vmem:[%s1476 + $0x68] sm:$0xff]
    %v1487 = vld [vmem:[%s1476 + $0x78] sm:$0xff]
    %v1488 = vld [vmem:[%s1476 + $0x80] sm:$0xff]
    %v1489 = vld [vmem:[%s1476 + $0x90] sm:$0xff]
    %v1490 = vld [vmem:[%s1476 + $0x98] sm:$0xff]
    %v1491 = vld [vmem:[%s1476 + $0xa8] sm:$0xff]
    %v1492 = vld [vmem:[%s1476 + $0xb0] sm:$0xff]
    %v1493 = vld [vmem:[%s1476 + $0xc0] sm:$0xff]
    %v1494 = vld [vmem:[%s1476 + $0xc8] sm:$0xff]
    %v1495 = vld [vmem:[%s1476 + $0xd8] sm:$0xff]
    %v1496 = vld [vmem:[%s1476 + $0xe0] sm:$0xff]
    %v1497 = vld [vmem:[%s1476 + $0xf0] sm:$0xff]
    %v1498 = vld [vmem:[%s1476 + $0xf8] sm:$0xff]
    %v1499 = vld [vmem:[%s1476 + $0x108] sm:$0xff]
    %v1500 = vld [vmem:[%s1476 + $0x110] sm:$0xff]
    %v1501 = vld [vmem:[%s1476 + $0x120] sm:$0xff]
    %v1502 = vld [vmem:[%s1476 + $0x128] sm:$0xff]
    %v1503 = vld [vmem:[%s1476 + $0x138] sm:$0xff]
    %v1504 = vld [vmem:[%s1476 + $0x140] sm:$0xff]
    %v1505 = vld [vmem:[%s1476 + $0x150] sm:$0xff]
    %v1506 = vld [vmem:[%s1476 + $0x158] sm:$0xff]
    %v1507 = vld [vmem:[%s1476 + $0x168] sm:$0xff]
    %v1508 = vld [vmem:[%s1476 + $0x170] sm:$0xff]
    %v1509 = vpack.c.bf16 %v1478, %v1477
    %v1510 = vpack.c.bf16 %v1480, %v1479
    %v1511 = vpack.c.bf16 %v1482, %v1481
    %v1512 = vpack.c.bf16 %v1484, %v1483
    %v1513 = vpack.c.bf16 %v1486, %v1485
    %v1514 = vpack.c.bf16 %v1488, %v1487
    %v1515 = vpack.c.bf16 %v1490, %v1489
    %v1516 = vpack.c.bf16 %v1492, %v1491
    %v1517 = vpack.c.bf16 %v1494, %v1493
    %v1518 = vpack.c.bf16 %v1496, %v1495
    %v1519 = vpack.c.bf16 %v1498, %v1497
    %v1520 = vpack.c.bf16 %v1500, %v1499
    %v1521 = vpack.c.bf16 %v1502, %v1501
    %v1522 = vpack.c.bf16 %v1504, %v1503
    %v1523 = vpack.c.bf16 %v1506, %v1505
    %v1524 = vpack.c.bf16 %v1508, %v1507
    %1541 = vrot.lane.b32.xlu0 %v1509, 18
    %v1542 = vpop.permute.xlu0 %1541
    %1543 = vrot.lane.b32.xlu0 %v1510, 18
    %v1544 = vpop.permute.xlu0 %1543
    %1545 = vrot.lane.b32.xlu0 %v1511, 18
    %v1546 = vpop.permute.xlu0 %1545
    %1547 = vrot.lane.b32.xlu0 %v1512, 18
    %v1548 = vpop.permute.xlu0 %1547
    %1549 = vrot.lane.b32.xlu0 %v1513, 18
    %v1550 = vpop.permute.xlu0 %1549
    %1551 = vrot.lane.b32.xlu0 %v1514, 18
    %v1552 = vpop.permute.xlu0 %1551
    %1553 = vrot.lane.b32.xlu0 %v1515, 18
    %v1554 = vpop.permute.xlu0 %1553
    %1555 = vrot.lane.b32.xlu0 %v1516, 18
    %v1556 = vpop.permute.xlu0 %1555
    %1557 = vrot.lane.b32.xlu0 %v1517, 18
    %v1558 = vpop.permute.xlu0 %1557
    %1559 = vrot.lane.b32.xlu0 %v1518, 18
    %v1560 = vpop.permute.xlu0 %1559
    %1561 = vrot.lane.b32.xlu0 %v1519, 18
    %v1562 = vpop.permute.xlu0 %1561
    %1563 = vrot.lane.b32.xlu0 %v1520, 18
    %v1564 = vpop.permute.xlu0 %1563
    %1565 = vrot.lane.b32.xlu0 %v1521, 18
    %v1566 = vpop.permute.xlu0 %1565
    %1567 = vrot.lane.b32.xlu0 %v1522, 18
    %v1568 = vpop.permute.xlu0 %1567
    %1569 = vrot.lane.b32.xlu0 %v1523, 18
    %v1570 = vpop.permute.xlu0 %1569
    %1571 = vrot.lane.b32.xlu0 %v1524, 18
    %v1572 = vpop.permute.xlu0 %1571
    %1589 = vst.msk [vmem:[%s1203] sm:$0xff] %vm491, %v1542
    %1590 = vst.msk [vmem:[%s1203 + $0x8] sm:$0xff] %vm491, %v1544
    %1591 = vst.msk [vmem:[%s1203 + $0x10] sm:$0xff] %vm491, %v1546
    %1592 = vst.msk [vmem:[%s1203 + $0x18] sm:$0xff] %vm491, %v1548
    %1593 = vst.msk [vmem:[%s1203 + $0x20] sm:$0xff] %vm491, %v1550
    %1594 = vst.msk [vmem:[%s1203 + $0x28] sm:$0xff] %vm491, %v1552
    %1595 = vst.msk [vmem:[%s1203 + $0x30] sm:$0xff] %vm491, %v1554
    %1596 = vst.msk [vmem:[%s1203 + $0x38] sm:$0xff] %vm491, %v1556
    %1597 = vst.msk [vmem:[%s1203 + $0x40] sm:$0xff] %vm491, %v1558
    %1598 = vst.msk [vmem:[%s1203 + $0x48] sm:$0xff] %vm491, %v1560
    %1599 = vst.msk [vmem:[%s1203 + $0x50] sm:$0xff] %vm491, %v1562
    %1600 = vst.msk [vmem:[%s1203 + $0x58] sm:$0xff] %vm491, %v1564
    %1601 = vst.msk [vmem:[%s1203 + $0x60] sm:$0xff] %vm491, %v1566
    %1602 = vst.msk [vmem:[%s1203 + $0x68] sm:$0xff] %vm491, %v1568
    %1603 = vst.msk [vmem:[%s1203 + $0x70] sm:$0xff] %vm491, %v1570
    %1604 = vst.msk [vmem:[%s1203 + $0x78] sm:$0xff] %vm491, %v1572
    %v1605 = vld [vmem:[%s1476 + $0x1] sm:$0xff]
    %v1606 = vld [vmem:[%s1476 + $0x9] sm:$0xff]
    %v1607 = vld [vmem:[%s1476 + $0x19] sm:$0xff]
    %v1608 = vld [vmem:[%s1476 + $0x21] sm:$0xff]
    %v1609 = vld [vmem:[%s1476 + $0x31] sm:$0xff]
    %v1610 = vld [vmem:[%s1476 + $0x39] sm:$0xff]
    %v1611 = vld [vmem:[%s1476 + $0x49] sm:$0xff]
    %v1612 = vld [vmem:[%s1476 + $0x51] sm:$0xff]
    %v1613 = vld [vmem:[%s1476 + $0x61] sm:$0xff]
    %v1614 = vld [vmem:[%s1476 + $0x69] sm:$0xff]
    %v1615 = vld [vmem:[%s1476 + $0x79] sm:$0xff]
    %v1616 = vld [vmem:[%s1476 + $0x81] sm:$0xff]
    %v1617 = vld [vmem:[%s1476 + $0x91] sm:$0xff]
    %v1618 = vld [vmem:[%s1476 + $0x99] sm:$0xff]
    %v1619 = vld [vmem:[%s1476 + $0xa9] sm:$0xff]
    %v1620 = vld [vmem:[%s1476 + $0xb1] sm:$0xff]
    %v1621 = vld [vmem:[%s1476 + $0xc1] sm:$0xff]
    %v1622 = vld [vmem:[%s1476 + $0xc9] sm:$0xff]
    %v1623 = vld [vmem:[%s1476 + $0xd9] sm:$0xff]
    %v1624 = vld [vmem:[%s1476 + $0xe1] sm:$0xff]
    %v1625 = vld [vmem:[%s1476 + $0xf1] sm:$0xff]
    %v1626 = vld [vmem:[%s1476 + $0xf9] sm:$0xff]
    %v1627 = vld [vmem:[%s1476 + $0x109] sm:$0xff]
    %v1628 = vld [vmem:[%s1476 + $0x111] sm:$0xff]
    %v1629 = vld [vmem:[%s1476 + $0x121] sm:$0xff]
    %v1630 = vld [vmem:[%s1476 + $0x129] sm:$0xff]
    %v1631 = vld [vmem:[%s1476 + $0x139] sm:$0xff]
    %v1632 = vld [vmem:[%s1476 + $0x141] sm:$0xff]
    %v1633 = vld [vmem:[%s1476 + $0x151] sm:$0xff]
    %v1634 = vld [vmem:[%s1476 + $0x159] sm:$0xff]
    %v1635 = vld [vmem:[%s1476 + $0x169] sm:$0xff]
    %v1636 = vld [vmem:[%s1476 + $0x171] sm:$0xff]
    %v1637 = vpack.c.bf16 %v1606, %v1605
    %v1638 = vpack.c.bf16 %v1608, %v1607
    %v1639 = vpack.c.bf16 %v1610, %v1609
    %v1640 = vpack.c.bf16 %v1612, %v1611
    %v1641 = vpack.c.bf16 %v1614, %v1613
    %v1642 = vpack.c.bf16 %v1616, %v1615
    %v1643 = vpack.c.bf16 %v1618, %v1617
    %v1644 = vpack.c.bf16 %v1620, %v1619
    %v1645 = vpack.c.bf16 %v1622, %v1621
    %v1646 = vpack.c.bf16 %v1624, %v1623
    %v1647 = vpack.c.bf16 %v1626, %v1625
    %v1648 = vpack.c.bf16 %v1628, %v1627
    %v1649 = vpack.c.bf16 %v1630, %v1629
    %v1650 = vpack.c.bf16 %v1632, %v1631
    %v1651 = vpack.c.bf16 %v1634, %v1633
    %v1652 = vpack.c.bf16 %v1636, %v1635
    %1669 = vrot.lane.b32.xlu0 %v1637, 24
    %v1670 = vpop.permute.xlu0 %1669
    %1671 = vrot.lane.b32.xlu0 %v1638, 24
    %v1672 = vpop.permute.xlu0 %1671
    %1673 = vrot.lane.b32.xlu0 %v1639, 24
    %v1674 = vpop.permute.xlu0 %1673
    %1675 = vrot.lane.b32.xlu0 %v1640, 24
    %v1676 = vpop.permute.xlu0 %1675
    %1677 = vrot.lane.b32.xlu0 %v1641, 24
    %v1678 = vpop.permute.xlu0 %1677
    %1679 = vrot.lane.b32.xlu0 %v1642, 24
    %v1680 = vpop.permute.xlu0 %1679
    %1681 = vrot.lane.b32.xlu0 %v1643, 24
    %v1682 = vpop.permute.xlu0 %1681
    %1683 = vrot.lane.b32.xlu0 %v1644, 24
    %v1684 = vpop.permute.xlu0 %1683
    %1685 = vrot.lane.b32.xlu0 %v1645, 24
    %v1686 = vpop.permute.xlu0 %1685
    %1687 = vrot.lane.b32.xlu0 %v1646, 24
    %v1688 = vpop.permute.xlu0 %1687
    %1689 = vrot.lane.b32.xlu0 %v1647, 24
    %v1690 = vpop.permute.xlu0 %1689
    %1691 = vrot.lane.b32.xlu0 %v1648, 24
    %v1692 = vpop.permute.xlu0 %1691
    %1693 = vrot.lane.b32.xlu0 %v1649, 24
    %v1694 = vpop.permute.xlu0 %1693
    %1695 = vrot.lane.b32.xlu0 %v1650, 24
    %v1696 = vpop.permute.xlu0 %1695
    %1697 = vrot.lane.b32.xlu0 %v1651, 24
    %v1698 = vpop.permute.xlu0 %1697
    %1699 = vrot.lane.b32.xlu0 %v1652, 24
    %v1700 = vpop.permute.xlu0 %1699
    %1717 = vst.msk [vmem:[%s1203] sm:$0xff] %vm620, %v1670
    %1718 = vst.msk [vmem:[%s1203 + $0x8] sm:$0xff] %vm620, %v1672
    %1719 = vst.msk [vmem:[%s1203 + $0x10] sm:$0xff] %vm620, %v1674
    %1720 = vst.msk [vmem:[%s1203 + $0x18] sm:$0xff] %vm620, %v1676
    %1721 = vst.msk [vmem:[%s1203 + $0x20] sm:$0xff] %vm620, %v1678
    %1722 = vst.msk [vmem:[%s1203 + $0x28] sm:$0xff] %vm620, %v1680
    %1723 = vst.msk [vmem:[%s1203 + $0x30] sm:$0xff] %vm620, %v1682
    %1724 = vst.msk [vmem:[%s1203 + $0x38] sm:$0xff] %vm620, %v1684
    %1725 = vst.msk [vmem:[%s1203 + $0x40] sm:$0xff] %vm620, %v1686
    %1726 = vst.msk [vmem:[%s1203 + $0x48] sm:$0xff] %vm620, %v1688
    %1727 = vst.msk [vmem:[%s1203 + $0x50] sm:$0xff] %vm620, %v1690
    %1728 = vst.msk [vmem:[%s1203 + $0x58] sm:$0xff] %vm620, %v1692
    %1729 = vst.msk [vmem:[%s1203 + $0x60] sm:$0xff] %vm620, %v1694
    %1730 = vst.msk [vmem:[%s1203 + $0x68] sm:$0xff] %vm620, %v1696
    %1731 = vst.msk [vmem:[%s1203 + $0x70] sm:$0xff] %vm620, %v1698
    %1732 = vst.msk [vmem:[%s1203 + $0x78] sm:$0xff] %vm620, %v1700
    %v1733 = vld [vmem:[%s1476 + $0x2] sm:$0xff]
    %v1734 = vld [vmem:[%s1476 + $0xa] sm:$0xff]
    %v1735 = vld [vmem:[%s1476 + $0x1a] sm:$0xff]
    %v1736 = vld [vmem:[%s1476 + $0x22] sm:$0xff]
    %v1737 = vld [vmem:[%s1476 + $0x32] sm:$0xff]
    %v1738 = vld [vmem:[%s1476 + $0x3a] sm:$0xff]
    %v1739 = vld [vmem:[%s1476 + $0x4a] sm:$0xff]
    %v1740 = vld [vmem:[%s1476 + $0x52] sm:$0xff]
    %v1741 = vld [vmem:[%s1476 + $0x62] sm:$0xff]
    %v1742 = vld [vmem:[%s1476 + $0x6a] sm:$0xff]
    %v1743 = vld [vmem:[%s1476 + $0x7a] sm:$0xff]
    %v1744 = vld [vmem:[%s1476 + $0x82] sm:$0xff]
    %v1745 = vld [vmem:[%s1476 + $0x92] sm:$0xff]
    %v1746 = vld [vmem:[%s1476 + $0x9a] sm:$0xff]
    %v1747 = vld [vmem:[%s1476 + $0xaa] sm:$0xff]
    %v1748 = vld [vmem:[%s1476 + $0xb2] sm:$0xff]
    %v1749 = vld [vmem:[%s1476 + $0xc2] sm:$0xff]
    %v1750 = vld [vmem:[%s1476 + $0xca] sm:$0xff]
    %v1751 = vld [vmem:[%s1476 + $0xda] sm:$0xff]
    %v1752 = vld [vmem:[%s1476 + $0xe2] sm:$0xff]
    %v1753 = vld [vmem:[%s1476 + $0xf2] sm:$0xff]
    %v1754 = vld [vmem:[%s1476 + $0xfa] sm:$0xff]
    %v1755 = vld [vmem:[%s1476 + $0x10a] sm:$0xff]
    %v1756 = vld [vmem:[%s1476 + $0x112] sm:$0xff]
    %v1757 = vld [vmem:[%s1476 + $0x122] sm:$0xff]
    %v1758 = vld [vmem:[%s1476 + $0x12a] sm:$0xff]
    %v1759 = vld [vmem:[%s1476 + $0x13a] sm:$0xff]
    %v1760 = vld [vmem:[%s1476 + $0x142] sm:$0xff]
    %v1761 = vld [vmem:[%s1476 + $0x152] sm:$0xff]
    %v1762 = vld [vmem:[%s1476 + $0x15a] sm:$0xff]
    %v1763 = vld [vmem:[%s1476 + $0x16a] sm:$0xff]
    %v1764 = vld [vmem:[%s1476 + $0x172] sm:$0xff]
    %v1765 = vpack.c.bf16 %v1734, %v1733
    %v1766 = vpack.c.bf16 %v1736, %v1735
    %v1767 = vpack.c.bf16 %v1738, %v1737
    %v1768 = vpack.c.bf16 %v1740, %v1739
    %v1769 = vpack.c.bf16 %v1742, %v1741
    %v1770 = vpack.c.bf16 %v1744, %v1743
    %v1771 = vpack.c.bf16 %v1746, %v1745
    %v1772 = vpack.c.bf16 %v1748, %v1747
    %v1773 = vpack.c.bf16 %v1750, %v1749
    %v1774 = vpack.c.bf16 %v1752, %v1751
    %v1775 = vpack.c.bf16 %v1754, %v1753
    %v1776 = vpack.c.bf16 %v1756, %v1755
    %v1777 = vpack.c.bf16 %v1758, %v1757
    %v1778 = vpack.c.bf16 %v1760, %v1759
    %v1779 = vpack.c.bf16 %v1762, %v1761
    %v1780 = vpack.c.bf16 %v1764, %v1763
    %1797 = vrot.lane.b32.xlu0 %v1765, 30
    %v1798 = vpop.permute.xlu0 %1797
    %1799 = vrot.lane.b32.xlu0 %v1766, 30
    %v1800 = vpop.permute.xlu0 %1799
    %1801 = vrot.lane.b32.xlu0 %v1767, 30
    %v1802 = vpop.permute.xlu0 %1801
    %1803 = vrot.lane.b32.xlu0 %v1768, 30
    %v1804 = vpop.permute.xlu0 %1803
    %1805 = vrot.lane.b32.xlu0 %v1769, 30
    %v1806 = vpop.permute.xlu0 %1805
    %1807 = vrot.lane.b32.xlu0 %v1770, 30
    %v1808 = vpop.permute.xlu0 %1807
    %1809 = vrot.lane.b32.xlu0 %v1771, 30
    %v1810 = vpop.permute.xlu0 %1809
    %1811 = vrot.lane.b32.xlu0 %v1772, 30
    %v1812 = vpop.permute.xlu0 %1811
    %1813 = vrot.lane.b32.xlu0 %v1773, 30
    %v1814 = vpop.permute.xlu0 %1813
    %1815 = vrot.lane.b32.xlu0 %v1774, 30
    %v1816 = vpop.permute.xlu0 %1815
    %1817 = vrot.lane.b32.xlu0 %v1775, 30
    %v1818 = vpop.permute.xlu0 %1817
    %1819 = vrot.lane.b32.xlu0 %v1776, 30
    %v1820 = vpop.permute.xlu0 %1819
    %1821 = vrot.lane.b32.xlu0 %v1777, 30
    %v1822 = vpop.permute.xlu0 %1821
    %1823 = vrot.lane.b32.xlu0 %v1778, 30
    %v1824 = vpop.permute.xlu0 %1823
    %1825 = vrot.lane.b32.xlu0 %v1779, 30
    %v1826 = vpop.permute.xlu0 %1825
    %1827 = vrot.lane.b32.xlu0 %v1780, 30
    %v1828 = vpop.permute.xlu0 %1827
    %1845 = vst.msk [vmem:[%s1203] sm:$0xff] %vm749, %v1798
    %1846 = vst.msk [vmem:[%s1203 + $0x8] sm:$0xff] %vm749, %v1800
    %1847 = vst.msk [vmem:[%s1203 + $0x10] sm:$0xff] %vm749, %v1802
    %1848 = vst.msk [vmem:[%s1203 + $0x18] sm:$0xff] %vm749, %v1804
    %1849 = vst.msk [vmem:[%s1203 + $0x20] sm:$0xff] %vm749, %v1806
    %1850 = vst.msk [vmem:[%s1203 + $0x28] sm:$0xff] %vm749, %v1808
    %1851 = vst.msk [vmem:[%s1203 + $0x30] sm:$0xff] %vm749, %v1810
    %1852 = vst.msk [vmem:[%s1203 + $0x38] sm:$0xff] %vm749, %v1812
    %1853 = vst.msk [vmem:[%s1203 + $0x40] sm:$0xff] %vm749, %v1814
    %1854 = vst.msk [vmem:[%s1203 + $0x48] sm:$0xff] %vm749, %v1816
    %1855 = vst.msk [vmem:[%s1203 + $0x50] sm:$0xff] %vm749, %v1818
    %1856 = vst.msk [vmem:[%s1203 + $0x58] sm:$0xff] %vm749, %v1820
    %1857 = vst.msk [vmem:[%s1203 + $0x60] sm:$0xff] %vm749, %v1822
    %1858 = vst.msk [vmem:[%s1203 + $0x68] sm:$0xff] %vm749, %v1824
    %1859 = vst.msk [vmem:[%s1203 + $0x70] sm:$0xff] %vm749, %v1826
    %1860 = vst.msk [vmem:[%s1203 + $0x78] sm:$0xff] %vm749, %v1828
    %s1861 = scalar_lea.vmem %s0, 480
    %v1862 = vld [vmem:[%s1861] sm:$0xff]
    %v1863 = vld [vmem:[%s1861 + $0x8] sm:$0xff]
    %v1864 = vld [vmem:[%s1861 + $0x18] sm:$0xff]
    %v1865 = vld [vmem:[%s1861 + $0x20] sm:$0xff]
    %v1866 = vld [vmem:[%s1861 + $0x30] sm:$0xff]
    %v1867 = vld [vmem:[%s1861 + $0x38] sm:$0xff]
    %v1868 = vld [vmem:[%s1861 + $0x48] sm:$0xff]
    %v1869 = vld [vmem:[%s1861 + $0x50] sm:$0xff]
    %v1870 = vld [vmem:[%s1861 + $0x60] sm:$0xff]
    %v1871 = vld [vmem:[%s1861 + $0x68] sm:$0xff]
    %v1872 = vld [vmem:[%s1861 + $0x78] sm:$0xff]
    %v1873 = vld [vmem:[%s1861 + $0x80] sm:$0xff]
    %v1874 = vld [vmem:[%s1861 + $0x90] sm:$0xff]
    %v1875 = vld [vmem:[%s1861 + $0x98] sm:$0xff]
    %v1876 = vld [vmem:[%s1861 + $0xa8] sm:$0xff]
    %v1877 = vld [vmem:[%s1861 + $0xb0] sm:$0xff]
    %v1878 = vld [vmem:[%s1861 + $0xc0] sm:$0xff]
    %v1879 = vld [vmem:[%s1861 + $0xc8] sm:$0xff]
    %v1880 = vld [vmem:[%s1861 + $0xd8] sm:$0xff]
    %v1881 = vld [vmem:[%s1861 + $0xe0] sm:$0xff]
    %v1882 = vld [vmem:[%s1861 + $0xf0] sm:$0xff]
    %v1883 = vld [vmem:[%s1861 + $0xf8] sm:$0xff]
    %v1884 = vld [vmem:[%s1861 + $0x108] sm:$0xff]
    %v1885 = vld [vmem:[%s1861 + $0x110] sm:$0xff]
    %v1886 = vld [vmem:[%s1861 + $0x120] sm:$0xff]
    %v1887 = vld [vmem:[%s1861 + $0x128] sm:$0xff]
    %v1888 = vld [vmem:[%s1861 + $0x138] sm:$0xff]
    %v1889 = vld [vmem:[%s1861 + $0x140] sm:$0xff]
    %v1890 = vld [vmem:[%s1861 + $0x150] sm:$0xff]
    %v1891 = vld [vmem:[%s1861 + $0x158] sm:$0xff]
    %v1892 = vld [vmem:[%s1861 + $0x168] sm:$0xff]
    %v1893 = vld [vmem:[%s1861 + $0x170] sm:$0xff]
    %v1894 = vpack.c.bf16 %v1863, %v1862
    %v1895 = vpack.c.bf16 %v1865, %v1864
    %v1896 = vpack.c.bf16 %v1867, %v1866
    %v1897 = vpack.c.bf16 %v1869, %v1868
    %v1898 = vpack.c.bf16 %v1871, %v1870
    %v1899 = vpack.c.bf16 %v1873, %v1872
    %v1900 = vpack.c.bf16 %v1875, %v1874
    %v1901 = vpack.c.bf16 %v1877, %v1876
    %v1902 = vpack.c.bf16 %v1879, %v1878
    %v1903 = vpack.c.bf16 %v1881, %v1880
    %v1904 = vpack.c.bf16 %v1883, %v1882
    %v1905 = vpack.c.bf16 %v1885, %v1884
    %v1906 = vpack.c.bf16 %v1887, %v1886
    %v1907 = vpack.c.bf16 %v1889, %v1888
    %v1908 = vpack.c.bf16 %v1891, %v1890
    %v1909 = vpack.c.bf16 %v1893, %v1892
    %1926 = vrot.lane.b32.xlu0 %v1894, 36
    %v1927 = vpop.permute.xlu0 %1926
    %1928 = vrot.lane.b32.xlu0 %v1895, 36
    %v1929 = vpop.permute.xlu0 %1928
    %1930 = vrot.lane.b32.xlu0 %v1896, 36
    %v1931 = vpop.permute.xlu0 %1930
    %1932 = vrot.lane.b32.xlu0 %v1897, 36
    %v1933 = vpop.permute.xlu0 %1932
    %1934 = vrot.lane.b32.xlu0 %v1898, 36
    %v1935 = vpop.permute.xlu0 %1934
    %1936 = vrot.lane.b32.xlu0 %v1899, 36
    %v1937 = vpop.permute.xlu0 %1936
    %1938 = vrot.lane.b32.xlu0 %v1900, 36
    %v1939 = vpop.permute.xlu0 %1938
    %1940 = vrot.lane.b32.xlu0 %v1901, 36
    %v1941 = vpop.permute.xlu0 %1940
    %1942 = vrot.lane.b32.xlu0 %v1902, 36
    %v1943 = vpop.permute.xlu0 %1942
    %1944 = vrot.lane.b32.xlu0 %v1903, 36
    %v1945 = vpop.permute.xlu0 %1944
    %1946 = vrot.lane.b32.xlu0 %v1904, 36
    %v1947 = vpop.permute.xlu0 %1946
    %1948 = vrot.lane.b32.xlu0 %v1905, 36
    %v1949 = vpop.permute.xlu0 %1948
    %1950 = vrot.lane.b32.xlu0 %v1906, 36
    %v1951 = vpop.permute.xlu0 %1950
    %1952 = vrot.lane.b32.xlu0 %v1907, 36
    %v1953 = vpop.permute.xlu0 %1952
    %1954 = vrot.lane.b32.xlu0 %v1908, 36
    %v1955 = vpop.permute.xlu0 %1954
    %1956 = vrot.lane.b32.xlu0 %v1909, 36
    %v1957 = vpop.permute.xlu0 %1956
    %1974 = vst.msk [vmem:[%s1203] sm:$0xff] %vm879, %v1927
    %1975 = vst.msk [vmem:[%s1203 + $0x8] sm:$0xff] %vm879, %v1929
    %1976 = vst.msk [vmem:[%s1203 + $0x10] sm:$0xff] %vm879, %v1931
    %1977 = vst.msk [vmem:[%s1203 + $0x18] sm:$0xff] %vm879, %v1933
    %1978 = vst.msk [vmem:[%s1203 + $0x20] sm:$0xff] %vm879, %v1935
    %1979 = vst.msk [vmem:[%s1203 + $0x28] sm:$0xff] %vm879, %v1937
    %1980 = vst.msk [vmem:[%s1203 + $0x30] sm:$0xff] %vm879, %v1939
    %1981 = vst.msk [vmem:[%s1203 + $0x38] sm:$0xff] %vm879, %v1941
    %1982 = vst.msk [vmem:[%s1203 + $0x40] sm:$0xff] %vm879, %v1943
    %1983 = vst.msk [vmem:[%s1203 + $0x48] sm:$0xff] %vm879, %v1945
    %1984 = vst.msk [vmem:[%s1203 + $0x50] sm:$0xff] %vm879, %v1947
    %1985 = vst.msk [vmem:[%s1203 + $0x58] sm:$0xff] %vm879, %v1949
    %1986 = vst.msk [vmem:[%s1203 + $0x60] sm:$0xff] %vm879, %v1951
    %1987 = vst.msk [vmem:[%s1203 + $0x68] sm:$0xff] %vm879, %v1953
    %1988 = vst.msk [vmem:[%s1203 + $0x70] sm:$0xff] %vm879, %v1955
    %1989 = vst.msk [vmem:[%s1203 + $0x78] sm:$0xff] %vm879, %v1957
    %v1990 = vld [vmem:[%s1861 + $0x1] sm:$0xff]
    %v1991 = vld [vmem:[%s1861 + $0x9] sm:$0xff]
    %v1992 = vld [vmem:[%s1861 + $0x19] sm:$0xff]
    %v1993 = vld [vmem:[%s1861 + $0x21] sm:$0xff]
    %v1994 = vld [vmem:[%s1861 + $0x31] sm:$0xff]
    %v1995 = vld [vmem:[%s1861 + $0x39] sm:$0xff]
    %v1996 = vld [vmem:[%s1861 + $0x49] sm:$0xff]
    %v1997 = vld [vmem:[%s1861 + $0x51] sm:$0xff]
    %v1998 = vld [vmem:[%s1861 + $0x61] sm:$0xff]
    %v1999 = vld [vmem:[%s1861 + $0x69] sm:$0xff]
    %v2000 = vld [vmem:[%s1861 + $0x79] sm:$0xff]
    %v2001 = vld [vmem:[%s1861 + $0x81] sm:$0xff]
    %v2002 = vld [vmem:[%s1861 + $0x91] sm:$0xff]
    %v2003 = vld [vmem:[%s1861 + $0x99] sm:$0xff]
    %v2004 = vld [vmem:[%s1861 + $0xa9] sm:$0xff]
    %v2005 = vld [vmem:[%s1861 + $0xb1] sm:$0xff]
    %v2006 = vld [vmem:[%s1861 + $0xc1] sm:$0xff]
    %v2007 = vld [vmem:[%s1861 + $0xc9] sm:$0xff]
    %v2008 = vld [vmem:[%s1861 + $0xd9] sm:$0xff]
    %v2009 = vld [vmem:[%s1861 + $0xe1] sm:$0xff]
    %v2010 = vld [vmem:[%s1861 + $0xf1] sm:$0xff]
    %v2011 = vld [vmem:[%s1861 + $0xf9] sm:$0xff]
    %v2012 = vld [vmem:[%s1861 + $0x109] sm:$0xff]
    %v2013 = vld [vmem:[%s1861 + $0x111] sm:$0xff]
    %v2014 = vld [vmem:[%s1861 + $0x121] sm:$0xff]
    %v2015 = vld [vmem:[%s1861 + $0x129] sm:$0xff]
    %v2016 = vld [vmem:[%s1861 + $0x139] sm:$0xff]
    %v2017 = vld [vmem:[%s1861 + $0x141] sm:$0xff]
    %v2018 = vld [vmem:[%s1861 + $0x151] sm:$0xff]
    %v2019 = vld [vmem:[%s1861 + $0x159] sm:$0xff]
    %v2020 = vld [vmem:[%s1861 + $0x169] sm:$0xff]
    %v2021 = vld [vmem:[%s1861 + $0x171] sm:$0xff]
    %v2022 = vpack.c.bf16 %v1991, %v1990
    %v2023 = vpack.c.bf16 %v1993, %v1992
    %v2024 = vpack.c.bf16 %v1995, %v1994
    %v2025 = vpack.c.bf16 %v1997, %v1996
    %v2026 = vpack.c.bf16 %v1999, %v1998
    %v2027 = vpack.c.bf16 %v2001, %v2000
    %v2028 = vpack.c.bf16 %v2003, %v2002
    %v2029 = vpack.c.bf16 %v2005, %v2004
    %v2030 = vpack.c.bf16 %v2007, %v2006
    %v2031 = vpack.c.bf16 %v2009, %v2008
    %v2032 = vpack.c.bf16 %v2011, %v2010
    %v2033 = vpack.c.bf16 %v2013, %v2012
    %v2034 = vpack.c.bf16 %v2015, %v2014
    %v2035 = vpack.c.bf16 %v2017, %v2016
    %v2036 = vpack.c.bf16 %v2019, %v2018
    %v2037 = vpack.c.bf16 %v2021, %v2020
    %2054 = vrot.lane.b32.xlu0 %v2022, 42
    %v2055 = vpop.permute.xlu0 %2054
    %2056 = vrot.lane.b32.xlu0 %v2023, 42
    %v2057 = vpop.permute.xlu0 %2056
    %2058 = vrot.lane.b32.xlu0 %v2024, 42
    %v2059 = vpop.permute.xlu0 %2058
    %2060 = vrot.lane.b32.xlu0 %v2025, 42
    %v2061 = vpop.permute.xlu0 %2060
    %2062 = vrot.lane.b32.xlu0 %v2026, 42
    %v2063 = vpop.permute.xlu0 %2062
    %2064 = vrot.lane.b32.xlu0 %v2027, 42
    %v2065 = vpop.permute.xlu0 %2064
    %2066 = vrot.lane.b32.xlu0 %v2028, 42
    %v2067 = vpop.permute.xlu0 %2066
    %2068 = vrot.lane.b32.xlu0 %v2029, 42
    %v2069 = vpop.permute.xlu0 %2068
    %2070 = vrot.lane.b32.xlu0 %v2030, 42
    %v2071 = vpop.permute.xlu0 %2070
    %2072 = vrot.lane.b32.xlu0 %v2031, 42
    %v2073 = vpop.permute.xlu0 %2072
    %2074 = vrot.lane.b32.xlu0 %v2032, 42
    %v2075 = vpop.permute.xlu0 %2074
    %2076 = vrot.lane.b32.xlu0 %v2033, 42
    %v2077 = vpop.permute.xlu0 %2076
    %2078 = vrot.lane.b32.xlu0 %v2034, 42
    %v2079 = vpop.permute.xlu0 %2078
    %2080 = vrot.lane.b32.xlu0 %v2035, 42
    %v2081 = vpop.permute.xlu0 %2080
    %2082 = vrot.lane.b32.xlu0 %v2036, 42
    %v2083 = vpop.permute.xlu0 %2082
    %2084 = vrot.lane.b32.xlu0 %v2037, 42
    %v2085 = vpop.permute.xlu0 %2084
    %2102 = vst.msk [vmem:[%s1203] sm:$0xff] %vm1008, %v2055
    %2103 = vst.msk [vmem:[%s1203 + $0x8] sm:$0xff] %vm1008, %v2057
    %2104 = vst.msk [vmem:[%s1203 + $0x10] sm:$0xff] %vm1008, %v2059
    %2105 = vst.msk [vmem:[%s1203 + $0x18] sm:$0xff] %vm1008, %v2061
    %2106 = vst.msk [vmem:[%s1203 + $0x20] sm:$0xff] %vm1008, %v2063
    %2107 = vst.msk [vmem:[%s1203 + $0x28] sm:$0xff] %vm1008, %v2065
    %2108 = vst.msk [vmem:[%s1203 + $0x30] sm:$0xff] %vm1008, %v2067
    %2109 = vst.msk [vmem:[%s1203 + $0x38] sm:$0xff] %vm1008, %v2069
    %2110 = vst.msk [vmem:[%s1203 + $0x40] sm:$0xff] %vm1008, %v2071
    %2111 = vst.msk [vmem:[%s1203 + $0x48] sm:$0xff] %vm1008, %v2073
    %2112 = vst.msk [vmem:[%s1203 + $0x50] sm:$0xff] %vm1008, %v2075
    %2113 = vst.msk [vmem:[%s1203 + $0x58] sm:$0xff] %vm1008, %v2077
    %2114 = vst.msk [vmem:[%s1203 + $0x60] sm:$0xff] %vm1008, %v2079
    %2115 = vst.msk [vmem:[%s1203 + $0x68] sm:$0xff] %vm1008, %v2081
    %2116 = vst.msk [vmem:[%s1203 + $0x70] sm:$0xff] %vm1008, %v2083
    %2117 = vst.msk [vmem:[%s1203 + $0x78] sm:$0xff] %vm1008, %v2085
    %v2118 = vld [vmem:[%s1861 + $0x2] sm:$0xff]
    %v2119 = vld [vmem:[%s1861 + $0xa] sm:$0xff]
    %v2120 = vld [vmem:[%s1861 + $0x1a] sm:$0xff]
    %v2121 = vld [vmem:[%s1861 + $0x22] sm:$0xff]
    %v2122 = vld [vmem:[%s1861 + $0x32] sm:$0xff]
    %v2123 = vld [vmem:[%s1861 + $0x3a] sm:$0xff]
    %v2124 = vld [vmem:[%s1861 + $0x4a] sm:$0xff]
    %v2125 = vld [vmem:[%s1861 + $0x52] sm:$0xff]
    %v2126 = vld [vmem:[%s1861 + $0x62] sm:$0xff]
    %v2127 = vld [vmem:[%s1861 + $0x6a] sm:$0xff]
    %v2128 = vld [vmem:[%s1861 + $0x7a] sm:$0xff]
    %v2129 = vld [vmem:[%s1861 + $0x82] sm:$0xff]
    %v2130 = vld [vmem:[%s1861 + $0x92] sm:$0xff]
    %v2131 = vld [vmem:[%s1861 + $0x9a] sm:$0xff]
    %v2132 = vld [vmem:[%s1861 + $0xaa] sm:$0xff]
    %v2133 = vld [vmem:[%s1861 + $0xb2] sm:$0xff]
    %v2134 = vld [vmem:[%s1861 + $0xc2] sm:$0xff]
    %v2135 = vld [vmem:[%s1861 + $0xca] sm:$0xff]
    %v2136 = vld [vmem:[%s1861 + $0xda] sm:$0xff]
    %v2137 = vld [vmem:[%s1861 + $0xe2] sm:$0xff]
    %v2138 = vld [vmem:[%s1861 + $0xf2] sm:$0xff]
    %v2139 = vld [vmem:[%s1861 + $0xfa] sm:$0xff]
    %v2140 = vld [vmem:[%s1861 + $0x10a] sm:$0xff]
    %v2141 = vld [vmem:[%s1861 + $0x112] sm:$0xff]
    %v2142 = vld [vmem:[%s1861 + $0x122] sm:$0xff]
    %v2143 = vld [vmem:[%s1861 + $0x12a] sm:$0xff]
    %v2144 = vld [vmem:[%s1861 + $0x13a] sm:$0xff]
    %v2145 = vld [vmem:[%s1861 + $0x142] sm:$0xff]
    %v2146 = vld [vmem:[%s1861 + $0x152] sm:$0xff]
    %v2147 = vld [vmem:[%s1861 + $0x15a] sm:$0xff]
    %v2148 = vld [vmem:[%s1861 + $0x16a] sm:$0xff]
    %v2149 = vld [vmem:[%s1861 + $0x172] sm:$0xff]
    %v2150 = vpack.c.bf16 %v2119, %v2118
    %v2151 = vpack.c.bf16 %v2121, %v2120
    %v2152 = vpack.c.bf16 %v2123, %v2122
    %v2153 = vpack.c.bf16 %v2125, %v2124
    %v2154 = vpack.c.bf16 %v2127, %v2126
    %v2155 = vpack.c.bf16 %v2129, %v2128
    %v2156 = vpack.c.bf16 %v2131, %v2130
    %v2157 = vpack.c.bf16 %v2133, %v2132
    %v2158 = vpack.c.bf16 %v2135, %v2134
    %v2159 = vpack.c.bf16 %v2137, %v2136
    %v2160 = vpack.c.bf16 %v2139, %v2138
    %v2161 = vpack.c.bf16 %v2141, %v2140
    %v2162 = vpack.c.bf16 %v2143, %v2142
    %v2163 = vpack.c.bf16 %v2145, %v2144
    %v2164 = vpack.c.bf16 %v2147, %v2146
    %v2165 = vpack.c.bf16 %v2149, %v2148
    %2182 = vrot.lane.b32.xlu0 %v2150, 48
    %v2183 = vpop.permute.xlu0 %2182
    %2184 = vrot.lane.b32.xlu0 %v2151, 48
    %v2185 = vpop.permute.xlu0 %2184
    %2186 = vrot.lane.b32.xlu0 %v2152, 48
    %v2187 = vpop.permute.xlu0 %2186
    %2188 = vrot.lane.b32.xlu0 %v2153, 48
    %v2189 = vpop.permute.xlu0 %2188
    %2190 = vrot.lane.b32.xlu0 %v2154, 48
    %v2191 = vpop.permute.xlu0 %2190
    %2192 = vrot.lane.b32.xlu0 %v2155, 48
    %v2193 = vpop.permute.xlu0 %2192
    %2194 = vrot.lane.b32.xlu0 %v2156, 48
    %v2195 = vpop.permute.xlu0 %2194
    %2196 = vrot.lane.b32.xlu0 %v2157, 48
    %v2197 = vpop.permute.xlu0 %2196
    %2198 = vrot.lane.b32.xlu0 %v2158, 48
    %v2199 = vpop.permute.xlu0 %2198
    %2200 = vrot.lane.b32.xlu0 %v2159, 48
    %v2201 = vpop.permute.xlu0 %2200
    %2202 = vrot.lane.b32.xlu0 %v2160, 48
    %v2203 = vpop.permute.xlu0 %2202
    %2204 = vrot.lane.b32.xlu0 %v2161, 48
    %v2205 = vpop.permute.xlu0 %2204
    %2206 = vrot.lane.b32.xlu0 %v2162, 48
    %v2207 = vpop.permute.xlu0 %2206
    %2208 = vrot.lane.b32.xlu0 %v2163, 48
    %v2209 = vpop.permute.xlu0 %2208
    %2210 = vrot.lane.b32.xlu0 %v2164, 48
    %v2211 = vpop.permute.xlu0 %2210
    %2212 = vrot.lane.b32.xlu0 %v2165, 48
    %v2213 = vpop.permute.xlu0 %2212
    %2230 = vst.msk [vmem:[%s1203] sm:$0xff] %vm1137, %v2183
    %2231 = vst.msk [vmem:[%s1203 + $0x8] sm:$0xff] %vm1137, %v2185
    %2232 = vst.msk [vmem:[%s1203 + $0x10] sm:$0xff] %vm1137, %v2187
    %2233 = vst.msk [vmem:[%s1203 + $0x18] sm:$0xff] %vm1137, %v2189
    %2234 = vst.msk [vmem:[%s1203 + $0x20] sm:$0xff] %vm1137, %v2191
    %2235 = vst.msk [vmem:[%s1203 + $0x28] sm:$0xff] %vm1137, %v2193
    %2236 = vst.msk [vmem:[%s1203 + $0x30] sm:$0xff] %vm1137, %v2195
    %2237 = vst.msk [vmem:[%s1203 + $0x38] sm:$0xff] %vm1137, %v2197
    %2238 = vst.msk [vmem:[%s1203 + $0x40] sm:$0xff] %vm1137, %v2199
    %2239 = vst.msk [vmem:[%s1203 + $0x48] sm:$0xff] %vm1137, %v2201
    %2240 = vst.msk [vmem:[%s1203 + $0x50] sm:$0xff] %vm1137, %v2203
    %2241 = vst.msk [vmem:[%s1203 + $0x58] sm:$0xff] %vm1137, %v2205
    %2242 = vst.msk [vmem:[%s1203 + $0x60] sm:$0xff] %vm1137, %v2207
    %2243 = vst.msk [vmem:[%s1203 + $0x68] sm:$0xff] %vm1137, %v2209
    %2244 = vst.msk [vmem:[%s1203 + $0x70] sm:$0xff] %vm1137, %v2211
    %2245 = vst.msk [vmem:[%s1203 + $0x78] sm:$0xff] %vm1137, %v2213
    %v2246 = vld [vmem:[#allocation2] sm:$0xff]
    %v2247 = vld [vmem:[#allocation2 + $0x8] sm:$0xff]
    %v2248 = vld [vmem:[#allocation2 + $0x10] sm:$0xff]
    %v2249 = vld [vmem:[#allocation2 + $0x18] sm:$0xff]
    %v2250 = vld [vmem:[#allocation2 + $0x20] sm:$0xff]
    %v2251 = vld [vmem:[#allocation2 + $0x28] sm:$0xff]
    %v2252 = vld [vmem:[#allocation2 + $0x30] sm:$0xff]
    %v2253 = vld [vmem:[#allocation2 + $0x38] sm:$0xff]
    %v2254 = vld [vmem:[#allocation2 + $0x40] sm:$0xff]
    %v2255 = vld [vmem:[#allocation2 + $0x48] sm:$0xff]
    %v2256 = vld [vmem:[#allocation2 + $0x50] sm:$0xff]
    %v2257 = vld [vmem:[#allocation2 + $0x58] sm:$0xff]
    %v2258 = vld [vmem:[#allocation2 + $0x60] sm:$0xff]
    %v2259 = vld [vmem:[#allocation2 + $0x68] sm:$0xff]
    %v2260 = vld [vmem:[#allocation2 + $0x70] sm:$0xff]
    %v2261 = vld [vmem:[#allocation2 + $0x78] sm:$0xff]
    %v2262 = vld [vmem:[#allocation2 + $0x80] sm:$0xff]
    %v2263 = vld [vmem:[#allocation2 + $0x88] sm:$0xff]
    %v2264 = vld [vmem:[#allocation2 + $0x90] sm:$0xff]
    %v2265 = vld [vmem:[#allocation2 + $0x98] sm:$0xff]
    %v2266 = vld [vmem:[#allocation2 + $0xa0] sm:$0xff]
    %v2267 = vld [vmem:[#allocation2 + $0xa8] sm:$0xff]
    %v2268 = vld [vmem:[#allocation2 + $0xb0] sm:$0xff]
    %v2269 = vld [vmem:[#allocation2 + $0xb8] sm:$0xff]
    %v2270 = vld [vmem:[#allocation2 + $0xc0] sm:$0xff]
    %v2271 = vld [vmem:[#allocation2 + $0xc8] sm:$0xff]
    %v2272 = vld [vmem:[#allocation2 + $0xd0] sm:$0xff]
    %v2273 = vld [vmem:[#allocation2 + $0xd8] sm:$0xff]
    %v2274 = vld [vmem:[#allocation2 + $0xe0] sm:$0xff]
    %v2275 = vld [vmem:[#allocation2 + $0xe8] sm:$0xff]
    %v2276 = vld [vmem:[#allocation2 + $0xf0] sm:$0xff]
    %v2277 = vld [vmem:[#allocation2 + $0xf8] sm:$0xff]
    %v2278 = vld [vmem:[%s1] sm:$0xff]
    %v2279 = vld [vmem:[%s1 + $0x8] sm:$0xff]
    %v2280 = vld [vmem:[%s1 + $0x10] sm:$0xff]
    %v2281 = vld [vmem:[%s1 + $0x18] sm:$0xff]
    %v2282 = vld [vmem:[%s1 + $0x20] sm:$0xff]
    %v2283 = vld [vmem:[%s1 + $0x28] sm:$0xff]
    %v2284 = vld [vmem:[%s1 + $0x30] sm:$0xff]
    %v2285 = vld [vmem:[%s1 + $0x38] sm:$0xff]
    %v2286 = vld [vmem:[%s1 + $0x40] sm:$0xff]
    %v2287 = vld [vmem:[%s1 + $0x48] sm:$0xff]
    %v2288 = vld [vmem:[%s1 + $0x50] sm:$0xff]
    %v2289 = vld [vmem:[%s1 + $0x58] sm:$0xff]
    %v2290 = vld [vmem:[%s1 + $0x60] sm:$0xff]
    %v2291 = vld [vmem:[%s1 + $0x68] sm:$0xff]
    %v2292 = vld [vmem:[%s1 + $0x70] sm:$0xff]
    %v2293 = vld [vmem:[%s1 + $0x78] sm:$0xff]
    %v2294 = vld [vmem:[%s2] sm:$0xf]
    %v2296 = vlaneseq
    %v2297 = vshrl.u32 %v2296, 7
    %v2298 = vsub.s32 0, %v2297
    %v2299 = vrot.slane %v2294, %v2298
    %v2300 = vlaneseq
    %v2301 = vshrl.u32 %v2300, 7
    %v2302 = vsub.s32 1, %v2301
    %v2303 = vrot.slane %v2294, %v2302
    %v2304 = vlaneseq
    %v2305 = vshrl.u32 %v2304, 7
    %v2306 = vsub.s32 2, %v2305
    %v2307 = vrot.slane %v2294, %v2306
    %v2308 = vlaneseq
    %v2309 = vshrl.u32 %v2308, 7
    %v2310 = vsub.s32 3, %v2309
    %v2311 = vrot.slane %v2294, %v2310
    %v2332 = vunpack.c.l.b16 %v2278
    %v2333 = vunpack.c.h.b16 %v2278
    %v2334 = vunpack.c.l.b16 %v2279
    %v2335 = vunpack.c.h.b16 %v2279
    %v2336 = vunpack.c.l.b16 %v2280
    %v2337 = vunpack.c.h.b16 %v2280
    %v2338 = vunpack.c.l.b16 %v2281
    %v2339 = vunpack.c.h.b16 %v2281
    %v2340 = vunpack.c.l.b16 %v2282
    %v2341 = vunpack.c.h.b16 %v2282
    %v2342 = vunpack.c.l.b16 %v2283
    %v2343 = vunpack.c.h.b16 %v2283
    %v2344 = vunpack.c.l.b16 %v2284
    %v2345 = vunpack.c.h.b16 %v2284
    %v2346 = vunpack.c.l.b16 %v2285
    %v2347 = vunpack.c.h.b16 %v2285
    %v2348 = vunpack.c.l.b16 %v2286
    %v2349 = vunpack.c.h.b16 %v2286
    %v2350 = vunpack.c.l.b16 %v2287
    %v2351 = vunpack.c.h.b16 %v2287
    %v2352 = vunpack.c.l.b16 %v2288
    %v2353 = vunpack.c.h.b16 %v2288
    %v2354 = vunpack.c.l.b16 %v2289
    %v2355 = vunpack.c.h.b16 %v2289
    %v2356 = vunpack.c.l.b16 %v2290
    %v2357 = vunpack.c.h.b16 %v2290
    %v2358 = vunpack.c.l.b16 %v2291
    %v2359 = vunpack.c.h.b16 %v2291
    %v2360 = vunpack.c.l.b16 %v2292
    %v2361 = vunpack.c.h.b16 %v2292
    %v2362 = vunpack.c.l.b16 %v2293
    %v2363 = vunpack.c.h.b16 %v2293
    %v2364 = vpack.c.b16 %v2336, %v2332
    %v2365 = vpack.c.b16 %v2337, %v2333
    %v2366 = vpack.c.b16 %v2338, %v2334
    %v2367 = vpack.c.b16 %v2339, %v2335
    %v2368 = vpack.c.b16 %v2344, %v2340
    %v2369 = vpack.c.b16 %v2345, %v2341
    %v2370 = vpack.c.b16 %v2346, %v2342
    %v2371 = vpack.c.b16 %v2347, %v2343
    %v2372 = vpack.c.b16 %v2352, %v2348
    %v2373 = vpack.c.b16 %v2353, %v2349
    %v2374 = vpack.c.b16 %v2354, %v2350
    %v2375 = vpack.c.b16 %v2355, %v2351
    %v2376 = vpack.c.b16 %v2360, %v2356
    %v2377 = vpack.c.b16 %v2361, %v2357
    %v2378 = vpack.c.b16 %v2362, %v2358
    %v2379 = vpack.c.b16 %v2363, %v2359
    %v2397 = vsel %vm22, %v2246, 0
    %v2400 = vsel %vm22, %v2247, 0
    %v2403 = vsel %vm22, %v2248, 0
    %v2406 = vsel %vm22, %v2249, 0
    %v2409 = vsel %vm22, %v2250, 0
    %v2412 = vsel %vm22, %v2251, 0
    %v2415 = vsel %vm22, %v2252, 0
    %v2418 = vsel %vm22, %v2253, 0
    %v2421 = vsel %vm22, %v2254, 0
    %v2424 = vsel %vm22, %v2255, 0
    %v2427 = vsel %vm22, %v2256, 0
    %v2430 = vsel %vm22, %v2257, 0
    %v2433 = vsel %vm22, %v2258, 0
    %v2436 = vsel %vm22, %v2259, 0
    %v2439 = vsel %vm22, %v2260, 0
    %v2442 = vsel %vm22, %v2261, 0
    %v2445 = vsel %vm22, %v2262, 0
    %v2448 = vsel %vm22, %v2263, 0
    %v2451 = vsel %vm22, %v2264, 0
    %v2454 = vsel %vm22, %v2265, 0
    %v2457 = vsel %vm22, %v2266, 0
    %v2460 = vsel %vm22, %v2267, 0
    %v2463 = vsel %vm22, %v2268, 0
    %v2466 = vsel %vm22, %v2269, 0
    %v2469 = vsel %vm22, %v2270, 0
    %v2472 = vsel %vm22, %v2271, 0
    %v2475 = vsel %vm22, %v2272, 0
    %v2478 = vsel %vm22, %v2273, 0
    %v2481 = vsel %vm22, %v2274, 0
    %v2484 = vsel %vm22, %v2275, 0
    %v2487 = vsel %vm22, %v2276, 0
    %v2490 = vsel %vm22, %v2277, 0
    %2492 = vmatprep.subr.bf16.mxu0 %v2365
    %2493 = vmatpush1.bf16.msra.mxu0 %v2364
    %2494 = vmatprep.subr.bf16.mxu0 %v2369
    %2495 = vmatpush1.bf16.msra.mxu0 %v2368
    %2496 = vmatprep.subr.bf16.mxu0 %v2373
    %2497 = vmatpush1.bf16.msra.mxu0 %v2372
    %2498 = vmatprep.subr.bf16.mxu0 %v2377
    %2499 = vmatpush1.bf16.msra.mxu0 %v2376
    %2500 = vmatprep.subr.bf16.mxu0 0
    %2501 = vmatpush1.bf16.msra.mxu0 0
    %2502 = vmatprep.subr.bf16.mxu0 0
    %2503 = vmatpush1.bf16.msra.mxu0 0
    %2504 = vmatprep.subr.bf16.mxu0 0
    %2505 = vmatpush1.bf16.msra.mxu0 0
    %2506 = vmatprep.subr.bf16.mxu0 0
    %2507 = vmatpush1.bf16.msra.mxu0 0
    %2508 = vmatprep.subr.bf16.mxu0 0
    %2509 = vmatpush1.bf16.msra.mxu0 0
    %2510 = vmatprep.subr.bf16.mxu0 0
    %2511 = vmatpush1.bf16.msra.mxu0 0
    %2512 = vmatprep.subr.bf16.mxu0 0
    %2513 = vmatpush1.bf16.msra.mxu0 0
    %2514 = vmatprep.subr.bf16.mxu0 0
    %2515 = vmatpush1.bf16.msra.mxu0 0
    %2516 = vmatprep.subr.bf16.mxu0 0
    %2517 = vmatpush1.bf16.msra.mxu0 0
    %2518 = vmatprep.subr.bf16.mxu0 0
    %2519 = vmatpush1.bf16.msra.mxu0 0
    %2520 = vmatprep.subr.bf16.mxu0 0
    %2521 = vmatpush1.bf16.msra.mxu0 0
    %2522 = vmatprep.subr.bf16.mxu0 0
    %2523 = vmatpush1.bf16.msra.mxu0 0
    %2524 = vmatprep.mubr.bf16.mxu0 0
    %2525 = vmatmul.mubr.bf16.gmra.mrb[0].mxu0 %v2397
    %v2526 = vpop.f32.mrb[0].mxu0
    %v2527 = vadd.f32 %v2299, %v2526
    %v2528 = vpop.f32.mrb[0].mxu0
    %v2529 = vadd.f32 %v2303, %v2528
    %v2530 = vpop.f32.mrb[0].mxu0
    %v2531 = vadd.f32 %v2299, %v2530
    %v2532 = vpop.f32.mrb[0].mxu0
    %v2533 = vadd.f32 %v2303, %v2532
    %2534 = vmatprep.mubr.bf16.mxu0 0
    %2535 = vmatmul.mubr.bf16.gmra.mrb[0].mxu0 %v2400
    %v2536 = vpop.f32.mrb[0].mxu0
    %v2537 = vadd.f32 %v2299, %v2536
    %v2538 = vpop.f32.mrb[0].mxu0
    %v2539 = vadd.f32 %v2303, %v2538
    %v2540 = vpop.f32.mrb[0].mxu0
    %v2541 = vadd.f32 %v2299, %v2540
    %v2542 = vpop.f32.mrb[0].mxu0
    %v2543 = vadd.f32 %v2303, %v2542
    %2544 = vmatprep.mubr.bf16.mxu0 0
    %2545 = vmatmul.mubr.bf16.gmra.mrb[0].mxu0 %v2403
    %v2546 = vpop.f32.mrb[0].mxu0
    %v2547 = vadd.f32 %v2299, %v2546
    %v2548 = vpop.f32.mrb[0].mxu0
    %v2549 = vadd.f32 %v2303, %v2548
    %v2550 = vpop.f32.mrb[0].mxu0
    %v2551 = vadd.f32 %v2299, %v2550
    %v2552 = vpop.f32.mrb[0].mxu0
    %v2553 = vadd.f32 %v2303, %v2552
    %2554 = vmatprep.mubr.bf16.mxu0 0
    %2555 = vmatmul.mubr.bf16.gmra.mrb[0].mxu0 %v2406
    %v2556 = vpop.f32.mrb[0].mxu0
    %v2557 = vadd.f32 %v2299, %v2556
    %v2558 = vpop.f32.mrb[0].mxu0
    %v2559 = vadd.f32 %v2303, %v2558
    %v2560 = vpop.f32.mrb[0].mxu0
    %v2561 = vadd.f32 %v2299, %v2560
    %v2562 = vpop.f32.mrb[0].mxu0
    %v2563 = vadd.f32 %v2303, %v2562
    %2564 = vmatprep.mubr.bf16.mxu0 0
    %2565 = vmatmul.mubr.bf16.gmra.mrb[0].mxu0 %v2409
    %v2566 = vpop.f32.mrb[0].mxu0
    %v2567 = vadd.f32 %v2299, %v2566
    %v2568 = vpop.f32.mrb[0].mxu0
    %v2569 = vadd.f32 %v2303, %v2568
    %v2570 = vpop.f32.mrb[0].mxu0
    %v2571 = vadd.f32 %v2299, %v2570
    %v2572 = vpop.f32.mrb[0].mxu0
    %v2573 = vadd.f32 %v2303, %v2572
    %2574 = vmatprep.mubr.bf16.mxu0 0
    %2575 = vmatmul.mubr.bf16.gmra.mrb[0].mxu0 %v2412
    %v2576 = vpop.f32.mrb[0].mxu0
    %v2577 = vadd.f32 %v2299, %v2576
    %v2578 = vpop.f32.mrb[0].mxu0
    %v2579 = vadd.f32 %v2303, %v2578
    %v2580 = vpop.f32.mrb[0].mxu0
    %v2581 = vadd.f32 %v2299, %v2580
    %v2582 = vpop.f32.mrb[0].mxu0
    %v2583 = vadd.f32 %v2303, %v2582
    %2584 = vmatprep.mubr.bf16.mxu0 0
    %2585 = vmatmul.mubr.bf16.gmra.mrb[0].mxu0 %v2415
    %v2586 = vpop.f32.mrb[0].mxu0
    %v2587 = vadd.f32 %v2299, %v2586
    %v2588 = vpop.f32.mrb[0].mxu0
    %v2589 = vadd.f32 %v2303, %v2588
    %v2590 = vpop.f32.mrb[0].mxu0
    %v2591 = vadd.f32 %v2299, %v2590
    %v2592 = vpop.f32.mrb[0].mxu0
    %v2593 = vadd.f32 %v2303, %v2592
    %2594 = vmatprep.mubr.bf16.mxu0 0
    %2595 = vmatmul.mubr.bf16.gmra.mrb[0].mxu0 %v2418
    %v2596 = vpop.f32.mrb[0].mxu0
    %v2597 = vadd.f32 %v2299, %v2596
    %v2598 = vpop.f32.mrb[0].mxu0
    %v2599 = vadd.f32 %v2303, %v2598
    %v2600 = vpop.f32.mrb[0].mxu0
    %v2601 = vadd.f32 %v2299, %v2600
    %v2602 = vpop.f32.mrb[0].mxu0
    %v2603 = vadd.f32 %v2303, %v2602
    %2604 = vmatprep.mubr.bf16.mxu0 0
    %2605 = vmatmul.mubr.bf16.gmra.mrb[0].mxu0 %v2421
    %v2606 = vpop.f32.mrb[0].mxu0
    %v2607 = vadd.f32 %v2299, %v2606
    %v2608 = vpop.f32.mrb[0].mxu0
    %v2609 = vadd.f32 %v2303, %v2608
    %v2610 = vpop.f32.mrb[0].mxu0
    %v2611 = vadd.f32 %v2299, %v2610
    %v2612 = vpop.f32.mrb[0].mxu0
    %v2613 = vadd.f32 %v2303, %v2612
    %2614 = vmatprep.mubr.bf16.mxu0 0
    %2615 = vmatmul.mubr.bf16.gmra.mrb[0].mxu0 %v2424
    %v2616 = vpop.f32.mrb[0].mxu0
    %v2617 = vadd.f32 %v2299, %v2616
    %v2618 = vpop.f32.mrb[0].mxu0
    %v2619 = vadd.f32 %v2303, %v2618
    %v2620 = vpop.f32.mrb[0].mxu0
    %v2621 = vadd.f32 %v2299, %v2620
    %v2622 = vpop.f32.mrb[0].mxu0
    %v2623 = vadd.f32 %v2303, %v2622
    %2624 = vmatprep.mubr.bf16.mxu0 0
    %2625 = vmatmul.mubr.bf16.gmra.mrb[0].mxu0 %v2427
    %v2626 = vpop.f32.mrb[0].mxu0
    %v2627 = vadd.f32 %v2299, %v2626
    %v2628 = vpop.f32.mrb[0].mxu0
    %v2629 = vadd.f32 %v2303, %v2628
    %v2630 = vpop.f32.mrb[0].mxu0
    %v2631 = vadd.f32 %v2299, %v2630
    %v2632 = vpop.f32.mrb[0].mxu0
    %v2633 = vadd.f32 %v2303, %v2632
    %2634 = vmatprep.mubr.bf16.mxu0 0
    %2635 = vmatmul.mubr.bf16.gmra.mrb[0].mxu0 %v2430
    %v2636 = vpop.f32.mrb[0].mxu0
    %v2637 = vadd.f32 %v2299, %v2636
    %v2638 = vpop.f32.mrb[0].mxu0
    %v2639 = vadd.f32 %v2303, %v2638
    %v2640 = vpop.f32.mrb[0].mxu0
    %v2641 = vadd.f32 %v2299, %v2640
    %v2642 = vpop.f32.mrb[0].mxu0
    %v2643 = vadd.f32 %v2303, %v2642
    %2644 = vmatprep.mubr.bf16.mxu0 0
    %2645 = vmatmul.mubr.bf16.gmra.mrb[0].mxu0 %v2433
    %v2646 = vpop.f32.mrb[0].mxu0
    %v2647 = vadd.f32 %v2299, %v2646
    %v2648 = vpop.f32.mrb[0].mxu0
    %v2649 = vadd.f32 %v2303, %v2648
    %v2650 = vpop.f32.mrb[0].mxu0
    %v2651 = vadd.f32 %v2299, %v2650
    %v2652 = vpop.f32.mrb[0].mxu0
    %v2653 = vadd.f32 %v2303, %v2652
    %2654 = vmatprep.mubr.bf16.mxu0 0
    %2655 = vmatmul.mubr.bf16.gmra.mrb[0].mxu0 %v2436
    %v2656 = vpop.f32.mrb[0].mxu0
    %v2657 = vadd.f32 %v2299, %v2656
    %v2658 = vpop.f32.mrb[0].mxu0
    %v2659 = vadd.f32 %v2303, %v2658
    %v2660 = vpop.f32.mrb[0].mxu0
    %v2661 = vadd.f32 %v2299, %v2660
    %v2662 = vpop.f32.mrb[0].mxu0
    %v2663 = vadd.f32 %v2303, %v2662
    %2664 = vmatprep.mubr.bf16.mxu0 0
    %2665 = vmatmul.mubr.bf16.gmra.mrb[0].mxu0 %v2439
    %v2666 = vpop.f32.mrb[0].mxu0
    %v2667 = vadd.f32 %v2299, %v2666
    %v2668 = vpop.f32.mrb[0].mxu0
    %v2669 = vadd.f32 %v2303, %v2668
    %v2670 = vpop.f32.mrb[0].mxu0
    %v2671 = vadd.f32 %v2299, %v2670
    %v2672 = vpop.f32.mrb[0].mxu0
    %v2673 = vadd.f32 %v2303, %v2672
    %2674 = vmatprep.mubr.bf16.mxu0 0
    %2675 = vmatmul.mubr.bf16.gmra.mrb[0].mxu0 %v2442
    %v2676 = vpop.f32.mrb[0].mxu0
    %v2677 = vadd.f32 %v2299, %v2676
    %v2678 = vpop.f32.mrb[0].mxu0
    %v2679 = vadd.f32 %v2303, %v2678
    %v2680 = vpop.f32.mrb[0].mxu0
    %v2681 = vadd.f32 %v2299, %v2680
    %v2682 = vpop.f32.mrb[0].mxu0
    %v2683 = vadd.f32 %v2303, %v2682
    %2684 = vmatprep.mubr.bf16.mxu0 0
    %2685 = vmatmul.mubr.bf16.gmra.mrb[0].mxu0 %v2445
    %v2686 = vpop.f32.mrb[0].mxu0
    %v2687 = vadd.f32 %v2299, %v2686
    %v2688 = vpop.f32.mrb[0].mxu0
    %v2689 = vadd.f32 %v2303, %v2688
    %v2690 = vpop.f32.mrb[0].mxu0
    %v2691 = vadd.f32 %v2299, %v2690
    %v2692 = vpop.f32.mrb[0].mxu0
    %v2693 = vadd.f32 %v2303, %v2692
    %2694 = vmatprep.mubr.bf16.mxu0 0
    %2695 = vmatmul.mubr.bf16.gmra.mrb[0].mxu0 %v2448
    %v2696 = vpop.f32.mrb[0].mxu0
    %v2697 = vadd.f32 %v2299, %v2696
    %v2698 = vpop.f32.mrb[0].mxu0
    %v2699 = vadd.f32 %v2303, %v2698
    %v2700 = vpop.f32.mrb[0].mxu0
    %v2701 = vadd.f32 %v2299, %v2700
    %v2702 = vpop.f32.mrb[0].mxu0
    %v2703 = vadd.f32 %v2303, %v2702
    %2704 = vmatprep.mubr.bf16.mxu0 0
    %2705 = vmatmul.mubr.bf16.gmra.mrb[0].mxu0 %v2451
    %v2706 = vpop.f32.mrb[0].mxu0
    %v2707 = vadd.f32 %v2299, %v2706
    %v2708 = vpop.f32.mrb[0].mxu0
    %v2709 = vadd.f32 %v2303, %v2708
    %v2710 = vpop.f32.mrb[0].mxu0
    %v2711 = vadd.f32 %v2299, %v2710
    %v2712 = vpop.f32.mrb[0].mxu0
    %v2713 = vadd.f32 %v2303, %v2712
    %2714 = vmatprep.mubr.bf16.mxu0 0
    %2715 = vmatmul.mubr.bf16.gmra.mrb[0].mxu0 %v2454
    %v2716 = vpop.f32.mrb[0].mxu0
    %v2717 = vadd.f32 %v2299, %v2716
    %v2718 = vpop.f32.mrb[0].mxu0
    %v2719 = vadd.f32 %v2303, %v2718
    %v2720 = vpop.f32.mrb[0].mxu0
    %v2721 = vadd.f32 %v2299, %v2720
    %v2722 = vpop.f32.mrb[0].mxu0
    %v2723 = vadd.f32 %v2303, %v2722
    %2724 = vmatprep.mubr.bf16.mxu0 0
    %2725 = vmatmul.mubr.bf16.gmra.mrb[0].mxu0 %v2457
    %v2726 = vpop.f32.mrb[0].mxu0
    %v2727 = vadd.f32 %v2299, %v2726
    %v2728 = vpop.f32.mrb[0].mxu0
    %v2729 = vadd.f32 %v2303, %v2728
    %v2730 = vpop.f32.mrb[0].mxu0
    %v2731 = vadd.f32 %v2299, %v2730
    %v2732 = vpop.f32.mrb[0].mxu0
    %v2733 = vadd.f32 %v2303, %v2732
    %2734 = vmatprep.mubr.bf16.mxu0 0
    %2735 = vmatmul.mubr.bf16.gmra.mrb[0].mxu0 %v2460
    %v2736 = vpop.f32.mrb[0].mxu0
    %v2737 = vadd.f32 %v2299, %v2736
    %v2738 = vpop.f32.mrb[0].mxu0
    %v2739 = vadd.f32 %v2303, %v2738
    %v2740 = vpop.f32.mrb[0].mxu0
    %v2741 = vadd.f32 %v2299, %v2740
    %v2742 = vpop.f32.mrb[0].mxu0
    %v2743 = vadd.f32 %v2303, %v2742
    %2744 = vmatprep.mubr.bf16.mxu0 0
    %2745 = vmatmul.mubr.bf16.gmra.mrb[0].mxu0 %v2463
    %v2746 = vpop.f32.mrb[0].mxu0
    %v2747 = vadd.f32 %v2299, %v2746
    %v2748 = vpop.f32.mrb[0].mxu0
    %v2749 = vadd.f32 %v2303, %v2748
    %v2750 = vpop.f32.mrb[0].mxu0
    %v2751 = vadd.f32 %v2299, %v2750
    %v2752 = vpop.f32.mrb[0].mxu0
    %v2753 = vadd.f32 %v2303, %v2752
    %2754 = vmatprep.mubr.bf16.mxu0 0
    %2755 = vmatmul.mubr.bf16.gmra.mrb[0].mxu0 %v2466
    %v2756 = vpop.f32.mrb[0].mxu0
    %v2757 = vadd.f32 %v2299, %v2756
    %v2758 = vpop.f32.mrb[0].mxu0
    %v2759 = vadd.f32 %v2303, %v2758
    %v2760 = vpop.f32.mrb[0].mxu0
    %v2761 = vadd.f32 %v2299, %v2760
    %v2762 = vpop.f32.mrb[0].mxu0
    %v2763 = vadd.f32 %v2303, %v2762
    %2764 = vmatprep.mubr.bf16.mxu0 0
    %2765 = vmatmul.mubr.bf16.gmra.mrb[0].mxu0 %v2469
    %v2766 = vpop.f32.mrb[0].mxu0
    %v2767 = vadd.f32 %v2299, %v2766
    %v2768 = vpop.f32.mrb[0].mxu0
    %v2769 = vadd.f32 %v2303, %v2768
    %v2770 = vpop.f32.mrb[0].mxu0
    %v2771 = vadd.f32 %v2299, %v2770
    %v2772 = vpop.f32.mrb[0].mxu0
    %v2773 = vadd.f32 %v2303, %v2772
    %2774 = vmatprep.mubr.bf16.mxu0 0
    %2775 = vmatmul.mubr.bf16.gmra.mrb[0].mxu0 %v2472
    %v2776 = vpop.f32.mrb[0].mxu0
    %v2777 = vadd.f32 %v2299, %v2776
    %v2778 = vpop.f32.mrb[0].mxu0
    %v2779 = vadd.f32 %v2303, %v2778
    %v2780 = vpop.f32.mrb[0].mxu0
    %v2781 = vadd.f32 %v2299, %v2780
    %v2782 = vpop.f32.mrb[0].mxu0
    %v2783 = vadd.f32 %v2303, %v2782
    %2784 = vmatprep.mubr.bf16.mxu0 0
    %2785 = vmatmul.mubr.bf16.gmra.mrb[0].mxu0 %v2475
    %v2786 = vpop.f32.mrb[0].mxu0
    %v2787 = vadd.f32 %v2299, %v2786
    %v2788 = vpop.f32.mrb[0].mxu0
    %v2789 = vadd.f32 %v2303, %v2788
    %v2790 = vpop.f32.mrb[0].mxu0
    %v2791 = vadd.f32 %v2299, %v2790
    %v2792 = vpop.f32.mrb[0].mxu0
    %v2793 = vadd.f32 %v2303, %v2792
    %2794 = vmatprep.mubr.bf16.mxu0 0
    %2795 = vmatmul.mubr.bf16.gmra.mrb[0].mxu0 %v2478
    %v2796 = vpop.f32.mrb[0].mxu0
    %v2797 = vadd.f32 %v2299, %v2796
    %v2798 = vpop.f32.mrb[0].mxu0
    %v2799 = vadd.f32 %v2303, %v2798
    %v2800 = vpop.f32.mrb[0].mxu0
    %v2801 = vadd.f32 %v2299, %v2800
    %v2802 = vpop.f32.mrb[0].mxu0
    %v2803 = vadd.f32 %v2303, %v2802
    %2804 = vmatprep.mubr.bf16.mxu0 0
    %2805 = vmatmul.mubr.bf16.gmra.mrb[0].mxu0 %v2481
    %v2806 = vpop.f32.mrb[0].mxu0
    %v2807 = vadd.f32 %v2299, %v2806
    %v2808 = vpop.f32.mrb[0].mxu0
    %v2809 = vadd.f32 %v2303, %v2808
    %v2810 = vpop.f32.mrb[0].mxu0
    %v2811 = vadd.f32 %v2299, %v2810
    %v2812 = vpop.f32.mrb[0].mxu0
    %v2813 = vadd.f32 %v2303, %v2812
    %2814 = vmatprep.mubr.bf16.mxu0 0
    %2815 = vmatmul.mubr.bf16.gmra.mrb[0].mxu0 %v2484
    %v2816 = vpop.f32.mrb[0].mxu0
    %v2817 = vadd.f32 %v2299, %v2816
    %v2818 = vpop.f32.mrb[0].mxu0
    %v2819 = vadd.f32 %v2303, %v2818
    %v2820 = vpop.f32.mrb[0].mxu0
    %v2821 = vadd.f32 %v2299, %v2820
    %v2822 = vpop.f32.mrb[0].mxu0
    %v2823 = vadd.f32 %v2303, %v2822
    %2824 = vmatprep.mubr.bf16.mxu0 0
    %2825 = vmatmul.mubr.bf16.gmra.mrb[0].mxu0 %v2487
    %v2826 = vpop.f32.mrb[0].mxu0
    %v2827 = vadd.f32 %v2299, %v2826
    %v2828 = vpop.f32.mrb[0].mxu0
    %v2829 = vadd.f32 %v2303, %v2828
    %v2830 = vpop.f32.mrb[0].mxu0
    %v2831 = vadd.f32 %v2299, %v2830
    %v2832 = vpop.f32.mrb[0].mxu0
    %v2833 = vadd.f32 %v2303, %v2832
    %2834 = vmatprep.mubr.bf16.mxu0 0
    %2835 = vmatmul.mubr.bf16.gmra.mrb[0].mxu0 %v2490
    %v2836 = vpop.f32.mrb[0].mxu0
    %v2837 = vadd.f32 %v2299, %v2836
    %v2838 = vpop.f32.mrb[0].mxu0
    %v2839 = vadd.f32 %v2303, %v2838
    %v2840 = vpop.f32.mrb[0].mxu0
    %v2841 = vadd.f32 %v2299, %v2840
    %v2842 = vpop.f32.mrb[0].mxu0
    %v2843 = vadd.f32 %v2303, %v2842
    %2844 = vdwg.mxu0
    %2845 = vmatprep.subr.bf16.mxu0 %v2367
    %2846 = vmatpush1.bf16.msra.mxu0 %v2366
    %2847 = vmatprep.subr.bf16.mxu0 %v2371
    %2848 = vmatpush1.bf16.msra.mxu0 %v2370
    %2849 = vmatprep.subr.bf16.mxu0 %v2375
    %2850 = vmatpush1.bf16.msra.mxu0 %v2374
    %2851 = vmatprep.subr.bf16.mxu0 %v2379
    %2852 = vmatpush1.bf16.msra.mxu0 %v2378
    %2853 = vmatprep.subr.bf16.mxu0 0
    %2854 = vmatpush1.bf16.msra.mxu0 0
    %2855 = vmatprep.subr.bf16.mxu0 0
    %2856 = vmatpush1.bf16.msra.mxu0 0
    %2857 = vmatprep.subr.bf16.mxu0 0
    %2858 = vmatpush1.bf16.msra.mxu0 0
    %2859 = vmatprep.subr.bf16.mxu0 0
    %2860 = vmatpush1.bf16.msra.mxu0 0
    %2861 = vmatprep.subr.bf16.mxu0 0
    %2862 = vmatpush1.bf16.msra.mxu0 0
    %2863 = vmatprep.subr.bf16.mxu0 0
    %2864 = vmatpush1.bf16.msra.mxu0 0
    %2865 = vmatprep.subr.bf16.mxu0 0
    %2866 = vmatpush1.bf16.msra.mxu0 0
    %2867 = vmatprep.subr.bf16.mxu0 0
    %2868 = vmatpush1.bf16.msra.mxu0 0
    %2869 = vmatprep.subr.bf16.mxu0 0
    %2870 = vmatpush1.bf16.msra.mxu0 0
    %2871 = vmatprep.subr.bf16.mxu0 0
    %2872 = vmatpush1.bf16.msra.mxu0 0
    %2873 = vmatprep.subr.bf16.mxu0 0
    %2874 = vmatpush1.bf16.msra.mxu0 0
    %2875 = vmatprep.subr.bf16.mxu0 0
    %2876 = vmatpush1.bf16.msra.mxu0 0
    %2877 = vmatprep.mubr.bf16.mxu0 0
    %2878 = vmatmul.mubr.bf16.gmra.mrb[0].mxu0 %v2397
    %v2879 = vpop.f32.mrb[0].mxu0
    %v2880 = vadd.f32 %v2307, %v2879
    %v2881 = vpop.f32.mrb[0].mxu0
    %v2882 = vadd.f32 %v2311, %v2881
    %v2883 = vpop.f32.mrb[0].mxu0
    %v2884 = vadd.f32 %v2307, %v2883
    %v2885 = vpop.f32.mrb[0].mxu0
    %v2886 = vadd.f32 %v2311, %v2885
    %2887 = vmatprep.mubr.bf16.mxu0 0
    %2888 = vmatmul.mubr.bf16.gmra.mrb[0].mxu0 %v2400
    %v2889 = vpop.f32.mrb[0].mxu0
    %v2890 = vadd.f32 %v2307, %v2889
    %v2891 = vpop.f32.mrb[0].mxu0
    %v2892 = vadd.f32 %v2311, %v2891
    %v2893 = vpop.f32.mrb[0].mxu0
    %v2894 = vadd.f32 %v2307, %v2893
    %v2895 = vpop.f32.mrb[0].mxu0
    %v2896 = vadd.f32 %v2311, %v2895
    %2897 = vmatprep.mubr.bf16.mxu0 0
    %2898 = vmatmul.mubr.bf16.gmra.mrb[0].mxu0 %v2403
    %v2899 = vpop.f32.mrb[0].mxu0
    %v2900 = vadd.f32 %v2307, %v2899
    %v2901 = vpop.f32.mrb[0].mxu0
    %v2902 = vadd.f32 %v2311, %v2901
    %v2903 = vpop.f32.mrb[0].mxu0
    %v2904 = vadd.f32 %v2307, %v2903
    %v2905 = vpop.f32.mrb[0].mxu0
    %v2906 = vadd.f32 %v2311, %v2905
    %2907 = vmatprep.mubr.bf16.mxu0 0
    %2908 = vmatmul.mubr.bf16.gmra.mrb[0].mxu0 %v2406
    %v2909 = vpop.f32.mrb[0].mxu0
    %v2910 = vadd.f32 %v2307, %v2909
    %v2911 = vpop.f32.mrb[0].mxu0
    %v2912 = vadd.f32 %v2311, %v2911
    %v2913 = vpop.f32.mrb[0].mxu0
    %v2914 = vadd.f32 %v2307, %v2913
    %v2915 = vpop.f32.mrb[0].mxu0
    %v2916 = vadd.f32 %v2311, %v2915
    %2917 = vmatprep.mubr.bf16.mxu0 0
    %2918 = vmatmul.mubr.bf16.gmra.mrb[0].mxu0 %v2409
    %v2919 = vpop.f32.mrb[0].mxu0
    %v2920 = vadd.f32 %v2307, %v2919
    %v2921 = vpop.f32.mrb[0].mxu0
    %v2922 = vadd.f32 %v2311, %v2921
    %v2923 = vpop.f32.mrb[0].mxu0
    %v2924 = vadd.f32 %v2307, %v2923
    %v2925 = vpop.f32.mrb[0].mxu0
    %v2926 = vadd.f32 %v2311, %v2925
    %2927 = vmatprep.mubr.bf16.mxu0 0
    %2928 = vmatmul.mubr.bf16.gmra.mrb[0].mxu0 %v2412
    %v2929 = vpop.f32.mrb[0].mxu0
    %v2930 = vadd.f32 %v2307, %v2929
    %v2931 = vpop.f32.mrb[0].mxu0
    %v2932 = vadd.f32 %v2311, %v2931
    %v2933 = vpop.f32.mrb[0].mxu0
    %v2934 = vadd.f32 %v2307, %v2933
    %v2935 = vpop.f32.mrb[0].mxu0
    %v2936 = vadd.f32 %v2311, %v2935
    %2937 = vmatprep.mubr.bf16.mxu0 0
    %2938 = vmatmul.mubr.bf16.gmra.mrb[0].mxu0 %v2415
    %v2939 = vpop.f32.mrb[0].mxu0
    %v2940 = vadd.f32 %v2307, %v2939
    %v2941 = vpop.f32.mrb[0].mxu0
    %v2942 = vadd.f32 %v2311, %v2941
    %v2943 = vpop.f32.mrb[0].mxu0
    %v2944 = vadd.f32 %v2307, %v2943
    %v2945 = vpop.f32.mrb[0].mxu0
    %v2946 = vadd.f32 %v2311, %v2945
    %2947 = vmatprep.mubr.bf16.mxu0 0
    %2948 = vmatmul.mubr.bf16.gmra.mrb[0].mxu0 %v2418
    %v2949 = vpop.f32.mrb[0].mxu0
    %v2950 = vadd.f32 %v2307, %v2949
    %v2951 = vpop.f32.mrb[0].mxu0
    %v2952 = vadd.f32 %v2311, %v2951
    %v2953 = vpop.f32.mrb[0].mxu0
    %v2954 = vadd.f32 %v2307, %v2953
    %v2955 = vpop.f32.mrb[0].mxu0
    %v2956 = vadd.f32 %v2311, %v2955
    %2957 = vmatprep.mubr.bf16.mxu0 0
    %2958 = vmatmul.mubr.bf16.gmra.mrb[0].mxu0 %v2421
    %v2959 = vpop.f32.mrb[0].mxu0
    %v2960 = vadd.f32 %v2307, %v2959
    %v2961 = vpop.f32.mrb[0].mxu0
    %v2962 = vadd.f32 %v2311, %v2961
    %v2963 = vpop.f32.mrb[0].mxu0
    %v2964 = vadd.f32 %v2307, %v2963
    %v2965 = vpop.f32.mrb[0].mxu0
    %v2966 = vadd.f32 %v2311, %v2965
    %2967 = vmatprep.mubr.bf16.mxu0 0
    %2968 = vmatmul.mubr.bf16.gmra.mrb[0].mxu0 %v2424
    %v2969 = vpop.f32.mrb[0].mxu0
    %v2970 = vadd.f32 %v2307, %v2969
    %v2971 = vpop.f32.mrb[0].mxu0
    %v2972 = vadd.f32 %v2311, %v2971
    %v2973 = vpop.f32.mrb[0].mxu0
    %v2974 = vadd.f32 %v2307, %v2973
    %v2975 = vpop.f32.mrb[0].mxu0
    %v2976 = vadd.f32 %v2311, %v2975
    %2977 = vmatprep.mubr.bf16.mxu0 0
    %2978 = vmatmul.mubr.bf16.gmra.mrb[0].mxu0 %v2427
    %v2979 = vpop.f32.mrb[0].mxu0
    %v2980 = vadd.f32 %v2307, %v2979
    %v2981 = vpop.f32.mrb[0].mxu0
    %v2982 = vadd.f32 %v2311, %v2981
    %v2983 = vpop.f32.mrb[0].mxu0
    %v2984 = vadd.f32 %v2307, %v2983
    %v2985 = vpop.f32.mrb[0].mxu0
    %v2986 = vadd.f32 %v2311, %v2985
    %2987 = vmatprep.mubr.bf16.mxu0 0
    %2988 = vmatmul.mubr.bf16.gmra.mrb[0].mxu0 %v2430
    %v2989 = vpop.f32.mrb[0].mxu0
    %v2990 = vadd.f32 %v2307, %v2989
    %v2991 = vpop.f32.mrb[0].mxu0
    %v2992 = vadd.f32 %v2311, %v2991
    %v2993 = vpop.f32.mrb[0].mxu0
    %v2994 = vadd.f32 %v2307, %v2993
    %v2995 = vpop.f32.mrb[0].mxu0
    %v2996 = vadd.f32 %v2311, %v2995
    %2997 = vmatprep.mubr.bf16.mxu0 0
    %2998 = vmatmul.mubr.bf16.gmra.mrb[0].mxu0 %v2433
    %v2999 = vpop.f32.mrb[0].mxu0
    %v3000 = vadd.f32 %v2307, %v2999
    %v3001 = vpop.f32.mrb[0].mxu0
    %v3002 = vadd.f32 %v2311, %v3001
    %v3003 = vpop.f32.mrb[0].mxu0
    %v3004 = vadd.f32 %v2307, %v3003
    %v3005 = vpop.f32.mrb[0].mxu0
    %v3006 = vadd.f32 %v2311, %v3005
    %3007 = vmatprep.mubr.bf16.mxu0 0
    %3008 = vmatmul.mubr.bf16.gmra.mrb[0].mxu0 %v2436
    %v3009 = vpop.f32.mrb[0].mxu0
    %v3010 = vadd.f32 %v2307, %v3009
    %v3011 = vpop.f32.mrb[0].mxu0
    %v3012 = vadd.f32 %v2311, %v3011
    %v3013 = vpop.f32.mrb[0].mxu0
    %v3014 = vadd.f32 %v2307, %v3013
    %v3015 = vpop.f32.mrb[0].mxu0
    %v3016 = vadd.f32 %v2311, %v3015
    %3017 = vmatprep.mubr.bf16.mxu0 0
    %3018 = vmatmul.mubr.bf16.gmra.mrb[0].mxu0 %v2439
    %v3019 = vpop.f32.mrb[0].mxu0
    %v3020 = vadd.f32 %v2307, %v3019
    %v3021 = vpop.f32.mrb[0].mxu0
    %v3022 = vadd.f32 %v2311, %v3021
    %v3023 = vpop.f32.mrb[0].mxu0
    %v3024 = vadd.f32 %v2307, %v3023
    %v3025 = vpop.f32.mrb[0].mxu0
    %v3026 = vadd.f32 %v2311, %v3025
    %3027 = vmatprep.mubr.bf16.mxu0 0
    %3028 = vmatmul.mubr.bf16.gmra.mrb[0].mxu0 %v2442
    %v3029 = vpop.f32.mrb[0].mxu0
    %v3030 = vadd.f32 %v2307, %v3029
    %v3031 = vpop.f32.mrb[0].mxu0
    %v3032 = vadd.f32 %v2311, %v3031
    %v3033 = vpop.f32.mrb[0].mxu0
    %v3034 = vadd.f32 %v2307, %v3033
    %v3035 = vpop.f32.mrb[0].mxu0
    %v3036 = vadd.f32 %v2311, %v3035
    %3037 = vmatprep.mubr.bf16.mxu0 0
    %3038 = vmatmul.mubr.bf16.gmra.mrb[0].mxu0 %v2445
    %v3039 = vpop.f32.mrb[0].mxu0
    %v3040 = vadd.f32 %v2307, %v3039
    %v3041 = vpop.f32.mrb[0].mxu0
    %v3042 = vadd.f32 %v2311, %v3041
    %v3043 = vpop.f32.mrb[0].mxu0
    %v3044 = vadd.f32 %v2307, %v3043
    %v3045 = vpop.f32.mrb[0].mxu0
    %v3046 = vadd.f32 %v2311, %v3045
    %3047 = vmatprep.mubr.bf16.mxu0 0
    %3048 = vmatmul.mubr.bf16.gmra.mrb[0].mxu0 %v2448
    %v3049 = vpop.f32.mrb[0].mxu0
    %v3050 = vadd.f32 %v2307, %v3049
    %v3051 = vpop.f32.mrb[0].mxu0
    %v3052 = vadd.f32 %v2311, %v3051
    %v3053 = vpop.f32.mrb[0].mxu0
    %v3054 = vadd.f32 %v2307, %v3053
    %v3055 = vpop.f32.mrb[0].mxu0
    %v3056 = vadd.f32 %v2311, %v3055
    %3057 = vmatprep.mubr.bf16.mxu0 0
    %3058 = vmatmul.mubr.bf16.gmra.mrb[0].mxu0 %v2451
    %v3059 = vpop.f32.mrb[0].mxu0
    %v3060 = vadd.f32 %v2307, %v3059
    %v3061 = vpop.f32.mrb[0].mxu0
    %v3062 = vadd.f32 %v2311, %v3061
    %v3063 = vpop.f32.mrb[0].mxu0
    %v3064 = vadd.f32 %v2307, %v3063
    %v3065 = vpop.f32.mrb[0].mxu0
    %v3066 = vadd.f32 %v2311, %v3065
    %3067 = vmatprep.mubr.bf16.mxu0 0
    %3068 = vmatmul.mubr.bf16.gmra.mrb[0].mxu0 %v2454
    %v3069 = vpop.f32.mrb[0].mxu0
    %v3070 = vadd.f32 %v2307, %v3069
    %v3071 = vpop.f32.mrb[0].mxu0
    %v3072 = vadd.f32 %v2311, %v3071
    %v3073 = vpop.f32.mrb[0].mxu0
    %v3074 = vadd.f32 %v2307, %v3073
    %v3075 = vpop.f32.mrb[0].mxu0
    %v3076 = vadd.f32 %v2311, %v3075
    %3077 = vmatprep.mubr.bf16.mxu0 0
    %3078 = vmatmul.mubr.bf16.gmra.mrb[0].mxu0 %v2457
    %v3079 = vpop.f32.mrb[0].mxu0
    %v3080 = vadd.f32 %v2307, %v3079
    %v3081 = vpop.f32.mrb[0].mxu0
    %v3082 = vadd.f32 %v2311, %v3081
    %v3083 = vpop.f32.mrb[0].mxu0
    %v3084 = vadd.f32 %v2307, %v3083
    %v3085 = vpop.f32.mrb[0].mxu0
    %v3086 = vadd.f32 %v2311, %v3085
    %3087 = vmatprep.mubr.bf16.mxu0 0
    %3088 = vmatmul.mubr.bf16.gmra.mrb[0].mxu0 %v2460
    %v3089 = vpop.f32.mrb[0].mxu0
    %v3090 = vadd.f32 %v2307, %v3089
    %v3091 = vpop.f32.mrb[0].mxu0
    %v3092 = vadd.f32 %v2311, %v3091
    %v3093 = vpop.f32.mrb[0].mxu0
    %v3094 = vadd.f32 %v2307, %v3093
    %v3095 = vpop.f32.mrb[0].mxu0
    %v3096 = vadd.f32 %v2311, %v3095
    %3097 = vmatprep.mubr.bf16.mxu0 0
    %3098 = vmatmul.mubr.bf16.gmra.mrb[0].mxu0 %v2463
    %v3099 = vpop.f32.mrb[0].mxu0
    %v3100 = vadd.f32 %v2307, %v3099
    %v3101 = vpop.f32.mrb[0].mxu0
    %v3102 = vadd.f32 %v2311, %v3101
    %v3103 = vpop.f32.mrb[0].mxu0
    %v3104 = vadd.f32 %v2307, %v3103
    %v3105 = vpop.f32.mrb[0].mxu0
    %v3106 = vadd.f32 %v2311, %v3105
    %3107 = vmatprep.mubr.bf16.mxu0 0
    %3108 = vmatmul.mubr.bf16.gmra.mrb[0].mxu0 %v2466
    %v3109 = vpop.f32.mrb[0].mxu0
    %v3110 = vadd.f32 %v2307, %v3109
    %v3111 = vpop.f32.mrb[0].mxu0
    %v3112 = vadd.f32 %v2311, %v3111
    %v3113 = vpop.f32.mrb[0].mxu0
    %v3114 = vadd.f32 %v2307, %v3113
    %v3115 = vpop.f32.mrb[0].mxu0
    %v3116 = vadd.f32 %v2311, %v3115
    %3117 = vmatprep.mubr.bf16.mxu0 0
    %3118 = vmatmul.mubr.bf16.gmra.mrb[0].mxu0 %v2469
    %v3119 = vpop.f32.mrb[0].mxu0
    %v3120 = vadd.f32 %v2307, %v3119
    %v3121 = vpop.f32.mrb[0].mxu0
    %v3122 = vadd.f32 %v2311, %v3121
    %v3123 = vpop.f32.mrb[0].mxu0
    %v3124 = vadd.f32 %v2307, %v3123
    %v3125 = vpop.f32.mrb[0].mxu0
    %v3126 = vadd.f32 %v2311, %v3125
    %3127 = vmatprep.mubr.bf16.mxu0 0
    %3128 = vmatmul.mubr.bf16.gmra.mrb[0].mxu0 %v2472
    %v3129 = vpop.f32.mrb[0].mxu0
    %v3130 = vadd.f32 %v2307, %v3129
    %v3131 = vpop.f32.mrb[0].mxu0
    %v3132 = vadd.f32 %v2311, %v3131
    %v3133 = vpop.f32.mrb[0].mxu0
    %v3134 = vadd.f32 %v2307, %v3133
    %v3135 = vpop.f32.mrb[0].mxu0
    %v3136 = vadd.f32 %v2311, %v3135
    %3137 = vmatprep.mubr.bf16.mxu0 0
    %3138 = vmatmul.mubr.bf16.gmra.mrb[0].mxu0 %v2475
    %v3139 = vpop.f32.mrb[0].mxu0
    %v3140 = vadd.f32 %v2307, %v3139
    %v3141 = vpop.f32.mrb[0].mxu0
    %v3142 = vadd.f32 %v2311, %v3141
    %v3143 = vpop.f32.mrb[0].mxu0
    %v3144 = vadd.f32 %v2307, %v3143
    %v3145 = vpop.f32.mrb[0].mxu0
    %v3146 = vadd.f32 %v2311, %v3145
    %3147 = vmatprep.mubr.bf16.mxu0 0
    %3148 = vmatmul.mubr.bf16.gmra.mrb[0].mxu0 %v2478
    %v3149 = vpop.f32.mrb[0].mxu0
    %v3150 = vadd.f32 %v2307, %v3149
    %v3151 = vpop.f32.mrb[0].mxu0
    %v3152 = vadd.f32 %v2311, %v3151
    %v3153 = vpop.f32.mrb[0].mxu0
    %v3154 = vadd.f32 %v2307, %v3153
    %v3155 = vpop.f32.mrb[0].mxu0
    %v3156 = vadd.f32 %v2311, %v3155
    %3157 = vmatprep.mubr.bf16.mxu0 0
    %3158 = vmatmul.mubr.bf16.gmra.mrb[0].mxu0 %v2481
    %v3159 = vpop.f32.mrb[0].mxu0
    %v3160 = vadd.f32 %v2307, %v3159
    %v3161 = vpop.f32.mrb[0].mxu0
    %v3162 = vadd.f32 %v2311, %v3161
    %v3163 = vpop.f32.mrb[0].mxu0
    %v3164 = vadd.f32 %v2307, %v3163
    %v3165 = vpop.f32.mrb[0].mxu0
    %v3166 = vadd.f32 %v2311, %v3165
    %3167 = vmatprep.mubr.bf16.mxu0 0
    %3168 = vmatmul.mubr.bf16.gmra.mrb[0].mxu0 %v2484
    %v3169 = vpop.f32.mrb[0].mxu0
    %v3170 = vadd.f32 %v2307, %v3169
    %v3171 = vpop.f32.mrb[0].mxu0
    %v3172 = vadd.f32 %v2311, %v3171
    %v3173 = vpop.f32.mrb[0].mxu0
    %v3174 = vadd.f32 %v2307, %v3173
    %v3175 = vpop.f32.mrb[0].mxu0
    %v3176 = vadd.f32 %v2311, %v3175
    %3177 = vmatprep.mubr.bf16.mxu0 0
    %3178 = vmatmul.mubr.bf16.gmra.mrb[0].mxu0 %v2487
    %v3179 = vpop.f32.mrb[0].mxu0
    %v3180 = vadd.f32 %v2307, %v3179
    %v3181 = vpop.f32.mrb[0].mxu0
    %v3182 = vadd.f32 %v2311, %v3181
    %v3183 = vpop.f32.mrb[0].mxu0
    %v3184 = vadd.f32 %v2307, %v3183
    %v3185 = vpop.f32.mrb[0].mxu0
    %v3186 = vadd.f32 %v2311, %v3185
    %3187 = vmatprep.mubr.bf16.mxu0 0
    %3188 = vmatmul.mubr.bf16.gmra.mrb[0].mxu0 %v2490
    %v3189 = vpop.f32.mrb[0].mxu0
    %v3190 = vadd.f32 %v2307, %v3189
    %v3191 = vpop.f32.mrb[0].mxu0
    %v3192 = vadd.f32 %v2311, %v3191
    %v3193 = vpop.f32.mrb[0].mxu0
    %v3194 = vadd.f32 %v2307, %v3193
    %v3195 = vpop.f32.mrb[0].mxu0
    %v3196 = vadd.f32 %v2311, %v3195
    %3197 = vdwg.mxu0
    %v3198 = vmax.f32 %v2527, 0.0
    %v3199 = vmax.f32 %v2529, 0.0
    %v3200 = vmax.f32 %v2880, 0.0
    %v3201 = vmax.f32 %v2882, 0.0
    %v3202 = vmax.f32 %v2531, 0.0
    %v3203 = vmax.f32 %v2533, 0.0
    %v3204 = vmax.f32 %v2884, 0.0
    %v3205 = vmax.f32 %v2886, 0.0
    %v3206 = vmax.f32 %v2537, 0.0
    %v3207 = vmax.f32 %v2539, 0.0
    %v3208 = vmax.f32 %v2890, 0.0
    %v3209 = vmax.f32 %v2892, 0.0
    %v3210 = vmax.f32 %v2541, 0.0
    %v3211 = vmax.f32 %v2543, 0.0
    %v3212 = vmax.f32 %v2894, 0.0
    %v3213 = vmax.f32 %v2896, 0.0
    %v3214 = vmax.f32 %v2547, 0.0
    %v3215 = vmax.f32 %v2549, 0.0
    %v3216 = vmax.f32 %v2900, 0.0
    %v3217 = vmax.f32 %v2902, 0.0
    %v3218 = vmax.f32 %v2551, 0.0
    %v3219 = vmax.f32 %v2553, 0.0
    %v3220 = vmax.f32 %v2904, 0.0
    %v3221 = vmax.f32 %v2906, 0.0
    %v3222 = vmax.f32 %v2557, 0.0
    %v3223 = vmax.f32 %v2559, 0.0
    %v3224 = vmax.f32 %v2910, 0.0
    %v3225 = vmax.f32 %v2912, 0.0
    %v3226 = vmax.f32 %v2561, 0.0
    %v3227 = vmax.f32 %v2563, 0.0
    %v3228 = vmax.f32 %v2914, 0.0
    %v3229 = vmax.f32 %v2916, 0.0
    %v3230 = vmax.f32 %v2567, 0.0
    %v3231 = vmax.f32 %v2569, 0.0
    %v3232 = vmax.f32 %v2920, 0.0
    %v3233 = vmax.f32 %v2922, 0.0
    %v3234 = vmax.f32 %v2571, 0.0
    %v3235 = vmax.f32 %v2573, 0.0
    %v3236 = vmax.f32 %v2924, 0.0
    %v3237 = vmax.f32 %v2926, 0.0
    %v3238 = vmax.f32 %v2577, 0.0
    %v3239 = vmax.f32 %v2579, 0.0
    %v3240 = vmax.f32 %v2930, 0.0
    %v3241 = vmax.f32 %v2932, 0.0
    %v3242 = vmax.f32 %v2581, 0.0
    %v3243 = vmax.f32 %v2583, 0.0
    %v3244 = vmax.f32 %v2934, 0.0
    %v3245 = vmax.f32 %v2936, 0.0
    %v3246 = vmax.f32 %v2587, 0.0
    %v3247 = vmax.f32 %v2589, 0.0
    %v3248 = vmax.f32 %v2940, 0.0
    %v3249 = vmax.f32 %v2942, 0.0
    %v3250 = vmax.f32 %v2591, 0.0
    %v3251 = vmax.f32 %v2593, 0.0
    %v3252 = vmax.f32 %v2944, 0.0
    %v3253 = vmax.f32 %v2946, 0.0
    %v3254 = vmax.f32 %v2597, 0.0
    %v3255 = vmax.f32 %v2599, 0.0
    %v3256 = vmax.f32 %v2950, 0.0
    %v3257 = vmax.f32 %v2952, 0.0
    %v3258 = vmax.f32 %v2601, 0.0
    %v3259 = vmax.f32 %v2603, 0.0
    %v3260 = vmax.f32 %v2954, 0.0
    %v3261 = vmax.f32 %v2956, 0.0
    %v3262 = vmax.f32 %v2607, 0.0
    %v3263 = vmax.f32 %v2609, 0.0
    %v3264 = vmax.f32 %v2960, 0.0
    %v3265 = vmax.f32 %v2962, 0.0
    %v3266 = vmax.f32 %v2611, 0.0
    %v3267 = vmax.f32 %v2613, 0.0
    %v3268 = vmax.f32 %v2964, 0.0
    %v3269 = vmax.f32 %v2966, 0.0
    %v3270 = vmax.f32 %v2617, 0.0
    %v3271 = vmax.f32 %v2619, 0.0
    %v3272 = vmax.f32 %v2970, 0.0
    %v3273 = vmax.f32 %v2972, 0.0
    %v3274 = vmax.f32 %v2621, 0.0
    %v3275 = vmax.f32 %v2623, 0.0
    %v3276 = vmax.f32 %v2974, 0.0
    %v3277 = vmax.f32 %v2976, 0.0
    %v3278 = vmax.f32 %v2627, 0.0
    %v3279 = vmax.f32 %v2629, 0.0
    %v3280 = vmax.f32 %v2980, 0.0
    %v3281 = vmax.f32 %v2982, 0.0
    %v3282 = vmax.f32 %v2631, 0.0
    %v3283 = vmax.f32 %v2633, 0.0
    %v3284 = vmax.f32 %v2984, 0.0
    %v3285 = vmax.f32 %v2986, 0.0
    %v3286 = vmax.f32 %v2637, 0.0
    %v3287 = vmax.f32 %v2639, 0.0
    %v3288 = vmax.f32 %v2990, 0.0
    %v3289 = vmax.f32 %v2992, 0.0
    %v3290 = vmax.f32 %v2641, 0.0
    %v3291 = vmax.f32 %v2643, 0.0
    %v3292 = vmax.f32 %v2994, 0.0
    %v3293 = vmax.f32 %v2996, 0.0
    %v3294 = vmax.f32 %v2647, 0.0
    %v3295 = vmax.f32 %v2649, 0.0
    %v3296 = vmax.f32 %v3000, 0.0
    %v3297 = vmax.f32 %v3002, 0.0
    %v3298 = vmax.f32 %v2651, 0.0
    %v3299 = vmax.f32 %v2653, 0.0
    %v3300 = vmax.f32 %v3004, 0.0
    %v3301 = vmax.f32 %v3006, 0.0
    %v3302 = vmax.f32 %v2657, 0.0
    %v3303 = vmax.f32 %v2659, 0.0
    %v3304 = vmax.f32 %v3010, 0.0
    %v3305 = vmax.f32 %v3012, 0.0
    %v3306 = vmax.f32 %v2661, 0.0
    %v3307 = vmax.f32 %v2663, 0.0
    %v3308 = vmax.f32 %v3014, 0.0
    %v3309 = vmax.f32 %v3016, 0.0
    %v3310 = vmax.f32 %v2667, 0.0
    %v3311 = vmax.f32 %v2669, 0.0
    %v3312 = vmax.f32 %v3020, 0.0
    %v3313 = vmax.f32 %v3022, 0.0
    %v3314 = vmax.f32 %v2671, 0.0
    %v3315 = vmax.f32 %v2673, 0.0
    %v3316 = vmax.f32 %v3024, 0.0
    %v3317 = vmax.f32 %v3026, 0.0
    %v3318 = vmax.f32 %v2677, 0.0
    %v3319 = vmax.f32 %v2679, 0.0
    %v3320 = vmax.f32 %v3030, 0.0
    %v3321 = vmax.f32 %v3032, 0.0
    %v3322 = vmax.f32 %v2681, 0.0
    %v3323 = vmax.f32 %v2683, 0.0
    %v3324 = vmax.f32 %v3034, 0.0
    %v3325 = vmax.f32 %v3036, 0.0
    %v3326 = vmax.f32 %v2687, 0.0
    %v3327 = vmax.f32 %v2689, 0.0
    %v3328 = vmax.f32 %v3040, 0.0
    %v3329 = vmax.f32 %v3042, 0.0
    %v3330 = vmax.f32 %v2691, 0.0
    %v3331 = vmax.f32 %v2693, 0.0
    %v3332 = vmax.f32 %v3044, 0.0
    %v3333 = vmax.f32 %v3046, 0.0
    %v3334 = vmax.f32 %v2697, 0.0
    %v3335 = vmax.f32 %v2699, 0.0
    %v3336 = vmax.f32 %v3050, 0.0
    %v3337 = vmax.f32 %v3052, 0.0
    %v3338 = vmax.f32 %v2701, 0.0
    %v3339 = vmax.f32 %v2703, 0.0
    %v3340 = vmax.f32 %v3054, 0.0
    %v3341 = vmax.f32 %v3056, 0.0
    %v3342 = vmax.f32 %v2707, 0.0
    %v3343 = vmax.f32 %v2709, 0.0
    %v3344 = vmax.f32 %v3060, 0.0
    %v3345 = vmax.f32 %v3062, 0.0
    %v3346 = vmax.f32 %v2711, 0.0
    %v3347 = vmax.f32 %v2713, 0.0
    %v3348 = vmax.f32 %v3064, 0.0
    %v3349 = vmax.f32 %v3066, 0.0
    %v3350 = vmax.f32 %v2717, 0.0
    %v3351 = vmax.f32 %v2719, 0.0
    %v3352 = vmax.f32 %v3070, 0.0
    %v3353 = vmax.f32 %v3072, 0.0
    %v3354 = vmax.f32 %v2721, 0.0
    %v3355 = vmax.f32 %v2723, 0.0
    %v3356 = vmax.f32 %v3074, 0.0
    %v3357 = vmax.f32 %v3076, 0.0
    %v3358 = vmax.f32 %v2727, 0.0
    %v3359 = vmax.f32 %v2729, 0.0
    %v3360 = vmax.f32 %v3080, 0.0
    %v3361 = vmax.f32 %v3082, 0.0
    %v3362 = vmax.f32 %v2731, 0.0
    %v3363 = vmax.f32 %v2733, 0.0
    %v3364 = vmax.f32 %v3084, 0.0
    %v3365 = vmax.f32 %v3086, 0.0
    %v3366 = vmax.f32 %v2737, 0.0
    %v3367 = vmax.f32 %v2739, 0.0
    %v3368 = vmax.f32 %v3090, 0.0
    %v3369 = vmax.f32 %v3092, 0.0
    %v3370 = vmax.f32 %v2741, 0.0
    %v3371 = vmax.f32 %v2743, 0.0
    %v3372 = vmax.f32 %v3094, 0.0
    %v3373 = vmax.f32 %v3096, 0.0
    %v3374 = vmax.f32 %v2747, 0.0
    %v3375 = vmax.f32 %v2749, 0.0
    %v3376 = vmax.f32 %v3100, 0.0
    %v3377 = vmax.f32 %v3102, 0.0
    %v3378 = vmax.f32 %v2751, 0.0
    %v3379 = vmax.f32 %v2753, 0.0
    %v3380 = vmax.f32 %v3104, 0.0
    %v3381 = vmax.f32 %v3106, 0.0
    %v3382 = vmax.f32 %v2757, 0.0
    %v3383 = vmax.f32 %v2759, 0.0
    %v3384 = vmax.f32 %v3110, 0.0
    %v3385 = vmax.f32 %v3112, 0.0
    %v3386 = vmax.f32 %v2761, 0.0
    %v3387 = vmax.f32 %v2763, 0.0
    %v3388 = vmax.f32 %v3114, 0.0
    %v3389 = vmax.f32 %v3116, 0.0
    %v3390 = vmax.f32 %v2767, 0.0
    %v3391 = vmax.f32 %v2769, 0.0
    %v3392 = vmax.f32 %v3120, 0.0
    %v3393 = vmax.f32 %v3122, 0.0
    %v3394 = vmax.f32 %v2771, 0.0
    %v3395 = vmax.f32 %v2773, 0.0
    %v3396 = vmax.f32 %v3124, 0.0
    %v3397 = vmax.f32 %v3126, 0.0
    %v3398 = vmax.f32 %v2777, 0.0
    %v3399 = vmax.f32 %v2779, 0.0
    %v3400 = vmax.f32 %v3130, 0.0
    %v3401 = vmax.f32 %v3132, 0.0
    %v3402 = vmax.f32 %v2781, 0.0
    %v3403 = vmax.f32 %v2783, 0.0
    %v3404 = vmax.f32 %v3134, 0.0
    %v3405 = vmax.f32 %v3136, 0.0
    %v3406 = vmax.f32 %v2787, 0.0
    %v3407 = vmax.f32 %v2789, 0.0
    %v3408 = vmax.f32 %v3140, 0.0
    %v3409 = vmax.f32 %v3142, 0.0
    %v3410 = vmax.f32 %v2791, 0.0
    %v3411 = vmax.f32 %v2793, 0.0
    %v3412 = vmax.f32 %v3144, 0.0
    %v3413 = vmax.f32 %v3146, 0.0
    %v3414 = vmax.f32 %v2797, 0.0
    %v3415 = vmax.f32 %v2799, 0.0
    %v3416 = vmax.f32 %v3150, 0.0
    %v3417 = vmax.f32 %v3152, 0.0
    %v3418 = vmax.f32 %v2801, 0.0
    %v3419 = vmax.f32 %v2803, 0.0
    %v3420 = vmax.f32 %v3154, 0.0
    %v3421 = vmax.f32 %v3156, 0.0
    %v3422 = vmax.f32 %v2807, 0.0
    %v3423 = vmax.f32 %v2809, 0.0
    %v3424 = vmax.f32 %v3160, 0.0
    %v3425 = vmax.f32 %v3162, 0.0
    %v3426 = vmax.f32 %v2811, 0.0
    %v3427 = vmax.f32 %v2813, 0.0
    %v3428 = vmax.f32 %v3164, 0.0
    %v3429 = vmax.f32 %v3166, 0.0
    %v3430 = vmax.f32 %v2817, 0.0
    %v3431 = vmax.f32 %v2819, 0.0
    %v3432 = vmax.f32 %v3170, 0.0
    %v3433 = vmax.f32 %v3172, 0.0
    %v3434 = vmax.f32 %v2821, 0.0
    %v3435 = vmax.f32 %v2823, 0.0
    %v3436 = vmax.f32 %v3174, 0.0
    %v3437 = vmax.f32 %v3176, 0.0
    %v3438 = vmax.f32 %v2827, 0.0
    %v3439 = vmax.f32 %v2829, 0.0
    %v3440 = vmax.f32 %v3180, 0.0
    %v3441 = vmax.f32 %v3182, 0.0
    %v3442 = vmax.f32 %v2831, 0.0
    %v3443 = vmax.f32 %v2833, 0.0
    %v3444 = vmax.f32 %v3184, 0.0
    %v3445 = vmax.f32 %v3186, 0.0
    %v3446 = vmax.f32 %v2837, 0.0
    %v3447 = vmax.f32 %v2839, 0.0
    %v3448 = vmax.f32 %v3190, 0.0
    %v3449 = vmax.f32 %v3192, 0.0
    %v3450 = vmax.f32 %v2841, 0.0
    %v3451 = vmax.f32 %v2843, 0.0
    %v3452 = vmax.f32 %v3194, 0.0
    %v3453 = vmax.f32 %v3196, 0.0
    %v3454 = vadd.f32 %v3198, %v3202
    %v3455 = vadd.f32 %v3454, %v3206
    %v3456 = vadd.f32 %v3455, %v3210
    %v3457 = vadd.f32 %v3456, %v3214
    %v3458 = vadd.f32 %v3457, %v3218
    %v3459 = vadd.f32 %v3458, %v3222
    %v3460 = vadd.f32 %v3459, %v3226
    %v3461 = vadd.f32 %v3460, %v3230
    %v3462 = vadd.f32 %v3461, %v3234
    %v3463 = vadd.f32 %v3462, %v3238
    %v3464 = vadd.f32 %v3463, %v3242
    %v3465 = vadd.f32 %v3464, %v3246
    %v3466 = vadd.f32 %v3465, %v3250
    %v3467 = vadd.f32 %v3466, %v3254
    %v3468 = vadd.f32 %v3467, %v3258
    %v3469 = vadd.f32 %v3468, %v3262
    %v3470 = vadd.f32 %v3469, %v3266
    %v3471 = vadd.f32 %v3470, %v3270
    %v3472 = vadd.f32 %v3471, %v3274
    %v3473 = vadd.f32 %v3472, %v3278
    %v3474 = vadd.f32 %v3473, %v3282
    %v3475 = vadd.f32 %v3474, %v3286
    %v3476 = vadd.f32 %v3475, %v3290
    %v3477 = vadd.f32 %v3476, %v3294
    %v3478 = vadd.f32 %v3477, %v3298
    %v3479 = vadd.f32 %v3478, %v3302
    %v3480 = vadd.f32 %v3479, %v3306
    %v3481 = vadd.f32 %v3480, %v3310
    %v3482 = vadd.f32 %v3481, %v3314
    %v3483 = vadd.f32 %v3482, %v3318
    %v3484 = vadd.f32 %v3483, %v3322
    %v3485 = vrot.slane %v3484, 4
    %v3486 = vadd.f32 %v3484, %v3485
    %v3487 = vrot.slane %v3486, 2
    %v3488 = vadd.f32 %v3486, %v3487
    %v3489 = vrot.slane %v3488, 1
    %v3490 = vadd.f32 %v3488, %v3489
    %v3491 = vadd.f32 %v3199, %v3203
    %v3492 = vadd.f32 %v3491, %v3207
    %v3493 = vadd.f32 %v3492, %v3211
    %v3494 = vadd.f32 %v3493, %v3215
    %v3495 = vadd.f32 %v3494, %v3219
    %v3496 = vadd.f32 %v3495, %v3223
    %v3497 = vadd.f32 %v3496, %v3227
    %v3498 = vadd.f32 %v3497, %v3231
    %v3499 = vadd.f32 %v3498, %v3235
    %v3500 = vadd.f32 %v3499, %v3239
    %v3501 = vadd.f32 %v3500, %v3243
    %v3502 = vadd.f32 %v3501, %v3247
    %v3503 = vadd.f32 %v3502, %v3251
    %v3504 = vadd.f32 %v3503, %v3255
    %v3505 = vadd.f32 %v3504, %v3259
    %v3506 = vadd.f32 %v3505, %v3263
    %v3507 = vadd.f32 %v3506, %v3267
    %v3508 = vadd.f32 %v3507, %v3271
    %v3509 = vadd.f32 %v3508, %v3275
    %v3510 = vadd.f32 %v3509, %v3279
    %v3511 = vadd.f32 %v3510, %v3283
    %v3512 = vadd.f32 %v3511, %v3287
    %v3513 = vadd.f32 %v3512, %v3291
    %v3514 = vadd.f32 %v3513, %v3295
    %v3515 = vadd.f32 %v3514, %v3299
    %v3516 = vadd.f32 %v3515, %v3303
    %v3517 = vadd.f32 %v3516, %v3307
    %v3518 = vadd.f32 %v3517, %v3311
    %v3519 = vadd.f32 %v3518, %v3315
    %v3520 = vadd.f32 %v3519, %v3319
    %v3521 = vadd.f32 %v3520, %v3323
    %v3522 = vrot.slane %v3521, 4
    %v3523 = vadd.f32 %v3521, %v3522
    %v3524 = vrot.slane %v3523, 2
    %v3525 = vadd.f32 %v3523, %v3524
    %v3526 = vrot.slane %v3525, 1
    %v3527 = vadd.f32 %v3525, %v3526
    %v3528 = vadd.f32 %v3200, %v3204
    %v3529 = vadd.f32 %v3528, %v3208
    %v3530 = vadd.f32 %v3529, %v3212
    %v3531 = vadd.f32 %v3530, %v3216
    %v3532 = vadd.f32 %v3531, %v3220
    %v3533 = vadd.f32 %v3532, %v3224
    %v3534 = vadd.f32 %v3533, %v3228
    %v3535 = vadd.f32 %v3534, %v3232
    %v3536 = vadd.f32 %v3535, %v3236
    %v3537 = vadd.f32 %v3536, %v3240
    %v3538 = vadd.f32 %v3537, %v3244
    %v3539 = vadd.f32 %v3538, %v3248
    %v3540 = vadd.f32 %v3539, %v3252
    %v3541 = vadd.f32 %v3540, %v3256
    %v3542 = vadd.f32 %v3541, %v3260
    %v3543 = vadd.f32 %v3542, %v3264
    %v3544 = vadd.f32 %v3543, %v3268
    %v3545 = vadd.f32 %v3544, %v3272
    %v3546 = vadd.f32 %v3545, %v3276
    %v3547 = vadd.f32 %v3546, %v3280
    %v3548 = vadd.f32 %v3547, %v3284
    %v3549 = vadd.f32 %v3548, %v3288
    %v3550 = vadd.f32 %v3549, %v3292
    %v3551 = vadd.f32 %v3550, %v3296
    %v3552 = vadd.f32 %v3551, %v3300
    %v3553 = vadd.f32 %v3552, %v3304
    %v3554 = vadd.f32 %v3553, %v3308
    %v3555 = vadd.f32 %v3554, %v3312
    %v3556 = vadd.f32 %v3555, %v3316
    %v3557 = vadd.f32 %v3556, %v3320
    %v3558 = vadd.f32 %v3557, %v3324
    %v3559 = vrot.slane %v3558, 4
    %v3560 = vadd.f32 %v3558, %v3559
    %v3561 = vrot.slane %v3560, 2
    %v3562 = vadd.f32 %v3560, %v3561
    %v3563 = vrot.slane %v3562, 1
    %v3564 = vadd.f32 %v3562, %v3563
    %v3565 = vadd.f32 %v3201, %v3205
    %v3566 = vadd.f32 %v3565, %v3209
    %v3567 = vadd.f32 %v3566, %v3213
    %v3568 = vadd.f32 %v3567, %v3217
    %v3569 = vadd.f32 %v3568, %v3221
    %v3570 = vadd.f32 %v3569, %v3225
    %v3571 = vadd.f32 %v3570, %v3229
    %v3572 = vadd.f32 %v3571, %v3233
    %v3573 = vadd.f32 %v3572, %v3237
    %v3574 = vadd.f32 %v3573, %v3241
    %v3575 = vadd.f32 %v3574, %v3245
    %v3576 = vadd.f32 %v3575, %v3249
    %v3577 = vadd.f32 %v3576, %v3253
    %v3578 = vadd.f32 %v3577, %v3257
    %v3579 = vadd.f32 %v3578, %v3261
    %v3580 = vadd.f32 %v3579, %v3265
    %v3581 = vadd.f32 %v3580, %v3269
    %v3582 = vadd.f32 %v3581, %v3273
    %v3583 = vadd.f32 %v3582, %v3277
    %v3584 = vadd.f32 %v3583, %v3281
    %v3585 = vadd.f32 %v3584, %v3285
    %v3586 = vadd.f32 %v3585, %v3289
    %v3587 = vadd.f32 %v3586, %v3293
    %v3588 = vadd.f32 %v3587, %v3297
    %v3589 = vadd.f32 %v3588, %v3301
    %v3590 = vadd.f32 %v3589, %v3305
    %v3591 = vadd.f32 %v3590, %v3309
    %v3592 = vadd.f32 %v3591, %v3313
    %v3593 = vadd.f32 %v3592, %v3317
    %v3594 = vadd.f32 %v3593, %v3321
    %v3595 = vadd.f32 %v3594, %v3325
    %v3596 = vrot.slane %v3595, 4
    %v3597 = vadd.f32 %v3595, %v3596
    %v3598 = vrot.slane %v3597, 2
    %v3599 = vadd.f32 %v3597, %v3598
    %v3600 = vrot.slane %v3599, 1
    %v3601 = vadd.f32 %v3599, %v3600
    %v3602 = vadd.f32 %v3326, %v3330
    %v3603 = vadd.f32 %v3602, %v3334
    %v3604 = vadd.f32 %v3603, %v3338
    %v3605 = vadd.f32 %v3604, %v3342
    %v3606 = vadd.f32 %v3605, %v3346
    %v3607 = vadd.f32 %v3606, %v3350
    %v3608 = vadd.f32 %v3607, %v3354
    %v3609 = vadd.f32 %v3608, %v3358
    %v3610 = vadd.f32 %v3609, %v3362
    %v3611 = vadd.f32 %v3610, %v3366
    %v3612 = vadd.f32 %v3611, %v3370
    %v3613 = vadd.f32 %v3612, %v3374
    %v3614 = vadd.f32 %v3613, %v3378
    %v3615 = vadd.f32 %v3614, %v3382
    %v3616 = vadd.f32 %v3615, %v3386
    %v3617 = vadd.f32 %v3616, %v3390
    %v3618 = vadd.f32 %v3617, %v3394
    %v3619 = vadd.f32 %v3618, %v3398
    %v3620 = vadd.f32 %v3619, %v3402
    %v3621 = vadd.f32 %v3620, %v3406
    %v3622 = vadd.f32 %v3621, %v3410
    %v3623 = vadd.f32 %v3622, %v3414
    %v3624 = vadd.f32 %v3623, %v3418
    %v3625 = vadd.f32 %v3624, %v3422
    %v3626 = vadd.f32 %v3625, %v3426
    %v3627 = vadd.f32 %v3626, %v3430
    %v3628 = vadd.f32 %v3627, %v3434
    %v3629 = vadd.f32 %v3628, %v3438
    %v3630 = vadd.f32 %v3629, %v3442
    %v3631 = vadd.f32 %v3630, %v3446
    %v3632 = vadd.f32 %v3631, %v3450
    %v3633 = vrot.slane %v3632, 4
    %v3634 = vadd.f32 %v3632, %v3633
    %v3635 = vrot.slane %v3634, 2
    %v3636 = vadd.f32 %v3634, %v3635
    %v3637 = vrot.slane %v3636, 1
    %v3638 = vadd.f32 %v3636, %v3637
    %v3639 = vadd.f32 %v3327, %v3331
    %v3640 = vadd.f32 %v3639, %v3335
    %v3641 = vadd.f32 %v3640, %v3339
    %v3642 = vadd.f32 %v3641, %v3343
    %v3643 = vadd.f32 %v3642, %v3347
    %v3644 = vadd.f32 %v3643, %v3351
    %v3645 = vadd.f32 %v3644, %v3355
    %v3646 = vadd.f32 %v3645, %v3359
    %v3647 = vadd.f32 %v3646, %v3363
    %v3648 = vadd.f32 %v3647, %v3367
    %v3649 = vadd.f32 %v3648, %v3371
    %v3650 = vadd.f32 %v3649, %v3375
    %v3651 = vadd.f32 %v3650, %v3379
    %v3652 = vadd.f32 %v3651, %v3383
    %v3653 = vadd.f32 %v3652, %v3387
    %v3654 = vadd.f32 %v3653, %v3391
    %v3655 = vadd.f32 %v3654, %v3395
    %v3656 = vadd.f32 %v3655, %v3399
    %v3657 = vadd.f32 %v3656, %v3403
    %v3658 = vadd.f32 %v3657, %v3407
    %v3659 = vadd.f32 %v3658, %v3411
    %v3660 = vadd.f32 %v3659, %v3415
    %v3661 = vadd.f32 %v3660, %v3419
    %v3662 = vadd.f32 %v3661, %v3423
    %v3663 = vadd.f32 %v3662, %v3427
    %v3664 = vadd.f32 %v3663, %v3431
    %v3665 = vadd.f32 %v3664, %v3435
    %v3666 = vadd.f32 %v3665, %v3439
    %v3667 = vadd.f32 %v3666, %v3443
    %v3668 = vadd.f32 %v3667, %v3447
    %v3669 = vadd.f32 %v3668, %v3451
    %v3670 = vrot.slane %v3669, 4
    %v3671 = vadd.f32 %v3669, %v3670
    %v3672 = vrot.slane %v3671, 2
    %v3673 = vadd.f32 %v3671, %v3672
    %v3674 = vrot.slane %v3673, 1
    %v3675 = vadd.f32 %v3673, %v3674
    %v3676 = vadd.f32 %v3328, %v3332
    %v3677 = vadd.f32 %v3676, %v3336
    %v3678 = vadd.f32 %v3677, %v3340
    %v3679 = vadd.f32 %v3678, %v3344
    %v3680 = vadd.f32 %v3679, %v3348
    %v3681 = vadd.f32 %v3680, %v3352
    %v3682 = vadd.f32 %v3681, %v3356
    %v3683 = vadd.f32 %v3682, %v3360
    %v3684 = vadd.f32 %v3683, %v3364
    %v3685 = vadd.f32 %v3684, %v3368
    %v3686 = vadd.f32 %v3685, %v3372
    %v3687 = vadd.f32 %v3686, %v3376
    %v3688 = vadd.f32 %v3687, %v3380
    %v3689 = vadd.f32 %v3688, %v3384
    %v3690 = vadd.f32 %v3689, %v3388
    %v3691 = vadd.f32 %v3690, %v3392
    %v3692 = vadd.f32 %v3691, %v3396
    %v3693 = vadd.f32 %v3692, %v3400
    %v3694 = vadd.f32 %v3693, %v3404
    %v3695 = vadd.f32 %v3694, %v3408
    %v3696 = vadd.f32 %v3695, %v3412
    %v3697 = vadd.f32 %v3696, %v3416
    %v3698 = vadd.f32 %v3697, %v3420
    %v3699 = vadd.f32 %v3698, %v3424
    %v3700 = vadd.f32 %v3699, %v3428
    %v3701 = vadd.f32 %v3700, %v3432
    %v3702 = vadd.f32 %v3701, %v3436
    %v3703 = vadd.f32 %v3702, %v3440
    %v3704 = vadd.f32 %v3703, %v3444
    %v3705 = vadd.f32 %v3704, %v3448
    %v3706 = vadd.f32 %v3705, %v3452
    %v3707 = vrot.slane %v3706, 4
    %v3708 = vadd.f32 %v3706, %v3707
    %v3709 = vrot.slane %v3708, 2
    %v3710 = vadd.f32 %v3708, %v3709
    %v3711 = vrot.slane %v3710, 1
    %v3712 = vadd.f32 %v3710, %v3711
    %v3713 = vadd.f32 %v3329, %v3333
    %v3714 = vadd.f32 %v3713, %v3337
    %v3715 = vadd.f32 %v3714, %v3341
    %v3716 = vadd.f32 %v3715, %v3345
    %v3717 = vadd.f32 %v3716, %v3349
    %v3718 = vadd.f32 %v3717, %v3353
    %v3719 = vadd.f32 %v3718, %v3357
    %v3720 = vadd.f32 %v3719, %v3361
    %v3721 = vadd.f32 %v3720, %v3365
    %v3722 = vadd.f32 %v3721, %v3369
    %v3723 = vadd.f32 %v3722, %v3373
    %v3724 = vadd.f32 %v3723, %v3377
    %v3725 = vadd.f32 %v3724, %v3381
    %v3726 = vadd.f32 %v3725, %v3385
    %v3727 = vadd.f32 %v3726, %v3389
    %v3728 = vadd.f32 %v3727, %v3393
    %v3729 = vadd.f32 %v3728, %v3397
    %v3730 = vadd.f32 %v3729, %v3401
    %v3731 = vadd.f32 %v3730, %v3405
    %v3732 = vadd.f32 %v3731, %v3409
    %v3733 = vadd.f32 %v3732, %v3413
    %v3734 = vadd.f32 %v3733, %v3417
    %v3735 = vadd.f32 %v3734, %v3421
    %v3736 = vadd.f32 %v3735, %v3425
    %v3737 = vadd.f32 %v3736, %v3429
    %v3738 = vadd.f32 %v3737, %v3433
    %v3739 = vadd.f32 %v3738, %v3437
    %v3740 = vadd.f32 %v3739, %v3441
    %v3741 = vadd.f32 %v3740, %v3445
    %v3742 = vadd.f32 %v3741, %v3449
    %v3743 = vadd.f32 %v3742, %v3453
    %v3744 = vrot.slane %v3743, 4
    %v3745 = vadd.f32 %v3743, %v3744
    %v3746 = vrot.slane %v3745, 2
    %v3747 = vadd.f32 %v3745, %v3746
    %v3748 = vrot.slane %v3747, 1
    %v3749 = vadd.f32 %v3747, %v3748
    %vm3750 = vcmask 1040384
    %v3751 = vsel %vm3750, %v3490, %v3638
    %v3752 = vsel %vm3750, %v3527, %v3675
    %v3753 = vsel %vm3750, %v3564, %v3712
    %v3754 = vsel %vm3750, %v3601, %v3749
    %v3755 = vpack.c.bf16 %v3751, %v3751
    %v3756 = vpack.c.bf16 %v3752, %v3752
    %v3757 = vpack.c.bf16 %v3753, %v3753
    %v3758 = vpack.c.bf16 %v3754, %v3754
    %v3759 = vld [vmem:[%s3] sm:$0xf]
    %v3760 = vld [vmem:[%s3 + $0x4] sm:$0xf]
    %v3761 = vld [vmem:[%s3 + $0x8] sm:$0xf]
    %v3762 = vld [vmem:[%s3 + $0xc] sm:$0xf]
    %v3763 = vld [vmem:[%s3 + $0x10] sm:$0xf]
    %v3764 = vld [vmem:[%s3 + $0x14] sm:$0xf]
    %v3765 = vld [vmem:[%s3 + $0x18] sm:$0xf]
    %v3766 = vld [vmem:[%s3 + $0x1c] sm:$0xf]
    %v3767 = vld [vmem:[%s3 + $0x20] sm:$0xf]
    %v3768 = vld [vmem:[%s3 + $0x24] sm:$0xf]
    %v3769 = vld [vmem:[%s3 + $0x28] sm:$0xf]
    %v3770 = vld [vmem:[%s3 + $0x2c] sm:$0xf]
    %v3771 = vld [vmem:[%s3 + $0x30] sm:$0xf]
    %v3772 = vld [vmem:[%s3 + $0x34] sm:$0xf]
    %v3773 = vld [vmem:[%s3 + $0x38] sm:$0xf]
    %v3774 = vld [vmem:[%s3 + $0x3c] sm:$0xf]
    %v3775 = vld [vmem:[%s3 + $0x40] sm:$0xf]
    %v3776 = vld [vmem:[%s3 + $0x44] sm:$0xf]
    %v3777 = vld [vmem:[%s3 + $0x48] sm:$0xf]
    %v3778 = vld [vmem:[%s3 + $0x4c] sm:$0xf]
    %v3779 = vld [vmem:[%s3 + $0x50] sm:$0xf]
    %v3780 = vld [vmem:[%s3 + $0x54] sm:$0xf]
    %v3781 = vld [vmem:[%s3 + $0x58] sm:$0xf]
    %v3782 = vld [vmem:[%s3 + $0x5c] sm:$0xf]
    %v3783 = vld [vmem:[%s3 + $0x60] sm:$0xf]
    %v3784 = vld [vmem:[%s3 + $0x64] sm:$0xf]
    %v3785 = vld [vmem:[%s3 + $0x68] sm:$0xf]
    %v3786 = vld [vmem:[%s3 + $0x6c] sm:$0xf]
    %v3787 = vld [vmem:[%s3 + $0x70] sm:$0xf]
    %v3788 = vld [vmem:[%s3 + $0x74] sm:$0xf]
    %v3789 = vld [vmem:[%s3 + $0x78] sm:$0xf]
    %v3790 = vld [vmem:[%s3 + $0x7c] sm:$0xf]
    %v3791 = vld [vmem:[%s3 + $0x80] sm:$0xf]
    %v3792 = vld [vmem:[%s3 + $0x84] sm:$0xf]
    %v3793 = vld [vmem:[%s3 + $0x88] sm:$0xf]
    %v3794 = vld [vmem:[%s3 + $0x8c] sm:$0xf]
    %v3795 = vld [vmem:[%s3 + $0x90] sm:$0xf]
    %v3796 = vld [vmem:[%s3 + $0x94] sm:$0xf]
    %v3797 = vld [vmem:[%s3 + $0x98] sm:$0xf]
    %v3798 = vld [vmem:[%s3 + $0x9c] sm:$0xf]
    %v3799 = vld [vmem:[%s3 + $0xa0] sm:$0xf]
    %v3800 = vld [vmem:[%s3 + $0xa4] sm:$0xf]
    %v3801 = vld [vmem:[%s3 + $0xa8] sm:$0xf]
    %v3802 = vld [vmem:[%s3 + $0xac] sm:$0xf]
    %v3803 = vld [vmem:[%s3 + $0xb0] sm:$0xf]
    %v3804 = vld [vmem:[%s3 + $0xb4] sm:$0xf]
    %v3805 = vld [vmem:[%s3 + $0xb8] sm:$0xf]
    %v3806 = vld [vmem:[%s3 + $0xbc] sm:$0xf]
    %v3807 = vld [vmem:[%s3 + $0xc0] sm:$0xf]
    %v3808 = vld [vmem:[%s3 + $0xc4] sm:$0xf]
    %v3809 = vld [vmem:[%s3 + $0xc8] sm:$0xf]
    %v3810 = vld [vmem:[%s3 + $0xcc] sm:$0xf]
    %v3811 = vld [vmem:[%s3 + $0xd0] sm:$0xf]
    %v3812 = vld [vmem:[%s3 + $0xd4] sm:$0xf]
    %v3813 = vld [vmem:[%s3 + $0xd8] sm:$0xf]
    %v3814 = vld [vmem:[%s3 + $0xdc] sm:$0xf]
    %v3815 = vld [vmem:[%s3 + $0xe0] sm:$0xf]
    %v3816 = vld [vmem:[%s3 + $0xe4] sm:$0xf]
    %v3817 = vld [vmem:[%s3 + $0xe8] sm:$0xf]
    %v3818 = vld [vmem:[%s3 + $0xec] sm:$0xf]
    %v3819 = vld [vmem:[%s3 + $0xf0] sm:$0xf]
    %v3820 = vld [vmem:[%s3 + $0xf4] sm:$0xf]
    %v3821 = vld [vmem:[%s3 + $0xf8] sm:$0xf]
    %v3822 = vld [vmem:[%s3 + $0xfc] sm:$0xf]
    %v3823 = vld [vmem:[%s4] sm:$0x1]
    %v3825 = vlaneseq
    %v3826 = vshrl.u32 %v3825, 7
    %v3827 = vsub.s32 0, %v3826
    %v3828 = vrot.slane %v3823, %v3827
    %v3894 = vunpack.c.l.b16 %v3759
    %v3895 = vunpack.c.l.b16 %v3760
    %v3896 = vunpack.c.l.b16 %v3761
    %v3897 = vunpack.c.l.b16 %v3762
    %v3898 = vunpack.c.l.b16 %v3763
    %v3899 = vunpack.c.l.b16 %v3764
    %v3900 = vunpack.c.l.b16 %v3765
    %v3901 = vunpack.c.l.b16 %v3766
    %v3902 = vunpack.c.l.b16 %v3767
    %v3903 = vunpack.c.l.b16 %v3768
    %v3904 = vunpack.c.l.b16 %v3769
    %v3905 = vunpack.c.l.b16 %v3770
    %v3906 = vunpack.c.l.b16 %v3771
    %v3907 = vunpack.c.l.b16 %v3772
    %v3908 = vunpack.c.l.b16 %v3773
    %v3909 = vunpack.c.l.b16 %v3774
    %v3910 = vunpack.c.l.b16 %v3775
    %v3911 = vunpack.c.l.b16 %v3776
    %v3912 = vunpack.c.l.b16 %v3777
    %v3913 = vunpack.c.l.b16 %v3778
    %v3914 = vunpack.c.l.b16 %v3779
    %v3915 = vunpack.c.l.b16 %v3780
    %v3916 = vunpack.c.l.b16 %v3781
    %v3917 = vunpack.c.l.b16 %v3782
    %v3918 = vunpack.c.l.b16 %v3783
    %v3919 = vunpack.c.l.b16 %v3784
    %v3920 = vunpack.c.l.b16 %v3785
    %v3921 = vunpack.c.l.b16 %v3786
    %v3922 = vunpack.c.l.b16 %v3787
    %v3923 = vunpack.c.l.b16 %v3788
    %v3924 = vunpack.c.l.b16 %v3789
    %v3925 = vunpack.c.l.b16 %v3790
    %v3926 = vunpack.c.l.b16 %v3791
    %v3927 = vunpack.c.l.b16 %v3792
    %v3928 = vunpack.c.l.b16 %v3793
    %v3929 = vunpack.c.l.b16 %v3794
    %v3930 = vunpack.c.l.b16 %v3795
    %v3931 = vunpack.c.l.b16 %v3796
    %v3932 = vunpack.c.l.b16 %v3797
    %v3933 = vunpack.c.l.b16 %v3798
    %v3934 = vunpack.c.l.b16 %v3799
    %v3935 = vunpack.c.l.b16 %v3800
    %v3936 = vunpack.c.l.b16 %v3801
    %v3937 = vunpack.c.l.b16 %v3802
    %v3938 = vunpack.c.l.b16 %v3803
    %v3939 = vunpack.c.l.b16 %v3804
    %v3940 = vunpack.c.l.b16 %v3805
    %v3941 = vunpack.c.l.b16 %v3806
    %v3942 = vunpack.c.l.b16 %v3807
    %v3943 = vunpack.c.l.b16 %v3808
    %v3944 = vunpack.c.l.b16 %v3809
    %v3945 = vunpack.c.l.b16 %v3810
    %v3946 = vunpack.c.l.b16 %v3811
    %v3947 = vunpack.c.l.b16 %v3812
    %v3948 = vunpack.c.l.b16 %v3813
    %v3949 = vunpack.c.l.b16 %v3814
    %v3950 = vunpack.c.l.b16 %v3815
    %v3951 = vunpack.c.l.b16 %v3816
    %v3952 = vunpack.c.l.b16 %v3817
    %v3953 = vunpack.c.l.b16 %v3818
    %v3954 = vunpack.c.l.b16 %v3819
    %v3955 = vunpack.c.l.b16 %v3820
    %v3956 = vunpack.c.l.b16 %v3821
    %v3957 = vunpack.c.l.b16 %v3822
    %v3958 = vpack.c.b16 %v3895, %v3894
    %v3959 = vpack.c.b16 %v3897, %v3896
    %v3960 = vpack.c.b16 %v3899, %v3898
    %v3961 = vpack.c.b16 %v3901, %v3900
    %v3962 = vpack.c.b16 %v3903, %v3902
    %v3963 = vpack.c.b16 %v3905, %v3904
    %v3964 = vpack.c.b16 %v3907, %v3906
    %v3965 = vpack.c.b16 %v3909, %v3908
    %v3966 = vpack.c.b16 %v3911, %v3910
    %v3967 = vpack.c.b16 %v3913, %v3912
    %v3968 = vpack.c.b16 %v3915, %v3914
    %v3969 = vpack.c.b16 %v3917, %v3916
    %v3970 = vpack.c.b16 %v3919, %v3918
    %v3971 = vpack.c.b16 %v3921, %v3920
    %v3972 = vpack.c.b16 %v3923, %v3922
    %v3973 = vpack.c.b16 %v3925, %v3924
    %v3974 = vpack.c.b16 %v3927, %v3926
    %v3975 = vpack.c.b16 %v3929, %v3928
    %v3976 = vpack.c.b16 %v3931, %v3930
    %v3977 = vpack.c.b16 %v3933, %v3932
    %v3978 = vpack.c.b16 %v3935, %v3934
    %v3979 = vpack.c.b16 %v3937, %v3936
    %v3980 = vpack.c.b16 %v3939, %v3938
    %v3981 = vpack.c.b16 %v3941, %v3940
    %v3982 = vpack.c.b16 %v3943, %v3942
    %v3983 = vpack.c.b16 %v3945, %v3944
    %v3984 = vpack.c.b16 %v3947, %v3946
    %v3985 = vpack.c.b16 %v3949, %v3948
    %v3986 = vpack.c.b16 %v3951, %v3950
    %v3987 = vpack.c.b16 %v3953, %v3952
    %v3988 = vpack.c.b16 %v3955, %v3954
    %v3989 = vpack.c.b16 %v3957, %v3956
    %4022 = vmatprep.subr.bf16.mxu0 0
    %4023 = vmatpush1.bf16.msra.mxu0 %v3958
    %4024 = vmatprep.subr.bf16.mxu0 0
    %4025 = vmatpush1.bf16.msra.mxu0 %v3959
    %4026 = vmatprep.subr.bf16.mxu0 0
    %4027 = vmatpush1.bf16.msra.mxu0 %v3960
    %4028 = vmatprep.subr.bf16.mxu0 0
    %4029 = vmatpush1.bf16.msra.mxu0 %v3961
    %4030 = vmatprep.subr.bf16.mxu0 0
    %4031 = vmatpush1.bf16.msra.mxu0 %v3962
    %4032 = vmatprep.subr.bf16.mxu0 0
    %4033 = vmatpush1.bf16.msra.mxu0 %v3963
    %4034 = vmatprep.subr.bf16.mxu0 0
    %4035 = vmatpush1.bf16.msra.mxu0 %v3964
    %4036 = vmatprep.subr.bf16.mxu0 0
    %4037 = vmatpush1.bf16.msra.mxu0 %v3965
    %4038 = vmatprep.subr.bf16.mxu0 0
    %4039 = vmatpush1.bf16.msra.mxu0 %v3966
    %4040 = vmatprep.subr.bf16.mxu0 0
    %4041 = vmatpush1.bf16.msra.mxu0 %v3967
    %4042 = vmatprep.subr.bf16.mxu0 0
    %4043 = vmatpush1.bf16.msra.mxu0 %v3968
    %4044 = vmatprep.subr.bf16.mxu0 0
    %4045 = vmatpush1.bf16.msra.mxu0 %v3969
    %4046 = vmatprep.subr.bf16.mxu0 0
    %4047 = vmatpush1.bf16.msra.mxu0 %v3970
    %4048 = vmatprep.subr.bf16.mxu0 0
    %4049 = vmatpush1.bf16.msra.mxu0 %v3971
    %4050 = vmatprep.subr.bf16.mxu0 0
    %4051 = vmatpush1.bf16.msra.mxu0 %v3972
    %4052 = vmatprep.subr.bf16.mxu0 0
    %4053 = vmatpush1.bf16.msra.mxu0 %v3973
    %4054 = vmatprep.mubr.bf16.mxu0 %v3756
    %4055 = vmatmul.mubr.bf16.gmra.mrb[0].mxu0 %v3755
    %v4056 = vpop.f32.mrb[0].mxu0
    %v4057 = vadd.f32 %v3828, %v4056
    %v4058 = vpop.f32.mrb[0].mxu0
    %v4059 = vpop.f32.mrb[0].mxu0
    %v4060 = vpop.f32.mrb[0].mxu0
    %4061 = vdwg.mxu0
    %4062 = vmatprep.subr.bf16.mxu0 0
    %4063 = vmatpush1.bf16.msra.mxu0 %v3974
    %4064 = vmatprep.subr.bf16.mxu0 0
    %4065 = vmatpush1.bf16.msra.mxu0 %v3975
    %4066 = vmatprep.subr.bf16.mxu0 0
    %4067 = vmatpush1.bf16.msra.mxu0 %v3976
    %4068 = vmatprep.subr.bf16.mxu0 0
    %4069 = vmatpush1.bf16.msra.mxu0 %v3977
    %4070 = vmatprep.subr.bf16.mxu0 0
    %4071 = vmatpush1.bf16.msra.mxu0 %v3978
    %4072 = vmatprep.subr.bf16.mxu0 0
    %4073 = vmatpush1.bf16.msra.mxu0 %v3979
    %4074 = vmatprep.subr.bf16.mxu0 0
    %4075 = vmatpush1.bf16.msra.mxu0 %v3980
    %4076 = vmatprep.subr.bf16.mxu0 0
    %4077 = vmatpush1.bf16.msra.mxu0 %v3981
    %4078 = vmatprep.subr.bf16.mxu0 0
    %4079 = vmatpush1.bf16.msra.mxu0 %v3982
    %4080 = vmatprep.subr.bf16.mxu0 0
    %4081 = vmatpush1.bf16.msra.mxu0 %v3983
    %4082 = vmatprep.subr.bf16.mxu0 0
    %4083 = vmatpush1.bf16.msra.mxu0 %v3984
    %4084 = vmatprep.subr.bf16.mxu0 0
    %4085 = vmatpush1.bf16.msra.mxu0 %v3985
    %4086 = vmatprep.subr.bf16.mxu0 0
    %4087 = vmatpush1.bf16.msra.mxu0 %v3986
    %4088 = vmatprep.subr.bf16.mxu0 0
    %4089 = vmatpush1.bf16.msra.mxu0 %v3987
    %4090 = vmatprep.subr.bf16.mxu0 0
    %4091 = vmatpush1.bf16.msra.mxu0 %v3988
    %4092 = vmatprep.subr.bf16.mxu0 0
    %4093 = vmatpush1.bf16.msra.mxu0 %v3989
    %4094 = vmatprep.mubr.bf16.mxu0 %v3758
    %4095 = vmatmul.mubr.bf16.gmra.mrb[0].mxu0 %v3757
    %v4096 = vpop.f32.mrb[0].mxu0
    %v4097 = vadd.f32 %v4057, %v4096
    %v4098 = vpop.f32.mrb[0].mxu0
    %v4099 = vpop.f32.mrb[0].mxu0
    %v4100 = vpop.f32.mrb[0].mxu0
    %4101 = vdwg.mxu0
    %4102 = vst [vmem:[#allocation3] sm:$0x3] %v4097
    // Predicated region
    $region22: #{encoder_forward.1} parent=1 // pred_check
      _
    $region23: #{encoder_forward.1} parent=1 // pred_check_branch
      %4104 = sbr.rel (0) target = $region25
    $region24: #{encoder_forward.1} parent=1 // pred_region
      %s4106 = ssub.s32 32, 32
      %4107 = vsyncadd [#allocation4], %s4106
      %s4109 = sshll.u32 [#allocation3], 4
      %s4110 = int_to_ptr.vmem [resolvable:$true] %s4109
      %4112 = dma.vmem_to_hbm [thread:$0]  %s4110, 32, %s5, [#allocation4]
    $region25: #{encoder_forward.1} parent=1 // pred_fallthru
      _
    // Predicated region
    $region26: #{encoder_forward.1} parent=1 // pred_check
      _
    $region27: #{encoder_forward.1} parent=1 // pred_check_branch
      %4114 = sbr.rel (0) target = $region29
    $region28: #{encoder_forward.1} parent=1 // pred_region
      %4115 = dma.done [#allocation4], 32
    $region29: #{encoder_forward.1} parent=1 // pred_fallthru
      _
    %4116 = vsyncpa [#allocation4], 1

</llo_original>
